<compile_context>
chip_gen: v7x
topology: tpu7x:2x2x1
jax: 0.10.0
libtpu: 0.0.40
codegen_flags: <defaults>
</compile_context>

<pallas_src>
import jax
import jax.numpy as jnp
from jax import lax
from jax.experimental import pallas as pl
from jax.experimental.pallas import tpu as pltpu


# ----------------------------- Pallas kernel -------------------------------
def _sk_kernel(x_ref, w1_ref, w2_ref, s12_ref, b12_ref,
               ws_ref, sbn_ref, bbn_ref, wa_ref, ba_ref, o_ref):
    # x_ref  : (1, H+4, W+4, C) bf16  pad-2 NHWC input, channels pre-expanded to Cout
    # w1/w2  : (9, 1, C)        f32   per-tap depthwise weights (branch 1 / branch 2)
    # s12/b12: (1, 2C)          f32   folded BN scale/bias, [branch1 | branch2]
    # ws     : (C, Hd)  sbn/bbn: (1, Hd)  wa: (Hd, 2C)  ba: (1, 2C)
    # o_ref  : (1, C, H*W)      f32   channel-major (NCHW-flat) output
    Hp, Wp, C = x_ref.shape[1], x_ref.shape[2], x_ref.shape[3]
    H, W = Hp - 4, Wp - 4

    # Depthwise grouped convs: 9 broadcast FMAs per branch on the VPU (no MXU
    # block-diagonal waste), taps sliced in-kernel from the single padded block.
    y1 = jnp.zeros((H, W, C), jnp.float32)
    y2 = jnp.zeros((H, W, C), jnp.float32)
    for t in range(9):                                   # static unroll, 9 taps
        ky, kx = t // 3, t % 3
        # branch 1: 3x3, padding=1, dilation=1 -> offsets 1..3 in the pad-2 buffer
        x1 = x_ref[0, ky + 1:ky + 1 + H, kx + 1:kx + 1 + W, :]
        # branch 2: 3x3, padding=2, dilation=2 -> offsets 0,2,4
        x2 = x_ref[0, 2 * ky:2 * ky + H, 2 * kx:2 * kx + W, :]
        y1 = y1 + x1.astype(jnp.float32) * w1_ref[t]     # (1,C) broadcasts
        y2 = y2 + x2.astype(jnp.float32) * w2_ref[t]

    # Fused BN + ReLU for both branches on one lane-dense (HW, 2C) buffer.
    y12 = jnp.concatenate([y1, y2], axis=-1).reshape(H * W, 2 * C)
    y12 = jnp.maximum(y12 * s12_ref[...] + b12_ref[...], 0.0)

    # Selective-kernel attention.
    pool12 = jnp.mean(y12, axis=0, keepdims=True)        # (1, 2C)
    pool = pool12[:, :C] + pool12[:, C:]                 # GAP of (y1 + y2)
    z = jnp.dot(pool, ws_ref[...], preferred_element_type=jnp.float32)   # (1, Hd)
    z = jnp.maximum(z * sbn_ref[...] + bbn_ref[...], 0.0)                # Linear+BN1d+ReLU
    att = jnp.dot(z, wa_ref[...], preferred_element_type=jnp.float32) + ba_ref[...]  # (1, 2C)

    a1, a2 = att[:, :C], att[:, C:]
    m = jnp.maximum(a1, a2)
    e1 = jnp.exp(a1 - m)
    e2 = jnp.exp(a2 - m)
    inv = pl.reciprocal(e1 + e2, approx=True)            # softmax over the 2 branches (EUP)
    attw = jnp.concatenate([e1 * inv, e2 * inv], axis=-1)  # (1, 2C)

    out12 = y12 * attw                                   # (HW, 2C) lane-dense
    out = out12[:, :C] + out12[:, C:]                    # (HW, C)
    o_ref[0] = out.T.astype(o_ref.dtype)                 # (C, HW): lane-dense store


# ------------------------ one-time weight preprocessing ---------------------
def prepack_params(w1_t, s1, b1, w2_t, s2, b2, ws, sbn, bbn, wa, ba, *, groups):
    """Hoisted out of the per-call path: depthwise repack + folded-BN concat."""
    Cout, ipg, kh, kw = w1_t.shape
    assert ipg == 1, "kernel specialises in-channels-per-group == 1 (Cin == groups)"

    def dw(w):  # (Cout, 1, 3, 3) -> (9, 1, Cout) per-tap, per-output-channel weights
        return jnp.transpose(w.reshape(Cout, kh * kw)).reshape(kh * kw, 1, Cout)

    r = lambda v: v.reshape(1, -1)
    return dict(
        w1=dw(w1_t), w2=dw(w2_t),
        s12=r(jnp.concatenate([s1, s2])), b12=r(jnp.concatenate([b1, b2])),
        ws=ws, sbn=r(sbn), bbn=r(bbn), wa=wa, ba=r(ba),
    )


# ------------------------------- forward (JAX) ------------------------------
def selective_kernel_2d(x_nchw, params, *, groups):
    B, Cin, H, W = x_nchw.shape
    Cout = params["w1"].shape[-1]
    HW = H * W
    assert Cin == groups, "kernel specialises in-channels-per-group == 1"
    opg = Cout // groups

    # bf16 -> NHWC -> pad 2 (covers both branches) -> expand channels to Cout
    # (output channel o reads input channel o // opg).
    x = x_nchw.astype(jnp.bfloat16)
    x = jnp.transpose(x, (0, 2, 3, 1))
    x = jnp.pad(x, ((0, 0), (2, 2), (2, 2), (0, 0)))
    x = jnp.repeat(x, opg, axis=-1)                      # (B, H+4, W+4, Cout) bf16
    Hp, Wp = H + 4, W + 4

    # VMEM budget from the actual per-step blocks (double-buffered in/out + temps).
    x_blk = Hp * Wp * Cout * 2                           # bf16 input block
    o_blk = Cout * HW * 4                                # f32 output block
    tmp = 8 * HW * 2 * Cout * 4                          # in-kernel f32 intermediates
    vmem_limit = int(min(max(2 * x_blk + 2 * o_blk + tmp + (2 << 20), 8 << 20), 64 << 20))

    def full(a):  # whole small weight array as a single resident block
        nd = a.ndim
        return pl.BlockSpec(a.shape, lambda b, _nd=nd: (0,) * _nd)

    out = pl.pallas_call(
        _sk_kernel,
        out_shape=jax.ShapeDtypeStruct((B, Cout, HW), jnp.float32),
        grid=(B,),
        in_specs=[
            pl.BlockSpec((1, Hp, Wp, Cout), lambda b: (b, 0, 0, 0)),
            full(params["w1"]), full(params["w2"]),
            full(params["s12"]), full(params["b12"]),
            full(params["ws"]), full(params["sbn"]), full(params["bbn"]),
            full(params["wa"]), full(params["ba"]),
        ],
        out_specs=pl.BlockSpec((1, Cout, HW), lambda b: (b, 0, 0)),
        compiler_params=pltpu.CompilerParams(
            dimension_semantics=("parallel",),
            vmem_limit_bytes=vmem_limit,
        ),
    )(x, params["w1"], params["w2"], params["s12"], params["b12"],
      params["ws"], params["sbn"], params["bbn"], params["wa"], params["ba"])

    return out.reshape(B, Cout, H, W)                    # already channel-major (NCHW)


# ----------------------------- pure-JAX reference ---------------------------
def _ref_forward(x, w1_t, s1, b1, w2_t, s2, b2, ws, sbn, bbn, wa, ba, groups):
    dn = ('NCHW', 'OIHW', 'NCHW')
    y1 = lax.conv_general_dilated(x, w1_t, (1, 1), ((1, 1), (1, 1)),
                                  rhs_dilation=(1, 1), dimension_numbers=dn,
                                  feature_group_count=groups)
    y1 = jnp.maximum(y1 * s1[None, :, None, None] + b1[None, :, None, None], 0.0)
    y2 = lax.conv_general_dilated(x, w2_t, (1, 1), ((2, 2), (2, 2)),
                                  rhs_dilation=(2, 2), dimension_numbers=dn,
                                  feature_group_count=groups)
    y2 = jnp.maximum(y2 * s2[None, :, None, None] + b2[None, :, None, None], 0.0)
    pool = (y1 + y2).mean((2, 3))                        # (B, C)
    z = jnp.maximum(pool @ ws * sbn + bbn, 0.0)
    att = z @ wa + ba
    B, C = pool.shape
    a = jax.nn.softmax(att.reshape(B, 2, C), axis=1)
    return a[:, 0, :, None, None] * y1 + a[:, 1, :, None, None] * y2


# ---------------------------------- main ------------------------------------
if __name__ == "__main__":
    B, Cin, H, W = 2, 32, 16, 16
    Cout, groups, reduction = 64, 32, 16
    Hd = max(32, Cout // reduction)
    ipg = Cin // groups
    eps = 1e-5

    key = jax.random.PRNGKey(0)
    ks = jax.random.split(key, 9)
    x = jax.random.normal(ks[0], (B, Cin, H, W), jnp.float32)

    w1_t = jax.random.normal(ks[1], (Cout, ipg, 3, 3), jnp.float32) * 0.2
    w2_t = jax.random.normal(ks[2], (Cout, ipg, 3, 3), jnp.float32) * 0.2

    def bn_params(k, n):
        k1, k2, k3, k4 = jax.random.split(k, 4)
        gamma = 1.0 + 0.1 * jax.random.normal(k1, (n,), jnp.float32)
        beta = 0.1 * jax.random.normal(k2, (n,), jnp.float32)
        rm = 0.05 * jax.random.normal(k3, (n,), jnp.float32)
        rv = 0.9 + 0.2 * jax.random.uniform(k4, (n,), jnp.float32)
        scale = gamma / jnp.sqrt(rv + eps)
        bias = beta - rm * scale
        return scale, bias

    s1, b1 = bn_params(ks[3], Cout)      # BN2d after conv1 (folded)
    s2, b2 = bn_params(ks[4], Cout)      # BN2d after conv2 (folded)
    sbn, bbn = bn_params(ks[5], Hd)      # BN1d in self.s (folded)

    ws = jax.random.normal(ks[6], (Cout, Hd), jnp.float32) * (1.0 / jnp.sqrt(Cout))
    wa = jax.random.normal(ks[7], (Hd, 2 * Cout), jnp.float32) * (1.0 / jnp.sqrt(Hd))
    ba = 0.1 * jax.random.normal(ks[8], (2 * Cout,), jnp.float32)

    params = prepack_params(w1_t, s1, b1, w2_t, s2, b2,
                            ws, sbn, bbn, wa, ba, groups=groups)
    out = selective_kernel_2d(x, params, groups=groups)
    out = jax.block_until_ready(out)

    ref = _ref_forward(x, w1_t, s1, b1, w2_t, s2, b2, ws, sbn, bbn, wa, ba, groups)
    assert out.shape == (B, Cout, H, W), out.shape
    max_err = float(jnp.max(jnp.abs(out - ref)))
    # bf16 input quantisation -> slightly looser tolerance than pure f32.
    assert jnp.allclose(out, ref, atol=3e-2, rtol=3e-2), max_err
    print("KERNEL_OK")
</pallas_src>

<mosaic_0001>
module attributes {stable_mosaic.version = 11 : i64} {
  func.func @_sk_kernel(%arg0: i32, %arg1: memref<1x20x20x64xbf16, #tpu.memory_space<vmem>>, %arg2: memref<9x1x64xf32, #tpu.memory_space<vmem>>, %arg3: memref<9x1x64xf32, #tpu.memory_space<vmem>>, %arg4: memref<1x128xf32, #tpu.memory_space<vmem>>, %arg5: memref<1x128xf32, #tpu.memory_space<vmem>>, %arg6: memref<64x32xf32, #tpu.memory_space<vmem>>, %arg7: memref<1x32xf32, #tpu.memory_space<vmem>>, %arg8: memref<1x32xf32, #tpu.memory_space<vmem>>, %arg9: memref<32x128xf32, #tpu.memory_space<vmem>>, %arg10: memref<1x128xf32, #tpu.memory_space<vmem>>, %arg11: memref<1x64x256xf32, #tpu.memory_space<vmem>>) attributes {dimension_semantics = [#tpu.dimension_semantics<parallel>], iteration_bounds = array<i64: 2>, scalar_prefetch = 0 : i64, scratch_operands = 0 : i64, tpu.core_type = #tpu.core_type<tc>, window_params = [{transform_indices = @transform_0, window_bounds = array<i64: 1, 20, 20, 64>}, {pipeline_mode = #tpu.pipeline_mode<synchronous>, transform_indices = @transform_1, window_bounds = array<i64: 9, 1, 64>}, {pipeline_mode = #tpu.pipeline_mode<synchronous>, transform_indices = @transform_2, window_bounds = array<i64: 9, 1, 64>}, {pipeline_mode = #tpu.pipeline_mode<synchronous>, transform_indices = @transform_3, window_bounds = array<i64: 1, 128>}, {pipeline_mode = #tpu.pipeline_mode<synchronous>, transform_indices = @transform_4, window_bounds = array<i64: 1, 128>}, {pipeline_mode = #tpu.pipeline_mode<synchronous>, transform_indices = @transform_5, window_bounds = array<i64: 64, 32>}, {pipeline_mode = #tpu.pipeline_mode<synchronous>, transform_indices = @transform_6, window_bounds = array<i64: 1, 32>}, {pipeline_mode = #tpu.pipeline_mode<synchronous>, transform_indices = @transform_7, window_bounds = array<i64: 1, 32>}, {pipeline_mode = #tpu.pipeline_mode<synchronous>, transform_indices = @transform_8, window_bounds = array<i64: 32, 128>}, {pipeline_mode = #tpu.pipeline_mode<synchronous>, transform_indices = @transform_9, window_bounds = array<i64: 1, 128>}, {transform_indices = @transform_10, window_bounds = array<i64: 1, 64, 256>}]} {
    %cst = arith.constant 0.000000e+00 : f32
    %0 = vector.broadcast %cst : f32 to vector<16x16x64xf32>
    %cst_0 = arith.constant 0.000000e+00 : f32
    %1 = vector.broadcast %cst_0 : f32 to vector<16x16x64xf32>
    %c0 = arith.constant 0 : index
    %c1 = arith.constant 1 : index
    %c1_1 = arith.constant 1 : index
    %c0_2 = arith.constant 0 : index
    %2 = vector.load %arg1[%c0, %c1, %c1_1, %c0_2] : memref<1x20x20x64xbf16, #tpu.memory_space<vmem>>, vector<1x16x16x64xbf16>
    %3 = vector.shape_cast %2 : vector<1x16x16x64xbf16> to vector<16x16x64xbf16>
    %c0_3 = arith.constant 0 : index
    %c0_4 = arith.constant 0 : index
    %c0_5 = arith.constant 0 : index
    %c0_6 = arith.constant 0 : index
    %4 = vector.load %arg1[%c0_3, %c0_4, %c0_5, %c0_6] : memref<1x20x20x64xbf16, #tpu.memory_space<vmem>>, vector<1x16x16x64xbf16>
    %5 = vector.shape_cast %4 : vector<1x16x16x64xbf16> to vector<16x16x64xbf16>
    %6 = arith.extf %3 : vector<16x16x64xbf16> to vector<16x16x64xf32>
    %c0_7 = arith.constant 0 : index
    %c0_8 = arith.constant 0 : index
    %c0_9 = arith.constant 0 : index
    %7 = vector.load %arg2[%c0_7, %c0_8, %c0_9] : memref<9x1x64xf32, #tpu.memory_space<vmem>>, vector<1x1x64xf32>
    %8 = vector.shape_cast %7 : vector<1x1x64xf32> to vector<1x64xf32>
    %9 = vector.shape_cast %8 : vector<1x64xf32> to vector<1x1x64xf32>
    %10 = vector.broadcast %9 : vector<1x1x64xf32> to vector<16x16x64xf32>
    %11 = arith.mulf %6, %10 : vector<16x16x64xf32>
    %12 = arith.addf %0, %11 : vector<16x16x64xf32>
    %13 = arith.extf %5 : vector<16x16x64xbf16> to vector<16x16x64xf32>
    %c0_10 = arith.constant 0 : index
    %c0_11 = arith.constant 0 : index
    %c0_12 = arith.constant 0 : index
    %14 = vector.load %arg3[%c0_10, %c0_11, %c0_12] : memref<9x1x64xf32, #tpu.memory_space<vmem>>, vector<1x1x64xf32>
    %15 = vector.shape_cast %14 : vector<1x1x64xf32> to vector<1x64xf32>
    %16 = vector.shape_cast %15 : vector<1x64xf32> to vector<1x1x64xf32>
    %17 = vector.broadcast %16 : vector<1x1x64xf32> to vector<16x16x64xf32>
    %18 = arith.mulf %13, %17 : vector<16x16x64xf32>
    %19 = arith.addf %1, %18 : vector<16x16x64xf32>
    %c0_13 = arith.constant 0 : index
    %c1_14 = arith.constant 1 : index
    %c2 = arith.constant 2 : index
    %c0_15 = arith.constant 0 : index
    %20 = vector.load %arg1[%c0_13, %c1_14, %c2, %c0_15] : memref<1x20x20x64xbf16, #tpu.memory_space<vmem>>, vector<1x16x16x64xbf16>
    %21 = vector.shape_cast %20 : vector<1x16x16x64xbf16> to vector<16x16x64xbf16>
    %c0_16 = arith.constant 0 : index
    %c0_17 = arith.constant 0 : index
    %c2_18 = arith.constant 2 : index
    %c0_19 = arith.constant 0 : index
    %22 = vector.load %arg1[%c0_16, %c0_17, %c2_18, %c0_19] : memref<1x20x20x64xbf16, #tpu.memory_space<vmem>>, vector<1x16x16x64xbf16>
    %23 = vector.shape_cast %22 : vector<1x16x16x64xbf16> to vector<16x16x64xbf16>
    %24 = arith.extf %21 : vector<16x16x64xbf16> to vector<16x16x64xf32>
    %c1_20 = arith.constant 1 : index
    %c0_21 = arith.constant 0 : index
    %c0_22 = arith.constant 0 : index
    %25 = vector.load %arg2[%c1_20, %c0_21, %c0_22] : memref<9x1x64xf32, #tpu.memory_space<vmem>>, vector<1x1x64xf32>
    %26 = vector.shape_cast %25 : vector<1x1x64xf32> to vector<1x64xf32>
    %27 = vector.shape_cast %26 : vector<1x64xf32> to vector<1x1x64xf32>
    %28 = vector.broadcast %27 : vector<1x1x64xf32> to vector<16x16x64xf32>
    %29 = arith.mulf %24, %28 : vector<16x16x64xf32>
    %30 = arith.addf %12, %29 : vector<16x16x64xf32>
    %31 = arith.extf %23 : vector<16x16x64xbf16> to vector<16x16x64xf32>
    %c1_23 = arith.constant 1 : index
    %c0_24 = arith.constant 0 : index
    %c0_25 = arith.constant 0 : index
    %32 = vector.load %arg3[%c1_23, %c0_24, %c0_25] : memref<9x1x64xf32, #tpu.memory_space<vmem>>, vector<1x1x64xf32>
    %33 = vector.shape_cast %32 : vector<1x1x64xf32> to vector<1x64xf32>
    %34 = vector.shape_cast %33 : vector<1x64xf32> to vector<1x1x64xf32>
    %35 = vector.broadcast %34 : vector<1x1x64xf32> to vector<16x16x64xf32>
    %36 = arith.mulf %31, %35 : vector<16x16x64xf32>
    %37 = arith.addf %19, %36 : vector<16x16x64xf32>
    %c0_26 = arith.constant 0 : index
    %c1_27 = arith.constant 1 : index
    %c3 = arith.constant 3 : index
    %c0_28 = arith.constant 0 : index
    %38 = vector.load %arg1[%c0_26, %c1_27, %c3, %c0_28] : memref<1x20x20x64xbf16, #tpu.memory_space<vmem>>, vector<1x16x16x64xbf16>
    %39 = vector.shape_cast %38 : vector<1x16x16x64xbf16> to vector<16x16x64xbf16>
    %c0_29 = arith.constant 0 : index
    %c0_30 = arith.constant 0 : index
    %c4 = arith.constant 4 : index
    %c0_31 = arith.constant 0 : index
    %40 = vector.load %arg1[%c0_29, %c0_30, %c4, %c0_31] : memref<1x20x20x64xbf16, #tpu.memory_space<vmem>>, vector<1x16x16x64xbf16>
    %41 = vector.shape_cast %40 : vector<1x16x16x64xbf16> to vector<16x16x64xbf16>
    %42 = arith.extf %39 : vector<16x16x64xbf16> to vector<16x16x64xf32>
    %c2_32 = arith.constant 2 : index
    %c0_33 = arith.constant 0 : index
    %c0_34 = arith.constant 0 : index
    %43 = vector.load %arg2[%c2_32, %c0_33, %c0_34] : memref<9x1x64xf32, #tpu.memory_space<vmem>>, vector<1x1x64xf32>
    %44 = vector.shape_cast %43 : vector<1x1x64xf32> to vector<1x64xf32>
    %45 = vector.shape_cast %44 : vector<1x64xf32> to vector<1x1x64xf32>
    %46 = vector.broadcast %45 : vector<1x1x64xf32> to vector<16x16x64xf32>
    %47 = arith.mulf %42, %46 : vector<16x16x64xf32>
    %48 = arith.addf %30, %47 : vector<16x16x64xf32>
    %49 = arith.extf %41 : vector<16x16x64xbf16> to vector<16x16x64xf32>
    %c2_35 = arith.constant 2 : index
    %c0_36 = arith.constant 0 : index
    %c0_37 = arith.constant 0 : index
    %50 = vector.load %arg3[%c2_35, %c0_36, %c0_37] : memref<9x1x64xf32, #tpu.memory_space<vmem>>, vector<1x1x64xf32>
    %51 = vector.shape_cast %50 : vector<1x1x64xf32> to vector<1x64xf32>
    %52 = vector.shape_cast %51 : vector<1x64xf32> to vector<1x1x64xf32>
    %53 = vector.broadcast %52 : vector<1x1x64xf32> to vector<16x16x64xf32>
    %54 = arith.mulf %49, %53 : vector<16x16x64xf32>
    %55 = arith.addf %37, %54 : vector<16x16x64xf32>
    %c0_38 = arith.constant 0 : index
    %c2_39 = arith.constant 2 : index
    %c1_40 = arith.constant 1 : index
    %c0_41 = arith.constant 0 : index
    %56 = vector.load %arg1[%c0_38, %c2_39, %c1_40, %c0_41] : memref<1x20x20x64xbf16, #tpu.memory_space<vmem>>, vector<1x16x16x64xbf16>
    %57 = vector.shape_cast %56 : vector<1x16x16x64xbf16> to vector<16x16x64xbf16>
    %c0_42 = arith.constant 0 : index
    %c2_43 = arith.constant 2 : index
    %c0_44 = arith.constant 0 : index
    %c0_45 = arith.constant 0 : index
    %58 = vector.load %arg1[%c0_42, %c2_43, %c0_44, %c0_45] : memref<1x20x20x64xbf16, #tpu.memory_space<vmem>>, vector<1x16x16x64xbf16>
    %59 = vector.shape_cast %58 : vector<1x16x16x64xbf16> to vector<16x16x64xbf16>
    %60 = arith.extf %57 : vector<16x16x64xbf16> to vector<16x16x64xf32>
    %c3_46 = arith.constant 3 : index
    %c0_47 = arith.constant 0 : index
    %c0_48 = arith.constant 0 : index
    %61 = vector.load %arg2[%c3_46, %c0_47, %c0_48] : memref<9x1x64xf32, #tpu.memory_space<vmem>>, vector<1x1x64xf32>
    %62 = vector.shape_cast %61 : vector<1x1x64xf32> to vector<1x64xf32>
    %63 = vector.shape_cast %62 : vector<1x64xf32> to vector<1x1x64xf32>
    %64 = vector.broadcast %63 : vector<1x1x64xf32> to vector<16x16x64xf32>
    %65 = arith.mulf %60, %64 : vector<16x16x64xf32>
    %66 = arith.addf %48, %65 : vector<16x16x64xf32>
    %67 = arith.extf %59 : vector<16x16x64xbf16> to vector<16x16x64xf32>
    %c3_49 = arith.constant 3 : index
    %c0_50 = arith.constant 0 : index
    %c0_51 = arith.constant 0 : index
    %68 = vector.load %arg3[%c3_49, %c0_50, %c0_51] : memref<9x1x64xf32, #tpu.memory_space<vmem>>, vector<1x1x64xf32>
    %69 = vector.shape_cast %68 : vector<1x1x64xf32> to vector<1x64xf32>
    %70 = vector.shape_cast %69 : vector<1x64xf32> to vector<1x1x64xf32>
    %71 = vector.broadcast %70 : vector<1x1x64xf32> to vector<16x16x64xf32>
    %72 = arith.mulf %67, %71 : vector<16x16x64xf32>
    %73 = arith.addf %55, %72 : vector<16x16x64xf32>
    %c0_52 = arith.constant 0 : index
    %c2_53 = arith.constant 2 : index
    %c2_54 = arith.constant 2 : index
    %c0_55 = arith.constant 0 : index
    %74 = vector.load %arg1[%c0_52, %c2_53, %c2_54, %c0_55] : memref<1x20x20x64xbf16, #tpu.memory_space<vmem>>, vector<1x16x16x64xbf16>
    %75 = vector.shape_cast %74 : vector<1x16x16x64xbf16> to vector<16x16x64xbf16>
    %c0_56 = arith.constant 0 : index
    %c2_57 = arith.constant 2 : index
    %c2_58 = arith.constant 2 : index
    %c0_59 = arith.constant 0 : index
    %76 = vector.load %arg1[%c0_56, %c2_57, %c2_58, %c0_59] : memref<1x20x20x64xbf16, #tpu.memory_space<vmem>>, vector<1x16x16x64xbf16>
    %77 = vector.shape_cast %76 : vector<1x16x16x64xbf16> to vector<16x16x64xbf16>
    %78 = arith.extf %75 : vector<16x16x64xbf16> to vector<16x16x64xf32>
    %c4_60 = arith.constant 4 : index
    %c0_61 = arith.constant 0 : index
    %c0_62 = arith.constant 0 : index
    %79 = vector.load %arg2[%c4_60, %c0_61, %c0_62] : memref<9x1x64xf32, #tpu.memory_space<vmem>>, vector<1x1x64xf32>
    %80 = vector.shape_cast %79 : vector<1x1x64xf32> to vector<1x64xf32>
    %81 = vector.shape_cast %80 : vector<1x64xf32> to vector<1x1x64xf32>
    %82 = vector.broadcast %81 : vector<1x1x64xf32> to vector<16x16x64xf32>
    %83 = arith.mulf %78, %82 : vector<16x16x64xf32>
    %84 = arith.addf %66, %83 : vector<16x16x64xf32>
    %85 = arith.extf %77 : vector<16x16x64xbf16> to vector<16x16x64xf32>
    %c4_63 = arith.constant 4 : index
    %c0_64 = arith.constant 0 : index
    %c0_65 = arith.constant 0 : index
    %86 = vector.load %arg3[%c4_63, %c0_64, %c0_65] : memref<9x1x64xf32, #tpu.memory_space<vmem>>, vector<1x1x64xf32>
    %87 = vector.shape_cast %86 : vector<1x1x64xf32> to vector<1x64xf32>
    %88 = vector.shape_cast %87 : vector<1x64xf32> to vector<1x1x64xf32>
    %89 = vector.broadcast %88 : vector<1x1x64xf32> to vector<16x16x64xf32>
    %90 = arith.mulf %85, %89 : vector<16x16x64xf32>
    %91 = arith.addf %73, %90 : vector<16x16x64xf32>
    %c0_66 = arith.constant 0 : index
    %c2_67 = arith.constant 2 : index
    %c3_68 = arith.constant 3 : index
    %c0_69 = arith.constant 0 : index
    %92 = vector.load %arg1[%c0_66, %c2_67, %c3_68, %c0_69] : memref<1x20x20x64xbf16, #tpu.memory_space<vmem>>, vector<1x16x16x64xbf16>
    %93 = vector.shape_cast %92 : vector<1x16x16x64xbf16> to vector<16x16x64xbf16>
    %c0_70 = arith.constant 0 : index
    %c2_71 = arith.constant 2 : index
    %c4_72 = arith.constant 4 : index
    %c0_73 = arith.constant 0 : index
    %94 = vector.load %arg1[%c0_70, %c2_71, %c4_72, %c0_73] : memref<1x20x20x64xbf16, #tpu.memory_space<vmem>>, vector<1x16x16x64xbf16>
    %95 = vector.shape_cast %94 : vector<1x16x16x64xbf16> to vector<16x16x64xbf16>
    %96 = arith.extf %93 : vector<16x16x64xbf16> to vector<16x16x64xf32>
    %c5 = arith.constant 5 : index
    %c0_74 = arith.constant 0 : index
    %c0_75 = arith.constant 0 : index
    %97 = vector.load %arg2[%c5, %c0_74, %c0_75] : memref<9x1x64xf32, #tpu.memory_space<vmem>>, vector<1x1x64xf32>
    %98 = vector.shape_cast %97 : vector<1x1x64xf32> to vector<1x64xf32>
    %99 = vector.shape_cast %98 : vector<1x64xf32> to vector<1x1x64xf32>
    %100 = vector.broadcast %99 : vector<1x1x64xf32> to vector<16x16x64xf32>
    %101 = arith.mulf %96, %100 : vector<16x16x64xf32>
    %102 = arith.addf %84, %101 : vector<16x16x64xf32>
    %103 = arith.extf %95 : vector<16x16x64xbf16> to vector<16x16x64xf32>
    %c5_76 = arith.constant 5 : index
    %c0_77 = arith.constant 0 : index
    %c0_78 = arith.constant 0 : index
    %104 = vector.load %arg3[%c5_76, %c0_77, %c0_78] : memref<9x1x64xf32, #tpu.memory_space<vmem>>, vector<1x1x64xf32>
    %105 = vector.shape_cast %104 : vector<1x1x64xf32> to vector<1x64xf32>
    %106 = vector.shape_cast %105 : vector<1x64xf32> to vector<1x1x64xf32>
    %107 = vector.broadcast %106 : vector<1x1x64xf32> to vector<16x16x64xf32>
    %108 = arith.mulf %103, %107 : vector<16x16x64xf32>
    %109 = arith.addf %91, %108 : vector<16x16x64xf32>
    %c0_79 = arith.constant 0 : index
    %c3_80 = arith.constant 3 : index
    %c1_81 = arith.constant 1 : index
    %c0_82 = arith.constant 0 : index
    %110 = vector.load %arg1[%c0_79, %c3_80, %c1_81, %c0_82] : memref<1x20x20x64xbf16, #tpu.memory_space<vmem>>, vector<1x16x16x64xbf16>
    %111 = vector.shape_cast %110 : vector<1x16x16x64xbf16> to vector<16x16x64xbf16>
    %c0_83 = arith.constant 0 : index
    %c4_84 = arith.constant 4 : index
    %c0_85 = arith.constant 0 : index
    %c0_86 = arith.constant 0 : index
    %112 = vector.load %arg1[%c0_83, %c4_84, %c0_85, %c0_86] : memref<1x20x20x64xbf16, #tpu.memory_space<vmem>>, vector<1x16x16x64xbf16>
    %113 = vector.shape_cast %112 : vector<1x16x16x64xbf16> to vector<16x16x64xbf16>
    %114 = arith.extf %111 : vector<16x16x64xbf16> to vector<16x16x64xf32>
    %c6 = arith.constant 6 : index
    %c0_87 = arith.constant 0 : index
    %c0_88 = arith.constant 0 : index
    %115 = vector.load %arg2[%c6, %c0_87, %c0_88] : memref<9x1x64xf32, #tpu.memory_space<vmem>>, vector<1x1x64xf32>
    %116 = vector.shape_cast %115 : vector<1x1x64xf32> to vector<1x64xf32>
    %117 = vector.shape_cast %116 : vector<1x64xf32> to vector<1x1x64xf32>
    %118 = vector.broadcast %117 : vector<1x1x64xf32> to vector<16x16x64xf32>
    %119 = arith.mulf %114, %118 : vector<16x16x64xf32>
    %120 = arith.addf %102, %119 : vector<16x16x64xf32>
    %121 = arith.extf %113 : vector<16x16x64xbf16> to vector<16x16x64xf32>
    %c6_89 = arith.constant 6 : index
    %c0_90 = arith.constant 0 : index
    %c0_91 = arith.constant 0 : index
    %122 = vector.load %arg3[%c6_89, %c0_90, %c0_91] : memref<9x1x64xf32, #tpu.memory_space<vmem>>, vector<1x1x64xf32>
    %123 = vector.shape_cast %122 : vector<1x1x64xf32> to vector<1x64xf32>
    %124 = vector.shape_cast %123 : vector<1x64xf32> to vector<1x1x64xf32>
    %125 = vector.broadcast %124 : vector<1x1x64xf32> to vector<16x16x64xf32>
    %126 = arith.mulf %121, %125 : vector<16x16x64xf32>
    %127 = arith.addf %109, %126 : vector<16x16x64xf32>
    %c0_92 = arith.constant 0 : index
    %c3_93 = arith.constant 3 : index
    %c2_94 = arith.constant 2 : index
    %c0_95 = arith.constant 0 : index
    %128 = vector.load %arg1[%c0_92, %c3_93, %c2_94, %c0_95] : memref<1x20x20x64xbf16, #tpu.memory_space<vmem>>, vector<1x16x16x64xbf16>
    %129 = vector.shape_cast %128 : vector<1x16x16x64xbf16> to vector<16x16x64xbf16>
    %c0_96 = arith.constant 0 : index
    %c4_97 = arith.constant 4 : index
    %c2_98 = arith.constant 2 : index
    %c0_99 = arith.constant 0 : index
    %130 = vector.load %arg1[%c0_96, %c4_97, %c2_98, %c0_99] : memref<1x20x20x64xbf16, #tpu.memory_space<vmem>>, vector<1x16x16x64xbf16>
    %131 = vector.shape_cast %130 : vector<1x16x16x64xbf16> to vector<16x16x64xbf16>
    %132 = arith.extf %129 : vector<16x16x64xbf16> to vector<16x16x64xf32>
    %c7 = arith.constant 7 : index
    %c0_100 = arith.constant 0 : index
    %c0_101 = arith.constant 0 : index
    %133 = vector.load %arg2[%c7, %c0_100, %c0_101] : memref<9x1x64xf32, #tpu.memory_space<vmem>>, vector<1x1x64xf32>
    %134 = vector.shape_cast %133 : vector<1x1x64xf32> to vector<1x64xf32>
    %135 = vector.shape_cast %134 : vector<1x64xf32> to vector<1x1x64xf32>
    %136 = vector.broadcast %135 : vector<1x1x64xf32> to vector<16x16x64xf32>
    %137 = arith.mulf %132, %136 : vector<16x16x64xf32>
    %138 = arith.addf %120, %137 : vector<16x16x64xf32>
    %139 = arith.extf %131 : vector<16x16x64xbf16> to vector<16x16x64xf32>
    %c7_102 = arith.constant 7 : index
    %c0_103 = arith.constant 0 : index
    %c0_104 = arith.constant 0 : index
    %140 = vector.load %arg3[%c7_102, %c0_103, %c0_104] : memref<9x1x64xf32, #tpu.memory_space<vmem>>, vector<1x1x64xf32>
    %141 = vector.shape_cast %140 : vector<1x1x64xf32> to vector<1x64xf32>
    %142 = vector.shape_cast %141 : vector<1x64xf32> to vector<1x1x64xf32>
    %143 = vector.broadcast %142 : vector<1x1x64xf32> to vector<16x16x64xf32>
    %144 = arith.mulf %139, %143 : vector<16x16x64xf32>
    %145 = arith.addf %127, %144 : vector<16x16x64xf32>
    %c0_105 = arith.constant 0 : index
    %c3_106 = arith.constant 3 : index
    %c3_107 = arith.constant 3 : index
    %c0_108 = arith.constant 0 : index
    %146 = vector.load %arg1[%c0_105, %c3_106, %c3_107, %c0_108] : memref<1x20x20x64xbf16, #tpu.memory_space<vmem>>, vector<1x16x16x64xbf16>
    %147 = vector.shape_cast %146 : vector<1x16x16x64xbf16> to vector<16x16x64xbf16>
    %c0_109 = arith.constant 0 : index
    %c4_110 = arith.constant 4 : index
    %c4_111 = arith.constant 4 : index
    %c0_112 = arith.constant 0 : index
    %148 = vector.load %arg1[%c0_109, %c4_110, %c4_111, %c0_112] : memref<1x20x20x64xbf16, #tpu.memory_space<vmem>>, vector<1x16x16x64xbf16>
    %149 = vector.shape_cast %148 : vector<1x16x16x64xbf16> to vector<16x16x64xbf16>
    %150 = arith.extf %147 : vector<16x16x64xbf16> to vector<16x16x64xf32>
    %c8 = arith.constant 8 : index
    %c0_113 = arith.constant 0 : index
    %c0_114 = arith.constant 0 : index
    %151 = vector.load %arg2[%c8, %c0_113, %c0_114] : memref<9x1x64xf32, #tpu.memory_space<vmem>>, vector<1x1x64xf32>
    %152 = vector.shape_cast %151 : vector<1x1x64xf32> to vector<1x64xf32>
    %153 = vector.shape_cast %152 : vector<1x64xf32> to vector<1x1x64xf32>
    %154 = vector.broadcast %153 : vector<1x1x64xf32> to vector<16x16x64xf32>
    %155 = arith.mulf %150, %154 : vector<16x16x64xf32>
    %156 = arith.addf %138, %155 : vector<16x16x64xf32>
    %157 = arith.extf %149 : vector<16x16x64xbf16> to vector<16x16x64xf32>
    %c8_115 = arith.constant 8 : index
    %c0_116 = arith.constant 0 : index
    %c0_117 = arith.constant 0 : index
    %158 = vector.load %arg3[%c8_115, %c0_116, %c0_117] : memref<9x1x64xf32, #tpu.memory_space<vmem>>, vector<1x1x64xf32>
    %159 = vector.shape_cast %158 : vector<1x1x64xf32> to vector<1x64xf32>
    %160 = vector.shape_cast %159 : vector<1x64xf32> to vector<1x1x64xf32>
    %161 = vector.broadcast %160 : vector<1x1x64xf32> to vector<16x16x64xf32>
    %162 = arith.mulf %157, %161 : vector<16x16x64xf32>
    %163 = arith.addf %145, %162 : vector<16x16x64xf32>
    %164 = tpu.concatenate %156, %163 in 2 : vector<16x16x64xf32>, vector<16x16x64xf32> -> vector<16x16x128xf32>
    %165 = vector.shape_cast %164 : vector<16x16x128xf32> to vector<256x128xf32>
    %c0_118 = arith.constant 0 : index
    %c0_119 = arith.constant 0 : index
    %166 = vector.load %arg4[%c0_118, %c0_119] : memref<1x128xf32, #tpu.memory_space<vmem>>, vector<1x128xf32>
    %167 = vector.broadcast %166 : vector<1x128xf32> to vector<256x128xf32>
    %168 = arith.mulf %165, %167 : vector<256x128xf32>
    %c0_120 = arith.constant 0 : index
    %c0_121 = arith.constant 0 : index
    %169 = vector.load %arg5[%c0_120, %c0_121] : memref<1x128xf32, #tpu.memory_space<vmem>>, vector<1x128xf32>
    %170 = vector.broadcast %169 : vector<1x128xf32> to vector<256x128xf32>
    %171 = arith.addf %168, %170 : vector<256x128xf32>
    %cst_122 = arith.constant 0.000000e+00 : f32
    %172 = vector.broadcast %cst_122 : f32 to vector<256x128xf32>
    %173 = arith.maximumf %171, %172 : vector<256x128xf32>
    %cst_123 = arith.constant dense<0.000000e+00> : vector<128xf32>
    %174 = vector.multi_reduction <add>, %173, %cst_123 [0] : vector<256x128xf32> to vector<128xf32>
    %175 = vector.shape_cast %174 : vector<128xf32> to vector<1x128xf32>
    %cst_124 = arith.constant 2.560000e+02 : f32
    %176 = vector.broadcast %cst_124 : f32 to vector<1x128xf32>
    %177 = arith.divf %175, %176 : vector<1x128xf32>
    %178 = vector.extract_strided_slice %177 {offsets = [0, 0], sizes = [1, 64], strides = [1, 1]} : vector<1x128xf32> to vector<1x64xf32>
    %179 = vector.extract_strided_slice %177 {offsets = [0, 64], sizes = [1, 64], strides = [1, 1]} : vector<1x128xf32> to vector<1x64xf32>
    %180 = arith.addf %178, %179 : vector<1x64xf32>
    %c0_125 = arith.constant 0 : index
    %c0_126 = arith.constant 0 : index
    %181 = vector.load %arg6[%c0_125, %c0_126] : memref<64x32xf32, #tpu.memory_space<vmem>>, vector<64x32xf32>
    %cst_127 = arith.constant dense<0.000000e+00> : vector<1x32xf32>
    %182 = tpu.matmul %180, %181, %cst_127 {dimension_numbers = #tpu.dot_dimension_numbers<[1], [0], [0], [1], [0, 0, 1, 1], [], []>} : vector<1x64xf32>, vector<64x32xf32>, vector<1x32xf32> -> vector<1x32xf32>
    %c0_128 = arith.constant 0 : index
    %c0_129 = arith.constant 0 : index
    %183 = vector.load %arg7[%c0_128, %c0_129] : memref<1x32xf32, #tpu.memory_space<vmem>>, vector<1x32xf32>
    %184 = arith.mulf %182, %183 : vector<1x32xf32>
    %c0_130 = arith.constant 0 : index
    %c0_131 = arith.constant 0 : index
    %185 = vector.load %arg8[%c0_130, %c0_131] : memref<1x32xf32, #tpu.memory_space<vmem>>, vector<1x32xf32>
    %186 = arith.addf %184, %185 : vector<1x32xf32>
    %cst_132 = arith.constant 0.000000e+00 : f32
    %187 = vector.broadcast %cst_132 : f32 to vector<1x32xf32>
    %188 = arith.maximumf %186, %187 : vector<1x32xf32>
    %c0_133 = arith.constant 0 : index
    %c0_134 = arith.constant 0 : index
    %189 = vector.load %arg9[%c0_133, %c0_134] : memref<32x128xf32, #tpu.memory_space<vmem>>, vector<32x128xf32>
    %cst_135 = arith.constant dense<0.000000e+00> : vector<1x128xf32>
    %190 = tpu.matmul %188, %189, %cst_135 {dimension_numbers = #tpu.dot_dimension_numbers<[1], [0], [0], [1], [0, 0, 1, 1], [], []>} : vector<1x32xf32>, vector<32x128xf32>, vector<1x128xf32> -> vector<1x128xf32>
    %c0_136 = arith.constant 0 : index
    %c0_137 = arith.constant 0 : index
    %191 = vector.load %arg10[%c0_136, %c0_137] : memref<1x128xf32, #tpu.memory_space<vmem>>, vector<1x128xf32>
    %192 = arith.addf %190, %191 : vector<1x128xf32>
    %193 = vector.extract_strided_slice %192 {offsets = [0, 0], sizes = [1, 64], strides = [1, 1]} : vector<1x128xf32> to vector<1x64xf32>
    %194 = vector.extract_strided_slice %192 {offsets = [0, 64], sizes = [1, 64], strides = [1, 1]} : vector<1x128xf32> to vector<1x64xf32>
    %195 = arith.maximumf %193, %194 : vector<1x64xf32>
    %196 = arith.subf %193, %195 : vector<1x64xf32>
    %197 = math.exp %196 : vector<1x64xf32>
    %198 = arith.subf %194, %195 : vector<1x64xf32>
    %199 = math.exp %198 : vector<1x64xf32>
    %200 = arith.addf %197, %199 : vector<1x64xf32>
    %201 = tpu.reciprocal %200 {approx = true} : vector<1x64xf32> -> vector<1x64xf32>
    %202 = arith.mulf %197, %201 : vector<1x64xf32>
    %203 = arith.mulf %199, %201 : vector<1x64xf32>
    %204 = tpu.concatenate %202, %203 in 1 : vector<1x64xf32>, vector<1x64xf32> -> vector<1x128xf32>
    %205 = vector.broadcast %204 : vector<1x128xf32> to vector<256x128xf32>
    %206 = arith.mulf %173, %205 : vector<256x128xf32>
    %207 = vector.extract_strided_slice %206 {offsets = [0, 0], sizes = [256, 64], strides = [1, 1]} : vector<256x128xf32> to vector<256x64xf32>
    %208 = vector.extract_strided_slice %206 {offsets = [0, 64], sizes = [256, 64], strides = [1, 1]} : vector<256x128xf32> to vector<256x64xf32>
    %209 = arith.addf %207, %208 : vector<256x64xf32>
    %210 = tpu.transpose %209, [1, 0] : vector<256x64xf32> -> vector<64x256xf32>
    %c0_138 = arith.constant 0 : index
    %c0_139 = arith.constant 0 : index
    %c0_140 = arith.constant 0 : index
    %211 = vector.load %arg11[%c0_138, %c0_139, %c0_140] : memref<1x64x256xf32, #tpu.memory_space<vmem>>, vector<1x64x256xf32>
    %212 = vector.shape_cast %211 : vector<1x64x256xf32> to vector<64x256xf32>
    %213 = vector.shape_cast %210 : vector<64x256xf32> to vector<1x64x256xf32>
    tpu.vector_store %arg11[%c0_138, %c0_139, %c0_140], %213 {strides = array<i32>} : memref<1x64x256xf32, #tpu.memory_space<vmem>>, vector<1x64x256xf32>,
    return
  }
  func.func @transform_0(%arg0: i32) -> (i32, i32, i32, i32) {
    %c0_i32 = arith.constant 0 : i32
    %c0_i32_0 = arith.constant 0 : i32
    %c0_i32_1 = arith.constant 0 : i32
    %c0_i32_2 = arith.constant 0 : i32
    return %arg0, %c0_i32, %c0_i32_0, %c0_i32_1 : i32, i32, i32, i32
  }
  func.func @transform_1(%arg0: i32) -> (i32, i32, i32) {
    %c0_i32 = arith.constant 0 : i32
    %c0_i32_0 = arith.constant 0 : i32
    %c0_i32_1 = arith.constant 0 : i32
    %c0_i32_2 = arith.constant 0 : i32
    return %c0_i32, %c0_i32_0, %c0_i32_1 : i32, i32, i32
  }
  func.func @transform_2(%arg0: i32) -> (i32, i32, i32) {
    %c0_i32 = arith.constant 0 : i32
    %c0_i32_0 = arith.constant 0 : i32
    %c0_i32_1 = arith.constant 0 : i32
    %c0_i32_2 = arith.constant 0 : i32
    return %c0_i32, %c0_i32_0, %c0_i32_1 : i32, i32, i32
  }
  func.func @transform_3(%arg0: i32) -> (i32, i32) {
    %c0_i32 = arith.constant 0 : i32
    %c0_i32_0 = arith.constant 0 : i32
    %c0_i32_1 = arith.constant 0 : i32
    return %c0_i32, %c0_i32_0 : i32, i32
  }
  func.func @transform_4(%arg0: i32) -> (i32, i32) {
    %c0_i32 = arith.constant 0 : i32
    %c0_i32_0 = arith.constant 0 : i32
    %c0_i32_1 = arith.constant 0 : i32
    return %c0_i32, %c0_i32_0 : i32, i32
  }
  func.func @transform_5(%arg0: i32) -> (i32, i32) {
    %c0_i32 = arith.constant 0 : i32
    %c0_i32_0 = arith.constant 0 : i32
    %c0_i32_1 = arith.constant 0 : i32
    return %c0_i32, %c0_i32_0 : i32, i32
  }
  func.func @transform_6(%arg0: i32) -> (i32, i32) {
    %c0_i32 = arith.constant 0 : i32
    %c0_i32_0 = arith.constant 0 : i32
    %c0_i32_1 = arith.constant 0 : i32
    return %c0_i32, %c0_i32_0 : i32, i32
  }
  func.func @transform_7(%arg0: i32) -> (i32, i32) {
    %c0_i32 = arith.constant 0 : i32
    %c0_i32_0 = arith.constant 0 : i32
    %c0_i32_1 = arith.constant 0 : i32
    return %c0_i32, %c0_i32_0 : i32, i32
  }
  func.func @transform_8(%arg0: i32) -> (i32, i32) {
    %c0_i32 = arith.constant 0 : i32
    %c0_i32_0 = arith.constant 0 : i32
    %c0_i32_1 = arith.constant 0 : i32
    return %c0_i32, %c0_i32_0 : i32, i32
  }
  func.func @transform_9(%arg0: i32) -> (i32, i32) {
    %c0_i32 = arith.constant 0 : i32
    %c0_i32_0 = arith.constant 0 : i32
    %c0_i32_1 = arith.constant 0 : i32
    return %c0_i32, %c0_i32_0 : i32, i32
  }
  func.func @transform_10(%arg0: i32) -> (i32, i32, i32) {
    %c0_i32 = arith.constant 0 : i32
    %c0_i32_0 = arith.constant 0 : i32
    %c0_i32_1 = arith.constant 0 : i32
    return %arg0, %c0_i32, %c0_i32_0 : i32, i32, i32
  }
}

</mosaic_0001>

<llo_original>
// kernel: tpu_custom_call.1
$region0: #{tpu_custom_call.1}
  #allocation0 [shape = 'u32[]', space=smem, size = 0x4, offset = 0x4, fixed_abs, tag = 'smem constant byte address 0x4 - core index']
  #allocation1 [shape = 'u32[144,128]{1,0:T(1,128)}', space=vmem, size = 0x12000, scoped, tag = 'internal scratch']
  %s0 = inlined_call_operand.vmem [shape: bf16[2,20,20,64], index: 0, kind: input, shape index: {}]
  %s1 = inlined_call_operand.vmem [shape: f32[9,1,64], index: 1, kind: input, shape index: {}]
  %s2 = inlined_call_operand.vmem [shape: f32[9,1,64], index: 2, kind: input, shape index: {}]
  %s3 = inlined_call_operand.vmem [shape: f32[1,128], index: 3, kind: input, shape index: {}]
  %s4 = inlined_call_operand.vmem [shape: f32[1,128], index: 4, kind: input, shape index: {}]
  %s5 = inlined_call_operand.vmem [shape: f32[64,32], index: 5, kind: input, shape index: {}]
  %s6 = inlined_call_operand.vmem [shape: f32[1,32], index: 6, kind: input, shape index: {}]
  %s7 = inlined_call_operand.vmem [shape: f32[1,32], index: 7, kind: input, shape index: {}]
  %s8 = inlined_call_operand.vmem [shape: f32[32,128], index: 8, kind: input, shape index: {}]
  %s9 = inlined_call_operand.vmem [shape: f32[1,128], index: 9, kind: input, shape index: {}]
  %s10 = inlined_call_operand.hbm [shape: f32[2,64,256], index: 10, kind: output, shape index: {}]
  %s11 = sld [smem:[#allocation0]]
  $region73: #{tpu_custom_call.1} parent=0
    _
  %s13 = ssub.s32 1, %s11
  %s14 = scalar_select 0, %s13, %s11
  $region1: #{tpu_custom_call.1} parent=0
    #allocation2 [shape = 'u8[131072]{0}', space=vmem, size = 0x20000, scoped, tag = 'output window, operand 0']
    #allocation3 [shape = 's32[2]{0}', space=sflag, size = 0x8, scoped, tag = 'scoped memory for tpu_custom_call.1']
    %15 = vsyncpa [#allocation3], 0
    %s16 = scalar_lea.sflag [#allocation3], 1
    %17 = vsyncpa %s16, 0
    loop: start=0, step=1, limit=4
    $region2: #{tpu_custom_call.1} parent=1 // loop_pre_header
      _
    $region3: #{tpu_custom_call.1} parent=1 // loop_header
      %s19 = sphi 0, %s23
      %p20 = scmp.ge.s32.totalorder %s19, 4
      %s29 = sphi 0, %s31
      %s32 = sphi 0, %s29
      %s33 = sphi 0, %s32
      %s49 = sphi 0, %s33
      %s53 = sphi 0, %s53
      %s55 = sphi 0, %s53
      %s56 = sphi 0, %s55
      %s70 = sphi 0, %s56
      %s74 = sphi 0, %s74
      %s76 = sphi 0, %s74
      %s77 = sphi 0, %s76
      %s91 = sphi 0, %s77
      %s95 = sphi 0, %s95
      %s97 = sphi 0, %s95
      %s98 = sphi 0, %s97
      %s112 = sphi 0, %s98
      %s116 = sphi 0, %s116
      %s118 = sphi 0, %s116
      %s119 = sphi 0, %s118
      %s133 = sphi 0, %s119
      %s137 = sphi 0, %s137
      %s139 = sphi 0, %s137
      %s140 = sphi 0, %s139
      %s154 = sphi 0, %s140
      %s158 = sphi 0, %s158
      %s160 = sphi 0, %s158
      %s161 = sphi 0, %s160
      %s175 = sphi 0, %s161
      %s179 = sphi 0, %s179
      %s181 = sphi 0, %s179
      %s182 = sphi 0, %s181
      %s196 = sphi 0, %s182
      %s200 = sphi 0, %s200
      %s202 = sphi 0, %s200
      %s203 = sphi 0, %s202
      %s217 = sphi 0, %s203
      %s221 = sphi 0, %s221
      %s223 = sphi 0, %s221
      %s224 = sphi 0, %s223
      %s238 = sphi 0, %s224
      %s244 = sphi 0, %s246
      %s247 = sphi 0, %s244
      %s248 = sphi 0, %s247
      %s264 = sphi 0, %s248
    $region4: #{tpu_custom_call.1} parent=1 // loop_header_branch
      %22 = sbr.rel (%p20) target = $region8
    $region5: #{tpu_custom_call.1} parent=1 // loop_body
      %s24 = ssub.s32 %s19, 1
      %s25 = ssub.s32 %s19, 2
      %s26 = sadd.s32 %s19, 1
      %s27 = ssub.s32 %s19, %s26
      %p28 = scmp.eq.s32.totalorder %s27, 0
      %s30 = sadd.s32 %s29, 1
      %s31 = scalar_select %p28, %s29, %s30
      %p34 = pneg %p28
      %p35 = scmp.eq.s32.totalorder %s19, 1
      %p36 = por %p34, %p35
      %p37 = scmp.ne.s32.totalorder %s29, %s32
      %p38 = scmp.eq.s32.totalorder %s19, 0
      %p39 = por %p37, %p38
      %p40 = scmp.ne.s32.totalorder %s29, %s32
      %p41 = scmp.eq.s32.totalorder %s24, 1
      %p42 = por %p40, %p41
      %p43 = scmp.ne.s32.totalorder %s32, %s33
      %p44 = scmp.eq.s32.totalorder %s24, 0
      %p45 = por %p43, %p44
      %p46 = scmp.ne.s32.totalorder %s32, %s33
      %p47 = scmp.eq.s32.totalorder %s25, 1
      %p48 = por %p46, %p47
      %p50 = scmp.ne.s32.totalorder %s33, %s49
      %p51 = scmp.eq.s32.totalorder %s25, 0
      %p52 = por %p50, %p51
      %s54 = sadd.s32 %s53, 1
      %p57 = scmp.eq.s32.totalorder %s19, 1
      %p58 = scmp.ne.s32.totalorder %s53, %s55
      %p59 = scmp.eq.s32.totalorder %s19, 0
      %p60 = por %p58, %p59
      %p61 = scmp.ne.s32.totalorder %s53, %s55
      %p62 = scmp.eq.s32.totalorder %s24, 1
      %p63 = por %p61, %p62
      %p64 = scmp.ne.s32.totalorder %s55, %s56
      %p65 = scmp.eq.s32.totalorder %s24, 0
      %p66 = por %p64, %p65
      %p67 = scmp.ne.s32.totalorder %s55, %s56
      %p68 = scmp.eq.s32.totalorder %s25, 1
      %p69 = por %p67, %p68
      %p71 = scmp.ne.s32.totalorder %s56, %s70
      %p72 = scmp.eq.s32.totalorder %s25, 0
      %p73 = por %p71, %p72
      %s75 = sadd.s32 %s74, 1
      %p78 = scmp.eq.s32.totalorder %s19, 1
      %p79 = scmp.ne.s32.totalorder %s74, %s76
      %p80 = scmp.eq.s32.totalorder %s19, 0
      %p81 = por %p79, %p80
      %p82 = scmp.ne.s32.totalorder %s74, %s76
      %p83 = scmp.eq.s32.totalorder %s24, 1
      %p84 = por %p82, %p83
      %p85 = scmp.ne.s32.totalorder %s76, %s77
      %p86 = scmp.eq.s32.totalorder %s24, 0
      %p87 = por %p85, %p86
      %p88 = scmp.ne.s32.totalorder %s76, %s77
      %p89 = scmp.eq.s32.totalorder %s25, 1
      %p90 = por %p88, %p89
      %p92 = scmp.ne.s32.totalorder %s77, %s91
      %p93 = scmp.eq.s32.totalorder %s25, 0
      %p94 = por %p92, %p93
      %s96 = sadd.s32 %s95, 1
      %p99 = scmp.eq.s32.totalorder %s19, 1
      %p100 = scmp.ne.s32.totalorder %s95, %s97
      %p101 = scmp.eq.s32.totalorder %s19, 0
      %p102 = por %p100, %p101
      %p103 = scmp.ne.s32.totalorder %s95, %s97
      %p104 = scmp.eq.s32.totalorder %s24, 1
      %p105 = por %p103, %p104
      %p106 = scmp.ne.s32.totalorder %s97, %s98
      %p107 = scmp.eq.s32.totalorder %s24, 0
      %p108 = por %p106, %p107
      %p109 = scmp.ne.s32.totalorder %s97, %s98
      %p110 = scmp.eq.s32.totalorder %s25, 1
      %p111 = por %p109, %p110
      %p113 = scmp.ne.s32.totalorder %s98, %s112
      %p114 = scmp.eq.s32.totalorder %s25, 0
      %p115 = por %p113, %p114
      %s117 = sadd.s32 %s116, 1
      %p120 = scmp.eq.s32.totalorder %s19, 1
      %p121 = scmp.ne.s32.totalorder %s116, %s118
      %p122 = scmp.eq.s32.totalorder %s19, 0
      %p123 = por %p121, %p122
      %p124 = scmp.ne.s32.totalorder %s116, %s118
      %p125 = scmp.eq.s32.totalorder %s24, 1
      %p126 = por %p124, %p125
      %p127 = scmp.ne.s32.totalorder %s118, %s119
      %p128 = scmp.eq.s32.totalorder %s24, 0
      %p129 = por %p127, %p128
      %p130 = scmp.ne.s32.totalorder %s118, %s119
      %p131 = scmp.eq.s32.totalorder %s25, 1
      %p132 = por %p130, %p131
      %p134 = scmp.ne.s32.totalorder %s119, %s133
      %p135 = scmp.eq.s32.totalorder %s25, 0
      %p136 = por %p134, %p135
      %s138 = sadd.s32 %s137, 1
      %p141 = scmp.eq.s32.totalorder %s19, 1
      %p142 = scmp.ne.s32.totalorder %s137, %s139
      %p143 = scmp.eq.s32.totalorder %s19, 0
      %p144 = por %p142, %p143
      %p145 = scmp.ne.s32.totalorder %s137, %s139
      %p146 = scmp.eq.s32.totalorder %s24, 1
      %p147 = por %p145, %p146
      %p148 = scmp.ne.s32.totalorder %s139, %s140
      %p149 = scmp.eq.s32.totalorder %s24, 0
      %p150 = por %p148, %p149
      %p151 = scmp.ne.s32.totalorder %s139, %s140
      %p152 = scmp.eq.s32.totalorder %s25, 1
      %p153 = por %p151, %p152
      %p155 = scmp.ne.s32.totalorder %s140, %s154
      %p156 = scmp.eq.s32.totalorder %s25, 0
      %p157 = por %p155, %p156
      %s159 = sadd.s32 %s158, 1
      %p162 = scmp.eq.s32.totalorder %s19, 1
      %p163 = scmp.ne.s32.totalorder %s158, %s160
      %p164 = scmp.eq.s32.totalorder %s19, 0
      %p165 = por %p163, %p164
      %p166 = scmp.ne.s32.totalorder %s158, %s160
      %p167 = scmp.eq.s32.totalorder %s24, 1
      %p168 = por %p166, %p167
      %p169 = scmp.ne.s32.totalorder %s160, %s161
      %p170 = scmp.eq.s32.totalorder %s24, 0
      %p171 = por %p169, %p170
      %p172 = scmp.ne.s32.totalorder %s160, %s161
      %p173 = scmp.eq.s32.totalorder %s25, 1
      %p174 = por %p172, %p173
      %p176 = scmp.ne.s32.totalorder %s161, %s175
      %p177 = scmp.eq.s32.totalorder %s25, 0
      %p178 = por %p176, %p177
      %s180 = sadd.s32 %s179, 1
      %p183 = scmp.eq.s32.totalorder %s19, 1
      %p184 = scmp.ne.s32.totalorder %s179, %s181
      %p185 = scmp.eq.s32.totalorder %s19, 0
      %p186 = por %p184, %p185
      %p187 = scmp.ne.s32.totalorder %s179, %s181
      %p188 = scmp.eq.s32.totalorder %s24, 1
      %p189 = por %p187, %p188
      %p190 = scmp.ne.s32.totalorder %s181, %s182
      %p191 = scmp.eq.s32.totalorder %s24, 0
      %p192 = por %p190, %p191
      %p193 = scmp.ne.s32.totalorder %s181, %s182
      %p194 = scmp.eq.s32.totalorder %s25, 1
      %p195 = por %p193, %p194
      %p197 = scmp.ne.s32.totalorder %s182, %s196
      %p198 = scmp.eq.s32.totalorder %s25, 0
      %p199 = por %p197, %p198
      %s201 = sadd.s32 %s200, 1
      %p204 = scmp.eq.s32.totalorder %s19, 1
      %p205 = scmp.ne.s32.totalorder %s200, %s202
      %p206 = scmp.eq.s32.totalorder %s19, 0
      %p207 = por %p205, %p206
      %p208 = scmp.ne.s32.totalorder %s200, %s202
      %p209 = scmp.eq.s32.totalorder %s24, 1
      %p210 = por %p208, %p209
      %p211 = scmp.ne.s32.totalorder %s202, %s203
      %p212 = scmp.eq.s32.totalorder %s24, 0
      %p213 = por %p211, %p212
      %p214 = scmp.ne.s32.totalorder %s202, %s203
      %p215 = scmp.eq.s32.totalorder %s25, 1
      %p216 = por %p214, %p215
      %p218 = scmp.ne.s32.totalorder %s203, %s217
      %p219 = scmp.eq.s32.totalorder %s25, 0
      %p220 = por %p218, %p219
      %s222 = sadd.s32 %s221, 1
      %p225 = scmp.eq.s32.totalorder %s19, 1
      %p226 = scmp.ne.s32.totalorder %s221, %s223
      %p227 = scmp.eq.s32.totalorder %s19, 0
      %p228 = por %p226, %p227
      %p229 = scmp.ne.s32.totalorder %s221, %s223
      %p230 = scmp.eq.s32.totalorder %s24, 1
      %p231 = por %p229, %p230
      %p232 = scmp.ne.s32.totalorder %s223, %s224
      %p233 = scmp.eq.s32.totalorder %s24, 0
      %p234 = por %p232, %p233
      %p235 = scmp.ne.s32.totalorder %s223, %s224
      %p236 = scmp.eq.s32.totalorder %s25, 1
      %p237 = por %p235, %p236
      %p239 = scmp.ne.s32.totalorder %s224, %s238
      %p240 = scmp.eq.s32.totalorder %s25, 0
      %p241 = por %p239, %p240
      %s242 = ssub.s32 %s19, %s26
      %p243 = scmp.eq.s32.totalorder %s242, 0
      %s245 = sadd.s32 %s244, 1
      %s246 = scalar_select %p243, %s244, %s245
      %p249 = pneg %p243
      %p250 = scmp.eq.s32.totalorder %s19, 1
      %p251 = por %p249, %p250
      %p252 = scmp.ne.s32.totalorder %s244, %s247
      %p253 = scmp.eq.s32.totalorder %s19, 0
      %p254 = por %p252, %p253
      %p255 = scmp.ne.s32.totalorder %s244, %s247
      %p256 = scmp.eq.s32.totalorder %s24, 1
      %p257 = por %p255, %p256
      %p258 = scmp.ne.s32.totalorder %s247, %s248
      %p259 = scmp.eq.s32.totalorder %s24, 0
      %p260 = por %p258, %p259
      %p261 = scmp.ne.s32.totalorder %s247, %s248
      %p262 = scmp.eq.s32.totalorder %s25, 1
      %p263 = por %p261, %p262
      %p265 = scmp.ne.s32.totalorder %s248, %s264
      %p266 = scmp.eq.s32.totalorder %s25, 0
      %p267 = por %p265, %p266
      %p268 = scmp.le.s32.totalorder 1, %s19
      %p269 = scmp.lt.s32.totalorder %s19, 3
      %p270 = pnand %p268, %p269
      %p271 = pneg %p270
      // Predicated region
      $region9: #{tpu_custom_call.1} parent=5 // pred_check
        _
      $region10: #{tpu_custom_call.1} parent=5 // pred_check_branch
        %273 = sbr.rel (%p270) target = $region12
      $region11: #{tpu_custom_call.1} parent=5 // pred_region
        %s274 = ssub.s32 %s19, 1
        // Predicated region
        $region13: #{tpu_custom_call.1} parent=11 // pred_check
          %p275 = pneg %p66
        $region14: #{tpu_custom_call.1} parent=11 // pred_check_branch
          %277 = sbr.rel (%p275) target = $region16
        $region15: #{tpu_custom_call.1} parent=11 // pred_region
          _
        $region16: #{tpu_custom_call.1} parent=11 // pred_fallthru
          _
        // Predicated region
        $region17: #{tpu_custom_call.1} parent=11 // pred_check
          %p278 = pneg %p87
        $region18: #{tpu_custom_call.1} parent=11 // pred_check_branch
          %280 = sbr.rel (%p278) target = $region20
        $region19: #{tpu_custom_call.1} parent=11 // pred_region
          _
        $region20: #{tpu_custom_call.1} parent=11 // pred_fallthru
          _
        // Predicated region
        $region21: #{tpu_custom_call.1} parent=11 // pred_check
          %p281 = pneg %p108
        $region22: #{tpu_custom_call.1} parent=11 // pred_check_branch
          %283 = sbr.rel (%p281) target = $region24
        $region23: #{tpu_custom_call.1} parent=11 // pred_region
          _
        $region24: #{tpu_custom_call.1} parent=11 // pred_fallthru
          _
        // Predicated region
        $region25: #{tpu_custom_call.1} parent=11 // pred_check
          %p284 = pneg %p129
        $region26: #{tpu_custom_call.1} parent=11 // pred_check_branch
          %286 = sbr.rel (%p284) target = $region28
        $region27: #{tpu_custom_call.1} parent=11 // pred_region
          _
        $region28: #{tpu_custom_call.1} parent=11 // pred_fallthru
          _
        // Predicated region
        $region29: #{tpu_custom_call.1} parent=11 // pred_check
          %p287 = pneg %p150
        $region30: #{tpu_custom_call.1} parent=11 // pred_check_branch
          %289 = sbr.rel (%p287) target = $region32
        $region31: #{tpu_custom_call.1} parent=11 // pred_region
          _
        $region32: #{tpu_custom_call.1} parent=11 // pred_fallthru
          _
        // Predicated region
        $region33: #{tpu_custom_call.1} parent=11 // pred_check
          %p290 = pneg %p171
        $region34: #{tpu_custom_call.1} parent=11 // pred_check_branch
          %292 = sbr.rel (%p290) target = $region36
        $region35: #{tpu_custom_call.1} parent=11 // pred_region
          _
        $region36: #{tpu_custom_call.1} parent=11 // pred_fallthru
          _
        // Predicated region
        $region37: #{tpu_custom_call.1} parent=11 // pred_check
          %p293 = pneg %p192
        $region38: #{tpu_custom_call.1} parent=11 // pred_check_branch
          %295 = sbr.rel (%p293) target = $region40
        $region39: #{tpu_custom_call.1} parent=11 // pred_region
          _
        $region40: #{tpu_custom_call.1} parent=11 // pred_fallthru
          _
        // Predicated region
        $region41: #{tpu_custom_call.1} parent=11 // pred_check
          %p296 = pneg %p213
        $region42: #{tpu_custom_call.1} parent=11 // pred_check_branch
          %298 = sbr.rel (%p296) target = $region44
        $region43: #{tpu_custom_call.1} parent=11 // pred_region
          _
        $region44: #{tpu_custom_call.1} parent=11 // pred_fallthru
          _
        // Predicated region
        $region45: #{tpu_custom_call.1} parent=11 // pred_check
          %p299 = pneg %p234
        $region46: #{tpu_custom_call.1} parent=11 // pred_check_branch
          %301 = sbr.rel (%p299) target = $region48
        $region47: #{tpu_custom_call.1} parent=11 // pred_region
          _
        $region48: #{tpu_custom_call.1} parent=11 // pred_fallthru
          _
      $region12: #{tpu_custom_call.1} parent=5 // pred_fallthru
        _
      %p302 = scmp.lt.s32.totalorder %s19, 2
      // Predicated region
      $region49: #{tpu_custom_call.1} parent=5 // pred_check
        %p303 = pneg %p302
      $region50: #{tpu_custom_call.1} parent=5 // pred_check_branch
        %305 = sbr.rel (%p303) target = $region52
      $region51: #{tpu_custom_call.1} parent=5 // pred_region
        // Predicated region
        $region53: #{tpu_custom_call.1} parent=51 // pred_check
          %p306 = pneg %p39
        $region54: #{tpu_custom_call.1} parent=51 // pred_check_branch
          %308 = sbr.rel (%p306) target = $region56
        $region55: #{tpu_custom_call.1} parent=51 // pred_region
          %p309 = scmp.lt.s32.totalorder %s19, 1
          %s310 = scalar_select %p309, %s19, 1
          %s311 = smul.addr %s310, 60
          %s312 = smul.addr %s311, 4
          %s313 = scalar_lea.vmem %s0, %s312
        $region56: #{tpu_custom_call.1} parent=51 // pred_fallthru
          _
      $region52: #{tpu_custom_call.1} parent=5 // pred_fallthru
        _
      %p314 = scmp.le.s32.totalorder 1, %s19
      %p315 = scmp.lt.s32.totalorder %s19, 3
      %p316 = pnand %p314, %p315
      %p317 = pneg %p316
      // Predicated region
      $region57: #{tpu_custom_call.1} parent=5 // pred_check
        _
      $region58: #{tpu_custom_call.1} parent=5 // pred_check_branch
        %319 = sbr.rel (%p316) target = $region60
      $region59: #{tpu_custom_call.1} parent=5 // pred_region
        %s320 = ssub.s32 %s19, 1
        %p321 = scmp.lt.s32.totalorder %s24, 1
        %s322 = scalar_select %p321, %s24, 1
        %s323 = smul.addr %s322, 60
        %s324 = smul.addr %s323, 4
        %s325 = scalar_lea.vmem %s0, %s324
        %p326 = pneg %p45
        %p327 = pneg %p42
        %p328 = pneg %p66
        %p329 = pneg %p63
        %p330 = pneg %p87
        %p331 = pneg %p84
        %p332 = pneg %p108
        %p333 = pneg %p105
        %p334 = pneg %p129
        %p335 = pneg %p126
        %p336 = pneg %p150
        %p337 = pneg %p147
        %p338 = pneg %p171
        %p339 = pneg %p168
        %p340 = pneg %p192
        %p341 = pneg %p189
        %p342 = pneg %p213
        %p343 = pneg %p210
        %p344 = pneg %p234
        %p345 = pneg %p231
        %p346 = pneg %p260
        %p347 = pneg %p257
        %s348 = sand.u32 %s247, 1
        %s349 = scalar_lea.sflag [#allocation3], %s348
        %s350 = sand.u32 %s247, 1
        %s351 = smul.addr %s350, 128
        %s352 = scalar_lea.vmem [#allocation2], %s351
        %p353 = scmp.lt.s32.totalorder %s24, 1
        %s354 = scalar_select %p353, %s24, 1
        %s355 = smul.addr %s354, 60
        %s356 = smul.addr %s355, 4
        %s357 = scalar_lea.vmem %s0, %s356
        %s358 = scalar_lea.vmem %s357, 12
        %v359 = vld [vmem:[%s358] sm:$0xf]
        %v360 = vld [vmem:[%s358 + $0x4] sm:$0xf]
        %v361 = vld [vmem:[%s358 + $0x8] sm:$0x1]
        %v362 = vld [vmem:[%s358 + $0xc] sm:$0xf]
        %v363 = vld [vmem:[%s358 + $0x10] sm:$0xf]
        %v364 = vld [vmem:[%s358 + $0x14] sm:$0x1]
        %v365 = vld [vmem:[%s358 + $0x18] sm:$0xf]
        %v366 = vld [vmem:[%s358 + $0x1c] sm:$0xf]
        %v367 = vld [vmem:[%s358 + $0x20] sm:$0x1]
        %v368 = vld [vmem:[%s358 + $0x24] sm:$0xf]
        %v369 = vld [vmem:[%s358 + $0x28] sm:$0xf]
        %v370 = vld [vmem:[%s358 + $0x2c] sm:$0x1]
        %v371 = vld [vmem:[%s358 + $0x30] sm:$0xf]
        %v372 = vld [vmem:[%s358 + $0x34] sm:$0xf]
        %v373 = vld [vmem:[%s358 + $0x38] sm:$0x1]
        %v374 = vld [vmem:[%s358 + $0x3c] sm:$0xf]
        %v375 = vld [vmem:[%s358 + $0x40] sm:$0xf]
        %v376 = vld [vmem:[%s358 + $0x44] sm:$0x1]
        %v377 = vld [vmem:[%s358 + $0x48] sm:$0xf]
        %v378 = vld [vmem:[%s358 + $0x4c] sm:$0xf]
        %v379 = vld [vmem:[%s358 + $0x50] sm:$0x1]
        %v380 = vld [vmem:[%s358 + $0x54] sm:$0xf]
        %v381 = vld [vmem:[%s358 + $0x58] sm:$0xf]
        %v382 = vld [vmem:[%s358 + $0x5c] sm:$0x1]
        %v383 = vld [vmem:[%s358 + $0x60] sm:$0xf]
        %v384 = vld [vmem:[%s358 + $0x64] sm:$0xf]
        %v385 = vld [vmem:[%s358 + $0x68] sm:$0x1]
        %v386 = vld [vmem:[%s358 + $0x6c] sm:$0xf]
        %v387 = vld [vmem:[%s358 + $0x70] sm:$0xf]
        %v388 = vld [vmem:[%s358 + $0x74] sm:$0x1]
        %v389 = vld [vmem:[%s358 + $0x78] sm:$0xf]
        %v390 = vld [vmem:[%s358 + $0x7c] sm:$0xf]
        %v391 = vld [vmem:[%s358 + $0x80] sm:$0x1]
        %v392 = vld [vmem:[%s358 + $0x84] sm:$0xf]
        %v393 = vld [vmem:[%s358 + $0x88] sm:$0xf]
        %v394 = vld [vmem:[%s358 + $0x8c] sm:$0x1]
        %v395 = vld [vmem:[%s358 + $0x90] sm:$0xf]
        %v396 = vld [vmem:[%s358 + $0x94] sm:$0xf]
        %v397 = vld [vmem:[%s358 + $0x98] sm:$0x1]
        %v398 = vld [vmem:[%s358 + $0x9c] sm:$0xf]
        %v399 = vld [vmem:[%s358 + $0xa0] sm:$0xf]
        %v400 = vld [vmem:[%s358 + $0xa4] sm:$0x1]
        %v401 = vld [vmem:[%s358 + $0xa8] sm:$0xf]
        %v402 = vld [vmem:[%s358 + $0xac] sm:$0xf]
        %v403 = vld [vmem:[%s358 + $0xb0] sm:$0x1]
        %v404 = vld [vmem:[%s358 + $0xb4] sm:$0xf]
        %v405 = vld [vmem:[%s358 + $0xb8] sm:$0xf]
        %v406 = vld [vmem:[%s358 + $0xbc] sm:$0x1]
        %v407 = vld [vmem:[%s357] sm:$0xf]
        %v408 = vld [vmem:[%s357 + $0x4] sm:$0xf]
        %v409 = vld [vmem:[%s357 + $0xc] sm:$0xf]
        %v410 = vld [vmem:[%s357 + $0x10] sm:$0xf]
        %v411 = vld [vmem:[%s357 + $0x18] sm:$0xf]
        %v412 = vld [vmem:[%s357 + $0x1c] sm:$0xf]
        %v413 = vld [vmem:[%s357 + $0x24] sm:$0xf]
        %v414 = vld [vmem:[%s357 + $0x28] sm:$0xf]
        %v415 = vld [vmem:[%s357 + $0x30] sm:$0xf]
        %v416 = vld [vmem:[%s357 + $0x34] sm:$0xf]
        %v417 = vld [vmem:[%s357 + $0x3c] sm:$0xf]
        %v418 = vld [vmem:[%s357 + $0x40] sm:$0xf]
        %v419 = vld [vmem:[%s357 + $0x48] sm:$0xf]
        %v420 = vld [vmem:[%s357 + $0x4c] sm:$0xf]
        %v421 = vld [vmem:[%s357 + $0x54] sm:$0xf]
        %v422 = vld [vmem:[%s357 + $0x58] sm:$0xf]
        %v423 = vld [vmem:[%s357 + $0x60] sm:$0xf]
        %v424 = vld [vmem:[%s357 + $0x64] sm:$0xf]
        %v425 = vld [vmem:[%s357 + $0x6c] sm:$0xf]
        %v426 = vld [vmem:[%s357 + $0x70] sm:$0xf]
        %v427 = vld [vmem:[%s357 + $0x78] sm:$0xf]
        %v428 = vld [vmem:[%s357 + $0x7c] sm:$0xf]
        %v429 = vld [vmem:[%s357 + $0x84] sm:$0xf]
        %v430 = vld [vmem:[%s357 + $0x88] sm:$0xf]
        %v431 = vld [vmem:[%s357 + $0x90] sm:$0xf]
        %v432 = vld [vmem:[%s357 + $0x94] sm:$0xf]
        %v433 = vld [vmem:[%s357 + $0x9c] sm:$0xf]
        %v434 = vld [vmem:[%s357 + $0xa0] sm:$0xf]
        %v435 = vld [vmem:[%s357 + $0xa8] sm:$0xf]
        %v436 = vld [vmem:[%s357 + $0xac] sm:$0xf]
        %v437 = vld [vmem:[%s357 + $0xb4] sm:$0xf]
        %v438 = vld [vmem:[%s357 + $0xb8] sm:$0xf]
        %v439 = vunpack.c.l.bf16 %v359
        %v440 = vunpack.c.l.bf16 %v360
        %v441 = vunpack.c.l.bf16 %v361
        %v442 = vunpack.c.l.bf16 %v362
        %v443 = vunpack.c.l.bf16 %v363
        %v444 = vunpack.c.l.bf16 %v364
        %v445 = vunpack.c.l.bf16 %v365
        %v446 = vunpack.c.l.bf16 %v366
        %v447 = vunpack.c.l.bf16 %v367
        %v448 = vunpack.c.l.bf16 %v368
        %v449 = vunpack.c.l.bf16 %v369
        %v450 = vunpack.c.l.bf16 %v370
        %v451 = vunpack.c.l.bf16 %v371
        %v452 = vunpack.c.l.bf16 %v372
        %v453 = vunpack.c.l.bf16 %v373
        %v454 = vunpack.c.l.bf16 %v374
        %v455 = vunpack.c.l.bf16 %v375
        %v456 = vunpack.c.l.bf16 %v376
        %v457 = vunpack.c.l.bf16 %v377
        %v458 = vunpack.c.l.bf16 %v378
        %v459 = vunpack.c.l.bf16 %v379
        %v460 = vunpack.c.l.bf16 %v380
        %v461 = vunpack.c.l.bf16 %v381
        %v462 = vunpack.c.l.bf16 %v382
        %v463 = vunpack.c.l.bf16 %v383
        %v464 = vunpack.c.l.bf16 %v384
        %v465 = vunpack.c.l.bf16 %v385
        %v466 = vunpack.c.l.bf16 %v386
        %v467 = vunpack.c.l.bf16 %v387
        %v468 = vunpack.c.l.bf16 %v388
        %v469 = vunpack.c.l.bf16 %v389
        %v470 = vunpack.c.l.bf16 %v390
        %v471 = vunpack.c.l.bf16 %v391
        %v472 = vunpack.c.l.bf16 %v392
        %v473 = vunpack.c.l.bf16 %v393
        %v474 = vunpack.c.l.bf16 %v394
        %v475 = vunpack.c.l.bf16 %v395
        %v476 = vunpack.c.l.bf16 %v396
        %v477 = vunpack.c.l.bf16 %v397
        %v478 = vunpack.c.l.bf16 %v398
        %v479 = vunpack.c.l.bf16 %v399
        %v480 = vunpack.c.l.bf16 %v400
        %v481 = vunpack.c.l.bf16 %v401
        %v482 = vunpack.c.l.bf16 %v402
        %v483 = vunpack.c.l.bf16 %v403
        %v484 = vunpack.c.l.bf16 %v404
        %v485 = vunpack.c.l.bf16 %v405
        %v486 = vunpack.c.l.bf16 %v406
        %v487 = vld [vmem:[%s1] sm:$0x1]
        %v489 = vlaneseq
        %v490 = vshrl.u32 %v489, 7
        %v491 = vsub.s32 0, %v490
        %v492 = vrot.slane %v487, %v491
        %v494 = vmul.f32 %v439, %v492
        %v495 = vmul.f32 %v440, %v492
        %v496 = vmul.f32 %v441, %v492
        %v497 = vmul.f32 %v442, %v492
        %v498 = vmul.f32 %v443, %v492
        %v499 = vmul.f32 %v444, %v492
        %v500 = vmul.f32 %v445, %v492
        %v501 = vmul.f32 %v446, %v492
        %v502 = vmul.f32 %v447, %v492
        %v503 = vmul.f32 %v448, %v492
        %v504 = vmul.f32 %v449, %v492
        %v505 = vmul.f32 %v450, %v492
        %v506 = vmul.f32 %v451, %v492
        %v507 = vmul.f32 %v452, %v492
        %v508 = vmul.f32 %v453, %v492
        %v509 = vmul.f32 %v454, %v492
        %v510 = vmul.f32 %v455, %v492
        %v511 = vmul.f32 %v456, %v492
        %v512 = vmul.f32 %v457, %v492
        %v513 = vmul.f32 %v458, %v492
        %v514 = vmul.f32 %v459, %v492
        %v515 = vmul.f32 %v460, %v492
        %v516 = vmul.f32 %v461, %v492
        %v517 = vmul.f32 %v462, %v492
        %v518 = vmul.f32 %v463, %v492
        %v519 = vmul.f32 %v464, %v492
        %v520 = vmul.f32 %v465, %v492
        %v521 = vmul.f32 %v466, %v492
        %v522 = vmul.f32 %v467, %v492
        %v523 = vmul.f32 %v468, %v492
        %v524 = vmul.f32 %v469, %v492
        %v525 = vmul.f32 %v470, %v492
        %v526 = vmul.f32 %v471, %v492
        %v527 = vmul.f32 %v472, %v492
        %v528 = vmul.f32 %v473, %v492
        %v529 = vmul.f32 %v474, %v492
        %v530 = vmul.f32 %v475, %v492
        %v531 = vmul.f32 %v476, %v492
        %v532 = vmul.f32 %v477, %v492
        %v533 = vmul.f32 %v478, %v492
        %v534 = vmul.f32 %v479, %v492
        %v535 = vmul.f32 %v480, %v492
        %v536 = vmul.f32 %v481, %v492
        %v537 = vmul.f32 %v482, %v492
        %v538 = vmul.f32 %v483, %v492
        %v539 = vmul.f32 %v484, %v492
        %v540 = vmul.f32 %v485, %v492
        %v541 = vmul.f32 %v486, %v492
        %v542 = vadd.f32 %v494, 0.0
        %v543 = vadd.f32 %v495, 0.0
        %v544 = vadd.f32 %v496, 0.0
        %v545 = vadd.f32 %v497, 0.0
        %v546 = vadd.f32 %v498, 0.0
        %v547 = vadd.f32 %v499, 0.0
        %v548 = vadd.f32 %v500, 0.0
        %v549 = vadd.f32 %v501, 0.0
        %v550 = vadd.f32 %v502, 0.0
        %v551 = vadd.f32 %v503, 0.0
        %v552 = vadd.f32 %v504, 0.0
        %v553 = vadd.f32 %v505, 0.0
        %v554 = vadd.f32 %v506, 0.0
        %v555 = vadd.f32 %v507, 0.0
        %v556 = vadd.f32 %v508, 0.0
        %v557 = vadd.f32 %v509, 0.0
        %v558 = vadd.f32 %v510, 0.0
        %v559 = vadd.f32 %v511, 0.0
        %v560 = vadd.f32 %v512, 0.0
        %v561 = vadd.f32 %v513, 0.0
        %v562 = vadd.f32 %v514, 0.0
        %v563 = vadd.f32 %v515, 0.0
        %v564 = vadd.f32 %v516, 0.0
        %v565 = vadd.f32 %v517, 0.0
        %v566 = vadd.f32 %v518, 0.0
        %v567 = vadd.f32 %v519, 0.0
        %v568 = vadd.f32 %v520, 0.0
        %v569 = vadd.f32 %v521, 0.0
        %v570 = vadd.f32 %v522, 0.0
        %v571 = vadd.f32 %v523, 0.0
        %v572 = vadd.f32 %v524, 0.0
        %v573 = vadd.f32 %v525, 0.0
        %v574 = vadd.f32 %v526, 0.0
        %v575 = vadd.f32 %v527, 0.0
        %v576 = vadd.f32 %v528, 0.0
        %v577 = vadd.f32 %v529, 0.0
        %v578 = vadd.f32 %v530, 0.0
        %v579 = vadd.f32 %v531, 0.0
        %v580 = vadd.f32 %v532, 0.0
        %v581 = vadd.f32 %v533, 0.0
        %v582 = vadd.f32 %v534, 0.0
        %v583 = vadd.f32 %v535, 0.0
        %v584 = vadd.f32 %v536, 0.0
        %v585 = vadd.f32 %v537, 0.0
        %v586 = vadd.f32 %v538, 0.0
        %v587 = vadd.f32 %v539, 0.0
        %v588 = vadd.f32 %v540, 0.0
        %v589 = vadd.f32 %v541, 0.0
        %v590 = vunpack.c.l.bf16 %v407
        %v591 = vunpack.c.l.bf16 %v408
        %v592 = vunpack.c.l.bf16 %v409
        %v593 = vunpack.c.l.bf16 %v410
        %v594 = vunpack.c.l.bf16 %v411
        %v595 = vunpack.c.l.bf16 %v412
        %v596 = vunpack.c.l.bf16 %v413
        %v597 = vunpack.c.l.bf16 %v414
        %v598 = vunpack.c.l.bf16 %v415
        %v599 = vunpack.c.l.bf16 %v416
        %v600 = vunpack.c.l.bf16 %v417
        %v601 = vunpack.c.l.bf16 %v418
        %v602 = vunpack.c.l.bf16 %v419
        %v603 = vunpack.c.l.bf16 %v420
        %v604 = vunpack.c.l.bf16 %v421
        %v605 = vunpack.c.l.bf16 %v422
        %v606 = vunpack.c.l.bf16 %v423
        %v607 = vunpack.c.l.bf16 %v424
        %v608 = vunpack.c.l.bf16 %v425
        %v609 = vunpack.c.l.bf16 %v426
        %v610 = vunpack.c.l.bf16 %v427
        %v611 = vunpack.c.l.bf16 %v428
        %v612 = vunpack.c.l.bf16 %v429
        %v613 = vunpack.c.l.bf16 %v430
        %v614 = vunpack.c.l.bf16 %v431
        %v615 = vunpack.c.l.bf16 %v432
        %v616 = vunpack.c.l.bf16 %v433
        %v617 = vunpack.c.l.bf16 %v434
        %v618 = vunpack.c.l.bf16 %v435
        %v619 = vunpack.c.l.bf16 %v436
        %v620 = vunpack.c.l.bf16 %v437
        %v621 = vunpack.c.l.bf16 %v438
        %v622 = vld [vmem:[%s2] sm:$0x1]
        %v624 = vlaneseq
        %v625 = vshrl.u32 %v624, 7
        %v626 = vsub.s32 0, %v625
        %v627 = vrot.slane %v622, %v626
        %v629 = vmul.f32 %v590, %v627
        %v630 = vmul.f32 %v591, %v627
        %v631 = vmul.f32 %v592, %v627
        %v632 = vmul.f32 %v593, %v627
        %v633 = vmul.f32 %v594, %v627
        %v634 = vmul.f32 %v595, %v627
        %v635 = vmul.f32 %v596, %v627
        %v636 = vmul.f32 %v597, %v627
        %v637 = vmul.f32 %v598, %v627
        %v638 = vmul.f32 %v599, %v627
        %v639 = vmul.f32 %v600, %v627
        %v640 = vmul.f32 %v601, %v627
        %v641 = vmul.f32 %v602, %v627
        %v642 = vmul.f32 %v603, %v627
        %v643 = vmul.f32 %v604, %v627
        %v644 = vmul.f32 %v605, %v627
        %v645 = vmul.f32 %v606, %v627
        %v646 = vmul.f32 %v607, %v627
        %v647 = vmul.f32 %v608, %v627
        %v648 = vmul.f32 %v609, %v627
        %v649 = vmul.f32 %v610, %v627
        %v650 = vmul.f32 %v611, %v627
        %v651 = vmul.f32 %v612, %v627
        %v652 = vmul.f32 %v613, %v627
        %v653 = vmul.f32 %v614, %v627
        %v654 = vmul.f32 %v615, %v627
        %v655 = vmul.f32 %v616, %v627
        %v656 = vmul.f32 %v617, %v627
        %v657 = vmul.f32 %v618, %v627
        %v658 = vmul.f32 %v619, %v627
        %v659 = vmul.f32 %v620, %v627
        %v660 = vmul.f32 %v621, %v627
        %v661 = vadd.f32 %v629, 0.0
        %v662 = vadd.f32 %v630, 0.0
        %v663 = vadd.f32 %v631, 0.0
        %v664 = vadd.f32 %v632, 0.0
        %v665 = vadd.f32 %v633, 0.0
        %v666 = vadd.f32 %v634, 0.0
        %v667 = vadd.f32 %v635, 0.0
        %v668 = vadd.f32 %v636, 0.0
        %v669 = vadd.f32 %v637, 0.0
        %v670 = vadd.f32 %v638, 0.0
        %v671 = vadd.f32 %v639, 0.0
        %v672 = vadd.f32 %v640, 0.0
        %v673 = vadd.f32 %v641, 0.0
        %v674 = vadd.f32 %v642, 0.0
        %v675 = vadd.f32 %v643, 0.0
        %v676 = vadd.f32 %v644, 0.0
        %v677 = vadd.f32 %v645, 0.0
        %v678 = vadd.f32 %v646, 0.0
        %v679 = vadd.f32 %v647, 0.0
        %v680 = vadd.f32 %v648, 0.0
        %v681 = vadd.f32 %v649, 0.0
        %v682 = vadd.f32 %v650, 0.0
        %v683 = vadd.f32 %v651, 0.0
        %v684 = vadd.f32 %v652, 0.0
        %v685 = vadd.f32 %v653, 0.0
        %v686 = vadd.f32 %v654, 0.0
        %v687 = vadd.f32 %v655, 0.0
        %v688 = vadd.f32 %v656, 0.0
        %v689 = vadd.f32 %v657, 0.0
        %v690 = vadd.f32 %v658, 0.0
        %v691 = vadd.f32 %v659, 0.0
        %v692 = vadd.f32 %v660, 0.0
        %v693 = vld [vmem:[%s358] sm:$0xe]
        %v694 = vld [vmem:[%s358 + $0xc] sm:$0xe]
        %v695 = vld [vmem:[%s358 + $0x18] sm:$0xe]
        %v696 = vld [vmem:[%s358 + $0x24] sm:$0xe]
        %v697 = vld [vmem:[%s358 + $0x30] sm:$0xe]
        %v698 = vld [vmem:[%s358 + $0x3c] sm:$0xe]
        %v699 = vld [vmem:[%s358 + $0x48] sm:$0xe]
        %v700 = vld [vmem:[%s358 + $0x54] sm:$0xe]
        %v701 = vld [vmem:[%s358 + $0x60] sm:$0xe]
        %v702 = vld [vmem:[%s358 + $0x6c] sm:$0xe]
        %v703 = vld [vmem:[%s358 + $0x78] sm:$0xe]
        %v704 = vld [vmem:[%s358 + $0x84] sm:$0xe]
        %v705 = vld [vmem:[%s358 + $0x90] sm:$0xe]
        %v706 = vld [vmem:[%s358 + $0x9c] sm:$0xe]
        %v707 = vld [vmem:[%s358 + $0xa8] sm:$0xe]
        %v708 = vld [vmem:[%s358 + $0xb4] sm:$0xe]
        %v709 = vld [vmem:[%s357] sm:$0xe]
        %v710 = vld [vmem:[%s357 + $0x8] sm:$0x1]
        %v711 = vld [vmem:[%s357 + $0xc] sm:$0xe]
        %v712 = vld [vmem:[%s357 + $0x14] sm:$0x1]
        %v713 = vld [vmem:[%s357 + $0x18] sm:$0xe]
        %v714 = vld [vmem:[%s357 + $0x20] sm:$0x1]
        %v715 = vld [vmem:[%s357 + $0x24] sm:$0xe]
        %v716 = vld [vmem:[%s357 + $0x2c] sm:$0x1]
        %v717 = vld [vmem:[%s357 + $0x30] sm:$0xe]
        %v718 = vld [vmem:[%s357 + $0x38] sm:$0x1]
        %v719 = vld [vmem:[%s357 + $0x3c] sm:$0xe]
        %v720 = vld [vmem:[%s357 + $0x44] sm:$0x1]
        %v721 = vld [vmem:[%s357 + $0x48] sm:$0xe]
        %v722 = vld [vmem:[%s357 + $0x50] sm:$0x1]
        %v723 = vld [vmem:[%s357 + $0x54] sm:$0xe]
        %v724 = vld [vmem:[%s357 + $0x5c] sm:$0x1]
        %v725 = vld [vmem:[%s357 + $0x60] sm:$0xe]
        %v726 = vld [vmem:[%s357 + $0x68] sm:$0x1]
        %v727 = vld [vmem:[%s357 + $0x6c] sm:$0xe]
        %v728 = vld [vmem:[%s357 + $0x74] sm:$0x1]
        %v729 = vld [vmem:[%s357 + $0x78] sm:$0xe]
        %v730 = vld [vmem:[%s357 + $0x80] sm:$0x1]
        %v731 = vld [vmem:[%s357 + $0x84] sm:$0xe]
        %v732 = vld [vmem:[%s357 + $0x8c] sm:$0x1]
        %v733 = vld [vmem:[%s357 + $0x90] sm:$0xe]
        %v734 = vld [vmem:[%s357 + $0x98] sm:$0x1]
        %v735 = vld [vmem:[%s357 + $0x9c] sm:$0xe]
        %v736 = vld [vmem:[%s357 + $0xa4] sm:$0x1]
        %v737 = vld [vmem:[%s357 + $0xa8] sm:$0xe]
        %v738 = vld [vmem:[%s357 + $0xb0] sm:$0x1]
        %v739 = vld [vmem:[%s357 + $0xb4] sm:$0xe]
        %v740 = vld [vmem:[%s357 + $0xbc] sm:$0x1]
        %v741 = vunpack.c.l.bf16 %v693
        %v742 = vunpack.c.l.bf16 %v694
        %v743 = vunpack.c.l.bf16 %v695
        %v744 = vunpack.c.l.bf16 %v696
        %v745 = vunpack.c.l.bf16 %v697
        %v746 = vunpack.c.l.bf16 %v698
        %v747 = vunpack.c.l.bf16 %v699
        %v748 = vunpack.c.l.bf16 %v700
        %v749 = vunpack.c.l.bf16 %v701
        %v750 = vunpack.c.l.bf16 %v702
        %v751 = vunpack.c.l.bf16 %v703
        %v752 = vunpack.c.l.bf16 %v704
        %v753 = vunpack.c.l.bf16 %v705
        %v754 = vunpack.c.l.bf16 %v706
        %v755 = vunpack.c.l.bf16 %v707
        %v756 = vunpack.c.l.bf16 %v708
        %s757 = scalar_lea.vmem %s1, 1
        %v758 = vld [vmem:[%s757] sm:$0x1]
        %v760 = vlaneseq
        %v761 = vshrl.u32 %v760, 7
        %v762 = vsub.s32 0, %v761
        %v763 = vrot.slane %v758, %v762
        %v765 = vmul.f32 %v741, %v763
        %v766 = vmul.f32 %v440, %v763
        %v767 = vmul.f32 %v441, %v763
        %v768 = vmul.f32 %v742, %v763
        %v769 = vmul.f32 %v443, %v763
        %v770 = vmul.f32 %v444, %v763
        %v771 = vmul.f32 %v743, %v763
        %v772 = vmul.f32 %v446, %v763
        %v773 = vmul.f32 %v447, %v763
        %v774 = vmul.f32 %v744, %v763
        %v775 = vmul.f32 %v449, %v763
        %v776 = vmul.f32 %v450, %v763
        %v777 = vmul.f32 %v745, %v763
        %v778 = vmul.f32 %v452, %v763
        %v779 = vmul.f32 %v453, %v763
        %v780 = vmul.f32 %v746, %v763
        %v781 = vmul.f32 %v455, %v763
        %v782 = vmul.f32 %v456, %v763
        %v783 = vmul.f32 %v747, %v763
        %v784 = vmul.f32 %v458, %v763
        %v785 = vmul.f32 %v459, %v763
        %v786 = vmul.f32 %v748, %v763
        %v787 = vmul.f32 %v461, %v763
        %v788 = vmul.f32 %v462, %v763
        %v789 = vmul.f32 %v749, %v763
        %v790 = vmul.f32 %v464, %v763
        %v791 = vmul.f32 %v465, %v763
        %v792 = vmul.f32 %v750, %v763
        %v793 = vmul.f32 %v467, %v763
        %v794 = vmul.f32 %v468, %v763
        %v795 = vmul.f32 %v751, %v763
        %v796 = vmul.f32 %v470, %v763
        %v797 = vmul.f32 %v471, %v763
        %v798 = vmul.f32 %v752, %v763
        %v799 = vmul.f32 %v473, %v763
        %v800 = vmul.f32 %v474, %v763
        %v801 = vmul.f32 %v753, %v763
        %v802 = vmul.f32 %v476, %v763
        %v803 = vmul.f32 %v477, %v763
        %v804 = vmul.f32 %v754, %v763
        %v805 = vmul.f32 %v479, %v763
        %v806 = vmul.f32 %v480, %v763
        %v807 = vmul.f32 %v755, %v763
        %v808 = vmul.f32 %v482, %v763
        %v809 = vmul.f32 %v483, %v763
        %v810 = vmul.f32 %v756, %v763
        %v811 = vmul.f32 %v485, %v763
        %v812 = vmul.f32 %v486, %v763
        %vm861 = vcmask 1046528
        %v862 = vrot.slane %v765, 1
        %v863 = vrot.slane %v766, 1
        %v864 = vsel %vm861, %v862, %v863
        %v865 = vrot.slane %v767, 1
        %v866 = vsel %vm861, %v863, %v865
        %v867 = vrot.slane %v768, 1
        %v868 = vrot.slane %v769, 1
        %v869 = vsel %vm861, %v867, %v868
        %v870 = vrot.slane %v770, 1
        %v871 = vsel %vm861, %v868, %v870
        %v872 = vrot.slane %v771, 1
        %v873 = vrot.slane %v772, 1
        %v874 = vsel %vm861, %v872, %v873
        %v875 = vrot.slane %v773, 1
        %v876 = vsel %vm861, %v873, %v875
        %v877 = vrot.slane %v774, 1
        %v878 = vrot.slane %v775, 1
        %v879 = vsel %vm861, %v877, %v878
        %v880 = vrot.slane %v776, 1
        %v881 = vsel %vm861, %v878, %v880
        %v882 = vrot.slane %v777, 1
        %v883 = vrot.slane %v778, 1
        %v884 = vsel %vm861, %v882, %v883
        %v885 = vrot.slane %v779, 1
        %v886 = vsel %vm861, %v883, %v885
        %v887 = vrot.slane %v780, 1
        %v888 = vrot.slane %v781, 1
        %v889 = vsel %vm861, %v887, %v888
        %v890 = vrot.slane %v782, 1
        %v891 = vsel %vm861, %v888, %v890
        %v892 = vrot.slane %v783, 1
        %v893 = vrot.slane %v784, 1
        %v894 = vsel %vm861, %v892, %v893
        %v895 = vrot.slane %v785, 1
        %v896 = vsel %vm861, %v893, %v895
        %v897 = vrot.slane %v786, 1
        %v898 = vrot.slane %v787, 1
        %v899 = vsel %vm861, %v897, %v898
        %v900 = vrot.slane %v788, 1
        %v901 = vsel %vm861, %v898, %v900
        %v902 = vrot.slane %v789, 1
        %v903 = vrot.slane %v790, 1
        %v904 = vsel %vm861, %v902, %v903
        %v905 = vrot.slane %v791, 1
        %v906 = vsel %vm861, %v903, %v905
        %v907 = vrot.slane %v792, 1
        %v908 = vrot.slane %v793, 1
        %v909 = vsel %vm861, %v907, %v908
        %v910 = vrot.slane %v794, 1
        %v911 = vsel %vm861, %v908, %v910
        %v912 = vrot.slane %v795, 1
        %v913 = vrot.slane %v796, 1
        %v914 = vsel %vm861, %v912, %v913
        %v915 = vrot.slane %v797, 1
        %v916 = vsel %vm861, %v913, %v915
        %v917 = vrot.slane %v798, 1
        %v918 = vrot.slane %v799, 1
        %v919 = vsel %vm861, %v917, %v918
        %v920 = vrot.slane %v800, 1
        %v921 = vsel %vm861, %v918, %v920
        %v922 = vrot.slane %v801, 1
        %v923 = vrot.slane %v802, 1
        %v924 = vsel %vm861, %v922, %v923
        %v925 = vrot.slane %v803, 1
        %v926 = vsel %vm861, %v923, %v925
        %v927 = vrot.slane %v804, 1
        %v928 = vrot.slane %v805, 1
        %v929 = vsel %vm861, %v927, %v928
        %v930 = vrot.slane %v806, 1
        %v931 = vsel %vm861, %v928, %v930
        %v932 = vrot.slane %v807, 1
        %v933 = vrot.slane %v808, 1
        %v934 = vsel %vm861, %v932, %v933
        %v935 = vrot.slane %v809, 1
        %v936 = vsel %vm861, %v933, %v935
        %v937 = vrot.slane %v810, 1
        %v938 = vrot.slane %v811, 1
        %v939 = vsel %vm861, %v937, %v938
        %v940 = vrot.slane %v812, 1
        %v941 = vsel %vm861, %v938, %v940
        %v990 = vadd.f32 %v542, %v864
        %v991 = vadd.f32 %v543, %v866
        %v992 = vadd.f32 %v544, %v865
        %v993 = vadd.f32 %v545, %v869
        %v994 = vadd.f32 %v546, %v871
        %v995 = vadd.f32 %v547, %v870
        %v996 = vadd.f32 %v548, %v874
        %v997 = vadd.f32 %v549, %v876
        %v998 = vadd.f32 %v550, %v875
        %v999 = vadd.f32 %v551, %v879
        %v1000 = vadd.f32 %v552, %v881
        %v1001 = vadd.f32 %v553, %v880
        %v1002 = vadd.f32 %v554, %v884
        %v1003 = vadd.f32 %v555, %v886
        %v1004 = vadd.f32 %v556, %v885
        %v1005 = vadd.f32 %v557, %v889
        %v1006 = vadd.f32 %v558, %v891
        %v1007 = vadd.f32 %v559, %v890
        %v1008 = vadd.f32 %v560, %v894
        %v1009 = vadd.f32 %v561, %v896
        %v1010 = vadd.f32 %v562, %v895
        %v1011 = vadd.f32 %v563, %v899
        %v1012 = vadd.f32 %v564, %v901
        %v1013 = vadd.f32 %v565, %v900
        %v1014 = vadd.f32 %v566, %v904
        %v1015 = vadd.f32 %v567, %v906
        %v1016 = vadd.f32 %v568, %v905
        %v1017 = vadd.f32 %v569, %v909
        %v1018 = vadd.f32 %v570, %v911
        %v1019 = vadd.f32 %v571, %v910
        %v1020 = vadd.f32 %v572, %v914
        %v1021 = vadd.f32 %v573, %v916
        %v1022 = vadd.f32 %v574, %v915
        %v1023 = vadd.f32 %v575, %v919
        %v1024 = vadd.f32 %v576, %v921
        %v1025 = vadd.f32 %v577, %v920
        %v1026 = vadd.f32 %v578, %v924
        %v1027 = vadd.f32 %v579, %v926
        %v1028 = vadd.f32 %v580, %v925
        %v1029 = vadd.f32 %v581, %v929
        %v1030 = vadd.f32 %v582, %v931
        %v1031 = vadd.f32 %v583, %v930
        %v1032 = vadd.f32 %v584, %v934
        %v1033 = vadd.f32 %v585, %v936
        %v1034 = vadd.f32 %v586, %v935
        %v1035 = vadd.f32 %v587, %v939
        %v1036 = vadd.f32 %v588, %v941
        %v1037 = vadd.f32 %v589, %v940
        %v1038 = vunpack.c.l.bf16 %v709
        %v1039 = vunpack.c.l.bf16 %v710
        %v1040 = vunpack.c.l.bf16 %v711
        %v1041 = vunpack.c.l.bf16 %v712
        %v1042 = vunpack.c.l.bf16 %v713
        %v1043 = vunpack.c.l.bf16 %v714
        %v1044 = vunpack.c.l.bf16 %v715
        %v1045 = vunpack.c.l.bf16 %v716
        %v1046 = vunpack.c.l.bf16 %v717
        %v1047 = vunpack.c.l.bf16 %v718
        %v1048 = vunpack.c.l.bf16 %v719
        %v1049 = vunpack.c.l.bf16 %v720
        %v1050 = vunpack.c.l.bf16 %v721
        %v1051 = vunpack.c.l.bf16 %v722
        %v1052 = vunpack.c.l.bf16 %v723
        %v1053 = vunpack.c.l.bf16 %v724
        %v1054 = vunpack.c.l.bf16 %v725
        %v1055 = vunpack.c.l.bf16 %v726
        %v1056 = vunpack.c.l.bf16 %v727
        %v1057 = vunpack.c.l.bf16 %v728
        %v1058 = vunpack.c.l.bf16 %v729
        %v1059 = vunpack.c.l.bf16 %v730
        %v1060 = vunpack.c.l.bf16 %v731
        %v1061 = vunpack.c.l.bf16 %v732
        %v1062 = vunpack.c.l.bf16 %v733
        %v1063 = vunpack.c.l.bf16 %v734
        %v1064 = vunpack.c.l.bf16 %v735
        %v1065 = vunpack.c.l.bf16 %v736
        %v1066 = vunpack.c.l.bf16 %v737
        %v1067 = vunpack.c.l.bf16 %v738
        %v1068 = vunpack.c.l.bf16 %v739
        %v1069 = vunpack.c.l.bf16 %v740
        %s1070 = scalar_lea.vmem %s2, 1
        %v1071 = vld [vmem:[%s1070] sm:$0x1]
        %v1073 = vlaneseq
        %v1074 = vshrl.u32 %v1073, 7
        %v1075 = vsub.s32 0, %v1074
        %v1076 = vrot.slane %v1071, %v1075
        %v1078 = vmul.f32 %v1038, %v1076
        %v1079 = vmul.f32 %v591, %v1076
        %v1080 = vmul.f32 %v1039, %v1076
        %v1081 = vmul.f32 %v1040, %v1076
        %v1082 = vmul.f32 %v593, %v1076
        %v1083 = vmul.f32 %v1041, %v1076
        %v1084 = vmul.f32 %v1042, %v1076
        %v1085 = vmul.f32 %v595, %v1076
        %v1086 = vmul.f32 %v1043, %v1076
        %v1087 = vmul.f32 %v1044, %v1076
        %v1088 = vmul.f32 %v597, %v1076
        %v1089 = vmul.f32 %v1045, %v1076
        %v1090 = vmul.f32 %v1046, %v1076
        %v1091 = vmul.f32 %v599, %v1076
        %v1092 = vmul.f32 %v1047, %v1076
        %v1093 = vmul.f32 %v1048, %v1076
        %v1094 = vmul.f32 %v601, %v1076
        %v1095 = vmul.f32 %v1049, %v1076
        %v1096 = vmul.f32 %v1050, %v1076
        %v1097 = vmul.f32 %v603, %v1076
        %v1098 = vmul.f32 %v1051, %v1076
        %v1099 = vmul.f32 %v1052, %v1076
        %v1100 = vmul.f32 %v605, %v1076
        %v1101 = vmul.f32 %v1053, %v1076
        %v1102 = vmul.f32 %v1054, %v1076
        %v1103 = vmul.f32 %v607, %v1076
        %v1104 = vmul.f32 %v1055, %v1076
        %v1105 = vmul.f32 %v1056, %v1076
        %v1106 = vmul.f32 %v609, %v1076
        %v1107 = vmul.f32 %v1057, %v1076
        %v1108 = vmul.f32 %v1058, %v1076
        %v1109 = vmul.f32 %v611, %v1076
        %v1110 = vmul.f32 %v1059, %v1076
        %v1111 = vmul.f32 %v1060, %v1076
        %v1112 = vmul.f32 %v613, %v1076
        %v1113 = vmul.f32 %v1061, %v1076
        %v1114 = vmul.f32 %v1062, %v1076
        %v1115 = vmul.f32 %v615, %v1076
        %v1116 = vmul.f32 %v1063, %v1076
        %v1117 = vmul.f32 %v1064, %v1076
        %v1118 = vmul.f32 %v617, %v1076
        %v1119 = vmul.f32 %v1065, %v1076
        %v1120 = vmul.f32 %v1066, %v1076
        %v1121 = vmul.f32 %v619, %v1076
        %v1122 = vmul.f32 %v1067, %v1076
        %v1123 = vmul.f32 %v1068, %v1076
        %v1124 = vmul.f32 %v621, %v1076
        %v1125 = vmul.f32 %v1069, %v1076
        %vm1174 = vcmask 1045504
        %v1175 = vrot.slane %v1078, 2
        %v1176 = vrot.slane %v1079, 2
        %v1177 = vsel %vm1174, %v1175, %v1176
        %v1178 = vrot.slane %v1080, 2
        %v1179 = vsel %vm1174, %v1176, %v1178
        %v1180 = vrot.slane %v1081, 2
        %v1181 = vrot.slane %v1082, 2
        %v1182 = vsel %vm1174, %v1180, %v1181
        %v1183 = vrot.slane %v1083, 2
        %v1184 = vsel %vm1174, %v1181, %v1183
        %v1185 = vrot.slane %v1084, 2
        %v1186 = vrot.slane %v1085, 2
        %v1187 = vsel %vm1174, %v1185, %v1186
        %v1188 = vrot.slane %v1086, 2
        %v1189 = vsel %vm1174, %v1186, %v1188
        %v1190 = vrot.slane %v1087, 2
        %v1191 = vrot.slane %v1088, 2
        %v1192 = vsel %vm1174, %v1190, %v1191
        %v1193 = vrot.slane %v1089, 2
        %v1194 = vsel %vm1174, %v1191, %v1193
        %v1195 = vrot.slane %v1090, 2
        %v1196 = vrot.slane %v1091, 2
        %v1197 = vsel %vm1174, %v1195, %v1196
        %v1198 = vrot.slane %v1092, 2
        %v1199 = vsel %vm1174, %v1196, %v1198
        %v1200 = vrot.slane %v1093, 2
        %v1201 = vrot.slane %v1094, 2
        %v1202 = vsel %vm1174, %v1200, %v1201
        %v1203 = vrot.slane %v1095, 2
        %v1204 = vsel %vm1174, %v1201, %v1203
        %v1205 = vrot.slane %v1096, 2
        %v1206 = vrot.slane %v1097, 2
        %v1207 = vsel %vm1174, %v1205, %v1206
        %v1208 = vrot.slane %v1098, 2
        %v1209 = vsel %vm1174, %v1206, %v1208
        %v1210 = vrot.slane %v1099, 2
        %v1211 = vrot.slane %v1100, 2
        %v1212 = vsel %vm1174, %v1210, %v1211
        %v1213 = vrot.slane %v1101, 2
        %v1214 = vsel %vm1174, %v1211, %v1213
        %v1215 = vrot.slane %v1102, 2
        %v1216 = vrot.slane %v1103, 2
        %v1217 = vsel %vm1174, %v1215, %v1216
        %v1218 = vrot.slane %v1104, 2
        %v1219 = vsel %vm1174, %v1216, %v1218
        %v1220 = vrot.slane %v1105, 2
        %v1221 = vrot.slane %v1106, 2
        %v1222 = vsel %vm1174, %v1220, %v1221
        %v1223 = vrot.slane %v1107, 2
        %v1224 = vsel %vm1174, %v1221, %v1223
        %v1225 = vrot.slane %v1108, 2
        %v1226 = vrot.slane %v1109, 2
        %v1227 = vsel %vm1174, %v1225, %v1226
        %v1228 = vrot.slane %v1110, 2
        %v1229 = vsel %vm1174, %v1226, %v1228
        %v1230 = vrot.slane %v1111, 2
        %v1231 = vrot.slane %v1112, 2
        %v1232 = vsel %vm1174, %v1230, %v1231
        %v1233 = vrot.slane %v1113, 2
        %v1234 = vsel %vm1174, %v1231, %v1233
        %v1235 = vrot.slane %v1114, 2
        %v1236 = vrot.slane %v1115, 2
        %v1237 = vsel %vm1174, %v1235, %v1236
        %v1238 = vrot.slane %v1116, 2
        %v1239 = vsel %vm1174, %v1236, %v1238
        %v1240 = vrot.slane %v1117, 2
        %v1241 = vrot.slane %v1118, 2
        %v1242 = vsel %vm1174, %v1240, %v1241
        %v1243 = vrot.slane %v1119, 2
        %v1244 = vsel %vm1174, %v1241, %v1243
        %v1245 = vrot.slane %v1120, 2
        %v1246 = vrot.slane %v1121, 2
        %v1247 = vsel %vm1174, %v1245, %v1246
        %v1248 = vrot.slane %v1122, 2
        %v1249 = vsel %vm1174, %v1246, %v1248
        %v1250 = vrot.slane %v1123, 2
        %v1251 = vrot.slane %v1124, 2
        %v1252 = vsel %vm1174, %v1250, %v1251
        %v1253 = vrot.slane %v1125, 2
        %v1254 = vsel %vm1174, %v1251, %v1253
        %v1287 = vadd.f32 %v661, %v1177
        %v1288 = vadd.f32 %v662, %v1179
        %v1289 = vadd.f32 %v663, %v1182
        %v1290 = vadd.f32 %v664, %v1184
        %v1291 = vadd.f32 %v665, %v1187
        %v1292 = vadd.f32 %v666, %v1189
        %v1293 = vadd.f32 %v667, %v1192
        %v1294 = vadd.f32 %v668, %v1194
        %v1295 = vadd.f32 %v669, %v1197
        %v1296 = vadd.f32 %v670, %v1199
        %v1297 = vadd.f32 %v671, %v1202
        %v1298 = vadd.f32 %v672, %v1204
        %v1299 = vadd.f32 %v673, %v1207
        %v1300 = vadd.f32 %v674, %v1209
        %v1301 = vadd.f32 %v675, %v1212
        %v1302 = vadd.f32 %v676, %v1214
        %v1303 = vadd.f32 %v677, %v1217
        %v1304 = vadd.f32 %v678, %v1219
        %v1305 = vadd.f32 %v679, %v1222
        %v1306 = vadd.f32 %v680, %v1224
        %v1307 = vadd.f32 %v681, %v1227
        %v1308 = vadd.f32 %v682, %v1229
        %v1309 = vadd.f32 %v683, %v1232
        %v1310 = vadd.f32 %v684, %v1234
        %v1311 = vadd.f32 %v685, %v1237
        %v1312 = vadd.f32 %v686, %v1239
        %v1313 = vadd.f32 %v687, %v1242
        %v1314 = vadd.f32 %v688, %v1244
        %v1315 = vadd.f32 %v689, %v1247
        %v1316 = vadd.f32 %v690, %v1249
        %v1317 = vadd.f32 %v691, %v1252
        %v1318 = vadd.f32 %v692, %v1254
        %v1319 = vld [vmem:[%s358 + $0x8] sm:$0x3]
        %v1320 = vld [vmem:[%s358 + $0x14] sm:$0x3]
        %v1321 = vld [vmem:[%s358 + $0x20] sm:$0x3]
        %v1322 = vld [vmem:[%s358 + $0x2c] sm:$0x3]
        %v1323 = vld [vmem:[%s358 + $0x38] sm:$0x3]
        %v1324 = vld [vmem:[%s358 + $0x44] sm:$0x3]
        %v1325 = vld [vmem:[%s358 + $0x50] sm:$0x3]
        %v1326 = vld [vmem:[%s358 + $0x5c] sm:$0x3]
        %v1327 = vld [vmem:[%s358 + $0x68] sm:$0x3]
        %v1328 = vld [vmem:[%s358 + $0x74] sm:$0x3]
        %v1329 = vld [vmem:[%s358 + $0x80] sm:$0x3]
        %v1330 = vld [vmem:[%s358 + $0x8c] sm:$0x3]
        %v1331 = vld [vmem:[%s358 + $0x98] sm:$0x3]
        %v1332 = vld [vmem:[%s358 + $0xa4] sm:$0x3]
        %v1333 = vld [vmem:[%s358 + $0xb0] sm:$0x3]
        %v1334 = vld [vmem:[%s358 + $0xbc] sm:$0x3]
        %v1335 = vld [vmem:[%s357] sm:$0xc]
        %v1336 = vld [vmem:[%s357 + $0x8] sm:$0x3]
        %v1337 = vld [vmem:[%s357 + $0xc] sm:$0xc]
        %v1338 = vld [vmem:[%s357 + $0x14] sm:$0x3]
        %v1339 = vld [vmem:[%s357 + $0x18] sm:$0xc]
        %v1340 = vld [vmem:[%s357 + $0x20] sm:$0x3]
        %v1341 = vld [vmem:[%s357 + $0x24] sm:$0xc]
        %v1342 = vld [vmem:[%s357 + $0x2c] sm:$0x3]
        %v1343 = vld [vmem:[%s357 + $0x30] sm:$0xc]
        %v1344 = vld [vmem:[%s357 + $0x38] sm:$0x3]
        %v1345 = vld [vmem:[%s357 + $0x3c] sm:$0xc]
        %v1346 = vld [vmem:[%s357 + $0x44] sm:$0x3]
        %v1347 = vld [vmem:[%s357 + $0x48] sm:$0xc]
        %v1348 = vld [vmem:[%s357 + $0x50] sm:$0x3]
        %v1349 = vld [vmem:[%s357 + $0x54] sm:$0xc]
        %v1350 = vld [vmem:[%s357 + $0x5c] sm:$0x3]
        %v1351 = vld [vmem:[%s357 + $0x60] sm:$0xc]
        %v1352 = vld [vmem:[%s357 + $0x68] sm:$0x3]
        %v1353 = vld [vmem:[%s357 + $0x6c] sm:$0xc]
        %v1354 = vld [vmem:[%s357 + $0x74] sm:$0x3]
        %v1355 = vld [vmem:[%s357 + $0x78] sm:$0xc]
        %v1356 = vld [vmem:[%s357 + $0x80] sm:$0x3]
        %v1357 = vld [vmem:[%s357 + $0x84] sm:$0xc]
        %v1358 = vld [vmem:[%s357 + $0x8c] sm:$0x3]
        %v1359 = vld [vmem:[%s357 + $0x90] sm:$0xc]
        %v1360 = vld [vmem:[%s357 + $0x98] sm:$0x3]
        %v1361 = vld [vmem:[%s357 + $0x9c] sm:$0xc]
        %v1362 = vld [vmem:[%s357 + $0xa4] sm:$0x3]
        %v1363 = vld [vmem:[%s357 + $0xa8] sm:$0xc]
        %v1364 = vld [vmem:[%s357 + $0xb0] sm:$0x3]
        %v1365 = vld [vmem:[%s357 + $0xb4] sm:$0xc]
        %v1366 = vld [vmem:[%s357 + $0xbc] sm:$0x3]
        %v1367 = vunpack.c.l.bf16 %v1319
        %v1368 = vunpack.c.l.bf16 %v1320
        %v1369 = vunpack.c.l.bf16 %v1321
        %v1370 = vunpack.c.l.bf16 %v1322
        %v1371 = vunpack.c.l.bf16 %v1323
        %v1372 = vunpack.c.l.bf16 %v1324
        %v1373 = vunpack.c.l.bf16 %v1325
        %v1374 = vunpack.c.l.bf16 %v1326
        %v1375 = vunpack.c.l.bf16 %v1327
        %v1376 = vunpack.c.l.bf16 %v1328
        %v1377 = vunpack.c.l.bf16 %v1329
        %v1378 = vunpack.c.l.bf16 %v1330
        %v1379 = vunpack.c.l.bf16 %v1331
        %v1380 = vunpack.c.l.bf16 %v1332
        %v1381 = vunpack.c.l.bf16 %v1333
        %v1382 = vunpack.c.l.bf16 %v1334
        %s1383 = scalar_lea.vmem %s1, 2
        %v1384 = vld [vmem:[%s1383] sm:$0x1]
        %v1386 = vlaneseq
        %v1387 = vshrl.u32 %v1386, 7
        %v1388 = vsub.s32 0, %v1387
        %v1389 = vrot.slane %v1384, %v1388
        %v1391 = vmul.f32 %v741, %v1389
        %v1392 = vmul.f32 %v440, %v1389
        %v1393 = vmul.f32 %v1367, %v1389
        %v1394 = vmul.f32 %v742, %v1389
        %v1395 = vmul.f32 %v443, %v1389
        %v1396 = vmul.f32 %v1368, %v1389
        %v1397 = vmul.f32 %v743, %v1389
        %v1398 = vmul.f32 %v446, %v1389
        %v1399 = vmul.f32 %v1369, %v1389
        %v1400 = vmul.f32 %v744, %v1389
        %v1401 = vmul.f32 %v449, %v1389
        %v1402 = vmul.f32 %v1370, %v1389
        %v1403 = vmul.f32 %v745, %v1389
        %v1404 = vmul.f32 %v452, %v1389
        %v1405 = vmul.f32 %v1371, %v1389
        %v1406 = vmul.f32 %v746, %v1389
        %v1407 = vmul.f32 %v455, %v1389
        %v1408 = vmul.f32 %v1372, %v1389
        %v1409 = vmul.f32 %v747, %v1389
        %v1410 = vmul.f32 %v458, %v1389
        %v1411 = vmul.f32 %v1373, %v1389
        %v1412 = vmul.f32 %v748, %v1389
        %v1413 = vmul.f32 %v461, %v1389
        %v1414 = vmul.f32 %v1374, %v1389
        %v1415 = vmul.f32 %v749, %v1389
        %v1416 = vmul.f32 %v464, %v1389
        %v1417 = vmul.f32 %v1375, %v1389
        %v1418 = vmul.f32 %v750, %v1389
        %v1419 = vmul.f32 %v467, %v1389
        %v1420 = vmul.f32 %v1376, %v1389
        %v1421 = vmul.f32 %v751, %v1389
        %v1422 = vmul.f32 %v470, %v1389
        %v1423 = vmul.f32 %v1377, %v1389
        %v1424 = vmul.f32 %v752, %v1389
        %v1425 = vmul.f32 %v473, %v1389
        %v1426 = vmul.f32 %v1378, %v1389
        %v1427 = vmul.f32 %v753, %v1389
        %v1428 = vmul.f32 %v476, %v1389
        %v1429 = vmul.f32 %v1379, %v1389
        %v1430 = vmul.f32 %v754, %v1389
        %v1431 = vmul.f32 %v479, %v1389
        %v1432 = vmul.f32 %v1380, %v1389
        %v1433 = vmul.f32 %v755, %v1389
        %v1434 = vmul.f32 %v482, %v1389
        %v1435 = vmul.f32 %v1381, %v1389
        %v1436 = vmul.f32 %v756, %v1389
        %v1437 = vmul.f32 %v485, %v1389
        %v1438 = vmul.f32 %v1382, %v1389
        %v1487 = vrot.slane %v1391, 2
        %v1488 = vrot.slane %v1392, 2
        %v1489 = vsel %vm1174, %v1487, %v1488
        %v1490 = vrot.slane %v1393, 2
        %v1491 = vsel %vm1174, %v1488, %v1490
        %v1492 = vrot.slane %v1394, 2
        %v1493 = vrot.slane %v1395, 2
        %v1494 = vsel %vm1174, %v1492, %v1493
        %v1495 = vrot.slane %v1396, 2
        %v1496 = vsel %vm1174, %v1493, %v1495
        %v1497 = vrot.slane %v1397, 2
        %v1498 = vrot.slane %v1398, 2
        %v1499 = vsel %vm1174, %v1497, %v1498
        %v1500 = vrot.slane %v1399, 2
        %v1501 = vsel %vm1174, %v1498, %v1500
        %v1502 = vrot.slane %v1400, 2
        %v1503 = vrot.slane %v1401, 2
        %v1504 = vsel %vm1174, %v1502, %v1503
        %v1505 = vrot.slane %v1402, 2
        %v1506 = vsel %vm1174, %v1503, %v1505
        %v1507 = vrot.slane %v1403, 2
        %v1508 = vrot.slane %v1404, 2
        %v1509 = vsel %vm1174, %v1507, %v1508
        %v1510 = vrot.slane %v1405, 2
        %v1511 = vsel %vm1174, %v1508, %v1510
        %v1512 = vrot.slane %v1406, 2
        %v1513 = vrot.slane %v1407, 2
        %v1514 = vsel %vm1174, %v1512, %v1513
        %v1515 = vrot.slane %v1408, 2
        %v1516 = vsel %vm1174, %v1513, %v1515
        %v1517 = vrot.slane %v1409, 2
        %v1518 = vrot.slane %v1410, 2
        %v1519 = vsel %vm1174, %v1517, %v1518
        %v1520 = vrot.slane %v1411, 2
        %v1521 = vsel %vm1174, %v1518, %v1520
        %v1522 = vrot.slane %v1412, 2
        %v1523 = vrot.slane %v1413, 2
        %v1524 = vsel %vm1174, %v1522, %v1523
        %v1525 = vrot.slane %v1414, 2
        %v1526 = vsel %vm1174, %v1523, %v1525
        %v1527 = vrot.slane %v1415, 2
        %v1528 = vrot.slane %v1416, 2
        %v1529 = vsel %vm1174, %v1527, %v1528
        %v1530 = vrot.slane %v1417, 2
        %v1531 = vsel %vm1174, %v1528, %v1530
        %v1532 = vrot.slane %v1418, 2
        %v1533 = vrot.slane %v1419, 2
        %v1534 = vsel %vm1174, %v1532, %v1533
        %v1535 = vrot.slane %v1420, 2
        %v1536 = vsel %vm1174, %v1533, %v1535
        %v1537 = vrot.slane %v1421, 2
        %v1538 = vrot.slane %v1422, 2
        %v1539 = vsel %vm1174, %v1537, %v1538
        %v1540 = vrot.slane %v1423, 2
        %v1541 = vsel %vm1174, %v1538, %v1540
        %v1542 = vrot.slane %v1424, 2
        %v1543 = vrot.slane %v1425, 2
        %v1544 = vsel %vm1174, %v1542, %v1543
        %v1545 = vrot.slane %v1426, 2
        %v1546 = vsel %vm1174, %v1543, %v1545
        %v1547 = vrot.slane %v1427, 2
        %v1548 = vrot.slane %v1428, 2
        %v1549 = vsel %vm1174, %v1547, %v1548
        %v1550 = vrot.slane %v1429, 2
        %v1551 = vsel %vm1174, %v1548, %v1550
        %v1552 = vrot.slane %v1430, 2
        %v1553 = vrot.slane %v1431, 2
        %v1554 = vsel %vm1174, %v1552, %v1553
        %v1555 = vrot.slane %v1432, 2
        %v1556 = vsel %vm1174, %v1553, %v1555
        %v1557 = vrot.slane %v1433, 2
        %v1558 = vrot.slane %v1434, 2
        %v1559 = vsel %vm1174, %v1557, %v1558
        %v1560 = vrot.slane %v1435, 2
        %v1561 = vsel %vm1174, %v1558, %v1560
        %v1562 = vrot.slane %v1436, 2
        %v1563 = vrot.slane %v1437, 2
        %v1564 = vsel %vm1174, %v1562, %v1563
        %v1565 = vrot.slane %v1438, 2
        %v1566 = vsel %vm1174, %v1563, %v1565
        %v1615 = vadd.f32 %v990, %v1489
        %v1616 = vadd.f32 %v991, %v1491
        %v1617 = vadd.f32 %v992, %v1490
        %v1618 = vadd.f32 %v993, %v1494
        %v1619 = vadd.f32 %v994, %v1496
        %v1620 = vadd.f32 %v995, %v1495
        %v1621 = vadd.f32 %v996, %v1499
        %v1622 = vadd.f32 %v997, %v1501
        %v1623 = vadd.f32 %v998, %v1500
        %v1624 = vadd.f32 %v999, %v1504
        %v1625 = vadd.f32 %v1000, %v1506
        %v1626 = vadd.f32 %v1001, %v1505
        %v1627 = vadd.f32 %v1002, %v1509
        %v1628 = vadd.f32 %v1003, %v1511
        %v1629 = vadd.f32 %v1004, %v1510
        %v1630 = vadd.f32 %v1005, %v1514
        %v1631 = vadd.f32 %v1006, %v1516
        %v1632 = vadd.f32 %v1007, %v1515
        %v1633 = vadd.f32 %v1008, %v1519
        %v1634 = vadd.f32 %v1009, %v1521
        %v1635 = vadd.f32 %v1010, %v1520
        %v1636 = vadd.f32 %v1011, %v1524
        %v1637 = vadd.f32 %v1012, %v1526
        %v1638 = vadd.f32 %v1013, %v1525
        %v1639 = vadd.f32 %v1014, %v1529
        %v1640 = vadd.f32 %v1015, %v1531
        %v1641 = vadd.f32 %v1016, %v1530
        %v1642 = vadd.f32 %v1017, %v1534
        %v1643 = vadd.f32 %v1018, %v1536
        %v1644 = vadd.f32 %v1019, %v1535
        %v1645 = vadd.f32 %v1020, %v1539
        %v1646 = vadd.f32 %v1021, %v1541
        %v1647 = vadd.f32 %v1022, %v1540
        %v1648 = vadd.f32 %v1023, %v1544
        %v1649 = vadd.f32 %v1024, %v1546
        %v1650 = vadd.f32 %v1025, %v1545
        %v1651 = vadd.f32 %v1026, %v1549
        %v1652 = vadd.f32 %v1027, %v1551
        %v1653 = vadd.f32 %v1028, %v1550
        %v1654 = vadd.f32 %v1029, %v1554
        %v1655 = vadd.f32 %v1030, %v1556
        %v1656 = vadd.f32 %v1031, %v1555
        %v1657 = vadd.f32 %v1032, %v1559
        %v1658 = vadd.f32 %v1033, %v1561
        %v1659 = vadd.f32 %v1034, %v1560
        %v1660 = vadd.f32 %v1035, %v1564
        %v1661 = vadd.f32 %v1036, %v1566
        %v1662 = vadd.f32 %v1037, %v1565
        %v1663 = vunpack.c.l.bf16 %v1335
        %v1664 = vunpack.c.l.bf16 %v1336
        %v1665 = vunpack.c.l.bf16 %v1337
        %v1666 = vunpack.c.l.bf16 %v1338
        %v1667 = vunpack.c.l.bf16 %v1339
        %v1668 = vunpack.c.l.bf16 %v1340
        %v1669 = vunpack.c.l.bf16 %v1341
        %v1670 = vunpack.c.l.bf16 %v1342
        %v1671 = vunpack.c.l.bf16 %v1343
        %v1672 = vunpack.c.l.bf16 %v1344
        %v1673 = vunpack.c.l.bf16 %v1345
        %v1674 = vunpack.c.l.bf16 %v1346
        %v1675 = vunpack.c.l.bf16 %v1347
        %v1676 = vunpack.c.l.bf16 %v1348
        %v1677 = vunpack.c.l.bf16 %v1349
        %v1678 = vunpack.c.l.bf16 %v1350
        %v1679 = vunpack.c.l.bf16 %v1351
        %v1680 = vunpack.c.l.bf16 %v1352
        %v1681 = vunpack.c.l.bf16 %v1353
        %v1682 = vunpack.c.l.bf16 %v1354
        %v1683 = vunpack.c.l.bf16 %v1355
        %v1684 = vunpack.c.l.bf16 %v1356
        %v1685 = vunpack.c.l.bf16 %v1357
        %v1686 = vunpack.c.l.bf16 %v1358
        %v1687 = vunpack.c.l.bf16 %v1359
        %v1688 = vunpack.c.l.bf16 %v1360
        %v1689 = vunpack.c.l.bf16 %v1361
        %v1690 = vunpack.c.l.bf16 %v1362
        %v1691 = vunpack.c.l.bf16 %v1363
        %v1692 = vunpack.c.l.bf16 %v1364
        %v1693 = vunpack.c.l.bf16 %v1365
        %v1694 = vunpack.c.l.bf16 %v1366
        %s1695 = scalar_lea.vmem %s2, 2
        %v1696 = vld [vmem:[%s1695] sm:$0x1]
        %v1698 = vlaneseq
        %v1699 = vshrl.u32 %v1698, 7
        %v1700 = vsub.s32 0, %v1699
        %v1701 = vrot.slane %v1696, %v1700
        %v1703 = vmul.f32 %v1663, %v1701
        %v1704 = vmul.f32 %v591, %v1701
        %v1705 = vmul.f32 %v1664, %v1701
        %v1706 = vmul.f32 %v1665, %v1701
        %v1707 = vmul.f32 %v593, %v1701
        %v1708 = vmul.f32 %v1666, %v1701
        %v1709 = vmul.f32 %v1667, %v1701
        %v1710 = vmul.f32 %v595, %v1701
        %v1711 = vmul.f32 %v1668, %v1701
        %v1712 = vmul.f32 %v1669, %v1701
        %v1713 = vmul.f32 %v597, %v1701
        %v1714 = vmul.f32 %v1670, %v1701
        %v1715 = vmul.f32 %v1671, %v1701
        %v1716 = vmul.f32 %v599, %v1701
        %v1717 = vmul.f32 %v1672, %v1701
        %v1718 = vmul.f32 %v1673, %v1701
        %v1719 = vmul.f32 %v601, %v1701
        %v1720 = vmul.f32 %v1674, %v1701
        %v1721 = vmul.f32 %v1675, %v1701
        %v1722 = vmul.f32 %v603, %v1701
        %v1723 = vmul.f32 %v1676, %v1701
        %v1724 = vmul.f32 %v1677, %v1701
        %v1725 = vmul.f32 %v605, %v1701
        %v1726 = vmul.f32 %v1678, %v1701
        %v1727 = vmul.f32 %v1679, %v1701
        %v1728 = vmul.f32 %v607, %v1701
        %v1729 = vmul.f32 %v1680, %v1701
        %v1730 = vmul.f32 %v1681, %v1701
        %v1731 = vmul.f32 %v609, %v1701
        %v1732 = vmul.f32 %v1682, %v1701
        %v1733 = vmul.f32 %v1683, %v1701
        %v1734 = vmul.f32 %v611, %v1701
        %v1735 = vmul.f32 %v1684, %v1701
        %v1736 = vmul.f32 %v1685, %v1701
        %v1737 = vmul.f32 %v613, %v1701
        %v1738 = vmul.f32 %v1686, %v1701
        %v1739 = vmul.f32 %v1687, %v1701
        %v1740 = vmul.f32 %v615, %v1701
        %v1741 = vmul.f32 %v1688, %v1701
        %v1742 = vmul.f32 %v1689, %v1701
        %v1743 = vmul.f32 %v617, %v1701
        %v1744 = vmul.f32 %v1690, %v1701
        %v1745 = vmul.f32 %v1691, %v1701
        %v1746 = vmul.f32 %v619, %v1701
        %v1747 = vmul.f32 %v1692, %v1701
        %v1748 = vmul.f32 %v1693, %v1701
        %v1749 = vmul.f32 %v621, %v1701
        %v1750 = vmul.f32 %v1694, %v1701
        %vm1799 = vcmask 1043456
        %v1800 = vrot.slane %v1703, 4
        %v1801 = vrot.slane %v1704, 4
        %v1802 = vsel %vm1799, %v1800, %v1801
        %v1803 = vrot.slane %v1705, 4
        %v1804 = vsel %vm1799, %v1801, %v1803
        %v1805 = vrot.slane %v1706, 4
        %v1806 = vrot.slane %v1707, 4
        %v1807 = vsel %vm1799, %v1805, %v1806
        %v1808 = vrot.slane %v1708, 4
        %v1809 = vsel %vm1799, %v1806, %v1808
        %v1810 = vrot.slane %v1709, 4
        %v1811 = vrot.slane %v1710, 4
        %v1812 = vsel %vm1799, %v1810, %v1811
        %v1813 = vrot.slane %v1711, 4
        %v1814 = vsel %vm1799, %v1811, %v1813
        %v1815 = vrot.slane %v1712, 4
        %v1816 = vrot.slane %v1713, 4
        %v1817 = vsel %vm1799, %v1815, %v1816
        %v1818 = vrot.slane %v1714, 4
        %v1819 = vsel %vm1799, %v1816, %v1818
        %v1820 = vrot.slane %v1715, 4
        %v1821 = vrot.slane %v1716, 4
        %v1822 = vsel %vm1799, %v1820, %v1821
        %v1823 = vrot.slane %v1717, 4
        %v1824 = vsel %vm1799, %v1821, %v1823
        %v1825 = vrot.slane %v1718, 4
        %v1826 = vrot.slane %v1719, 4
        %v1827 = vsel %vm1799, %v1825, %v1826
        %v1828 = vrot.slane %v1720, 4
        %v1829 = vsel %vm1799, %v1826, %v1828
        %v1830 = vrot.slane %v1721, 4
        %v1831 = vrot.slane %v1722, 4
        %v1832 = vsel %vm1799, %v1830, %v1831
        %v1833 = vrot.slane %v1723, 4
        %v1834 = vsel %vm1799, %v1831, %v1833
        %v1835 = vrot.slane %v1724, 4
        %v1836 = vrot.slane %v1725, 4
        %v1837 = vsel %vm1799, %v1835, %v1836
        %v1838 = vrot.slane %v1726, 4
        %v1839 = vsel %vm1799, %v1836, %v1838
        %v1840 = vrot.slane %v1727, 4
        %v1841 = vrot.slane %v1728, 4
        %v1842 = vsel %vm1799, %v1840, %v1841
        %v1843 = vrot.slane %v1729, 4
        %v1844 = vsel %vm1799, %v1841, %v1843
        %v1845 = vrot.slane %v1730, 4
        %v1846 = vrot.slane %v1731, 4
        %v1847 = vsel %vm1799, %v1845, %v1846
        %v1848 = vrot.slane %v1732, 4
        %v1849 = vsel %vm1799, %v1846, %v1848
        %v1850 = vrot.slane %v1733, 4
        %v1851 = vrot.slane %v1734, 4
        %v1852 = vsel %vm1799, %v1850, %v1851
        %v1853 = vrot.slane %v1735, 4
        %v1854 = vsel %vm1799, %v1851, %v1853
        %v1855 = vrot.slane %v1736, 4
        %v1856 = vrot.slane %v1737, 4
        %v1857 = vsel %vm1799, %v1855, %v1856
        %v1858 = vrot.slane %v1738, 4
        %v1859 = vsel %vm1799, %v1856, %v1858
        %v1860 = vrot.slane %v1739, 4
        %v1861 = vrot.slane %v1740, 4
        %v1862 = vsel %vm1799, %v1860, %v1861
        %v1863 = vrot.slane %v1741, 4
        %v1864 = vsel %vm1799, %v1861, %v1863
        %v1865 = vrot.slane %v1742, 4
        %v1866 = vrot.slane %v1743, 4
        %v1867 = vsel %vm1799, %v1865, %v1866
        %v1868 = vrot.slane %v1744, 4
        %v1869 = vsel %vm1799, %v1866, %v1868
        %v1870 = vrot.slane %v1745, 4
        %v1871 = vrot.slane %v1746, 4
        %v1872 = vsel %vm1799, %v1870, %v1871
        %v1873 = vrot.slane %v1747, 4
        %v1874 = vsel %vm1799, %v1871, %v1873
        %v1875 = vrot.slane %v1748, 4
        %v1876 = vrot.slane %v1749, 4
        %v1877 = vsel %vm1799, %v1875, %v1876
        %v1878 = vrot.slane %v1750, 4
        %v1879 = vsel %vm1799, %v1876, %v1878
        %v1912 = vadd.f32 %v1287, %v1802
        %v1913 = vadd.f32 %v1288, %v1804
        %v1914 = vadd.f32 %v1289, %v1807
        %v1915 = vadd.f32 %v1290, %v1809
        %v1916 = vadd.f32 %v1291, %v1812
        %v1917 = vadd.f32 %v1292, %v1814
        %v1918 = vadd.f32 %v1293, %v1817
        %v1919 = vadd.f32 %v1294, %v1819
        %v1920 = vadd.f32 %v1295, %v1822
        %v1921 = vadd.f32 %v1296, %v1824
        %v1922 = vadd.f32 %v1297, %v1827
        %v1923 = vadd.f32 %v1298, %v1829
        %v1924 = vadd.f32 %v1299, %v1832
        %v1925 = vadd.f32 %v1300, %v1834
        %v1926 = vadd.f32 %v1301, %v1837
        %v1927 = vadd.f32 %v1302, %v1839
        %v1928 = vadd.f32 %v1303, %v1842
        %v1929 = vadd.f32 %v1304, %v1844
        %v1930 = vadd.f32 %v1305, %v1847
        %v1931 = vadd.f32 %v1306, %v1849
        %v1932 = vadd.f32 %v1307, %v1852
        %v1933 = vadd.f32 %v1308, %v1854
        %v1934 = vadd.f32 %v1309, %v1857
        %v1935 = vadd.f32 %v1310, %v1859
        %v1936 = vadd.f32 %v1311, %v1862
        %v1937 = vadd.f32 %v1312, %v1864
        %v1938 = vadd.f32 %v1313, %v1867
        %v1939 = vadd.f32 %v1314, %v1869
        %v1940 = vadd.f32 %v1315, %v1872
        %v1941 = vadd.f32 %v1316, %v1874
        %v1942 = vadd.f32 %v1317, %v1877
        %v1943 = vadd.f32 %v1318, %v1879
        %s1944 = scalar_lea.vmem %s357, 24
        %v1945 = vld [vmem:[%s1944] sm:$0xf]
        %v1946 = vld [vmem:[%s1944 + $0x4] sm:$0xf]
        %v1947 = vld [vmem:[%s1944 + $0x8] sm:$0x1]
        %v1948 = vld [vmem:[%s1944 + $0xc] sm:$0xf]
        %v1949 = vld [vmem:[%s1944 + $0x10] sm:$0xf]
        %v1950 = vld [vmem:[%s1944 + $0x14] sm:$0x1]
        %v1951 = vld [vmem:[%s1944 + $0x18] sm:$0xf]
        %v1952 = vld [vmem:[%s1944 + $0x1c] sm:$0xf]
        %v1953 = vld [vmem:[%s1944 + $0x20] sm:$0x1]
        %v1954 = vld [vmem:[%s1944 + $0x24] sm:$0xf]
        %v1955 = vld [vmem:[%s1944 + $0x28] sm:$0xf]
        %v1956 = vld [vmem:[%s1944 + $0x2c] sm:$0x1]
        %v1957 = vld [vmem:[%s1944 + $0x30] sm:$0xf]
        %v1958 = vld [vmem:[%s1944 + $0x34] sm:$0xf]
        %v1959 = vld [vmem:[%s1944 + $0x38] sm:$0x1]
        %v1960 = vld [vmem:[%s1944 + $0x3c] sm:$0xf]
        %v1961 = vld [vmem:[%s1944 + $0x40] sm:$0xf]
        %v1962 = vld [vmem:[%s1944 + $0x44] sm:$0x1]
        %v1963 = vld [vmem:[%s1944 + $0x48] sm:$0xf]
        %v1964 = vld [vmem:[%s1944 + $0x4c] sm:$0xf]
        %v1965 = vld [vmem:[%s1944 + $0x50] sm:$0x1]
        %v1966 = vld [vmem:[%s1944 + $0x54] sm:$0xf]
        %v1967 = vld [vmem:[%s1944 + $0x58] sm:$0xf]
        %v1968 = vld [vmem:[%s1944 + $0x5c] sm:$0x1]
        %v1969 = vld [vmem:[%s1944 + $0x60] sm:$0xf]
        %v1970 = vld [vmem:[%s1944 + $0x64] sm:$0xf]
        %v1971 = vld [vmem:[%s1944 + $0x68] sm:$0x1]
        %v1972 = vld [vmem:[%s1944 + $0x6c] sm:$0xf]
        %v1973 = vld [vmem:[%s1944 + $0x70] sm:$0xf]
        %v1974 = vld [vmem:[%s1944 + $0x74] sm:$0x1]
        %v1975 = vld [vmem:[%s1944 + $0x78] sm:$0xf]
        %v1976 = vld [vmem:[%s1944 + $0x7c] sm:$0xf]
        %v1977 = vld [vmem:[%s1944 + $0x80] sm:$0x1]
        %v1978 = vld [vmem:[%s1944 + $0x84] sm:$0xf]
        %v1979 = vld [vmem:[%s1944 + $0x88] sm:$0xf]
        %v1980 = vld [vmem:[%s1944 + $0x8c] sm:$0x1]
        %v1981 = vld [vmem:[%s1944 + $0x90] sm:$0xf]
        %v1982 = vld [vmem:[%s1944 + $0x94] sm:$0xf]
        %v1983 = vld [vmem:[%s1944 + $0x98] sm:$0x1]
        %v1984 = vld [vmem:[%s1944 + $0x9c] sm:$0xf]
        %v1985 = vld [vmem:[%s1944 + $0xa0] sm:$0xf]
        %v1986 = vld [vmem:[%s1944 + $0xa4] sm:$0x1]
        %v1987 = vld [vmem:[%s1944 + $0xa8] sm:$0xf]
        %v1988 = vld [vmem:[%s1944 + $0xac] sm:$0xf]
        %v1989 = vld [vmem:[%s1944 + $0xb0] sm:$0x1]
        %v1990 = vld [vmem:[%s1944 + $0xb4] sm:$0xf]
        %v1991 = vld [vmem:[%s1944 + $0xb8] sm:$0xf]
        %v1992 = vld [vmem:[%s1944 + $0xbc] sm:$0x1]
        %v1993 = vunpack.c.l.bf16 %v1945
        %v1994 = vunpack.c.l.bf16 %v1946
        %v1995 = vunpack.c.l.bf16 %v1947
        %v1996 = vunpack.c.l.bf16 %v1948
        %v1997 = vunpack.c.l.bf16 %v1949
        %v1998 = vunpack.c.l.bf16 %v1950
        %v1999 = vunpack.c.l.bf16 %v1951
        %v2000 = vunpack.c.l.bf16 %v1952
        %v2001 = vunpack.c.l.bf16 %v1953
        %v2002 = vunpack.c.l.bf16 %v1954
        %v2003 = vunpack.c.l.bf16 %v1955
        %v2004 = vunpack.c.l.bf16 %v1956
        %v2005 = vunpack.c.l.bf16 %v1957
        %v2006 = vunpack.c.l.bf16 %v1958
        %v2007 = vunpack.c.l.bf16 %v1959
        %v2008 = vunpack.c.l.bf16 %v1960
        %v2009 = vunpack.c.l.bf16 %v1961
        %v2010 = vunpack.c.l.bf16 %v1962
        %v2011 = vunpack.c.l.bf16 %v1963
        %v2012 = vunpack.c.l.bf16 %v1964
        %v2013 = vunpack.c.l.bf16 %v1965
        %v2014 = vunpack.c.l.bf16 %v1966
        %v2015 = vunpack.c.l.bf16 %v1967
        %v2016 = vunpack.c.l.bf16 %v1968
        %v2017 = vunpack.c.l.bf16 %v1969
        %v2018 = vunpack.c.l.bf16 %v1970
        %v2019 = vunpack.c.l.bf16 %v1971
        %v2020 = vunpack.c.l.bf16 %v1972
        %v2021 = vunpack.c.l.bf16 %v1973
        %v2022 = vunpack.c.l.bf16 %v1974
        %v2023 = vunpack.c.l.bf16 %v1975
        %v2024 = vunpack.c.l.bf16 %v1976
        %v2025 = vunpack.c.l.bf16 %v1977
        %v2026 = vunpack.c.l.bf16 %v1978
        %v2027 = vunpack.c.l.bf16 %v1979
        %v2028 = vunpack.c.l.bf16 %v1980
        %v2029 = vunpack.c.l.bf16 %v1981
        %v2030 = vunpack.c.l.bf16 %v1982
        %v2031 = vunpack.c.l.bf16 %v1983
        %v2032 = vunpack.c.l.bf16 %v1984
        %v2033 = vunpack.c.l.bf16 %v1985
        %v2034 = vunpack.c.l.bf16 %v1986
        %v2035 = vunpack.c.l.bf16 %v1987
        %v2036 = vunpack.c.l.bf16 %v1988
        %v2037 = vunpack.c.l.bf16 %v1989
        %v2038 = vunpack.c.l.bf16 %v1990
        %v2039 = vunpack.c.l.bf16 %v1991
        %v2040 = vunpack.c.l.bf16 %v1992
        %s2041 = scalar_lea.vmem %s1, 3
        %v2042 = vld [vmem:[%s2041] sm:$0x1]
        %v2044 = vlaneseq
        %v2045 = vshrl.u32 %v2044, 7
        %v2046 = vsub.s32 0, %v2045
        %v2047 = vrot.slane %v2042, %v2046
        %v2049 = vmul.f32 %v1993, %v2047
        %v2050 = vmul.f32 %v1994, %v2047
        %v2051 = vmul.f32 %v1995, %v2047
        %v2052 = vmul.f32 %v1996, %v2047
        %v2053 = vmul.f32 %v1997, %v2047
        %v2054 = vmul.f32 %v1998, %v2047
        %v2055 = vmul.f32 %v1999, %v2047
        %v2056 = vmul.f32 %v2000, %v2047
        %v2057 = vmul.f32 %v2001, %v2047
        %v2058 = vmul.f32 %v2002, %v2047
        %v2059 = vmul.f32 %v2003, %v2047
        %v2060 = vmul.f32 %v2004, %v2047
        %v2061 = vmul.f32 %v2005, %v2047
        %v2062 = vmul.f32 %v2006, %v2047
        %v2063 = vmul.f32 %v2007, %v2047
        %v2064 = vmul.f32 %v2008, %v2047
        %v2065 = vmul.f32 %v2009, %v2047
        %v2066 = vmul.f32 %v2010, %v2047
        %v2067 = vmul.f32 %v2011, %v2047
        %v2068 = vmul.f32 %v2012, %v2047
        %v2069 = vmul.f32 %v2013, %v2047
        %v2070 = vmul.f32 %v2014, %v2047
        %v2071 = vmul.f32 %v2015, %v2047
        %v2072 = vmul.f32 %v2016, %v2047
        %v2073 = vmul.f32 %v2017, %v2047
        %v2074 = vmul.f32 %v2018, %v2047
        %v2075 = vmul.f32 %v2019, %v2047
        %v2076 = vmul.f32 %v2020, %v2047
        %v2077 = vmul.f32 %v2021, %v2047
        %v2078 = vmul.f32 %v2022, %v2047
        %v2079 = vmul.f32 %v2023, %v2047
        %v2080 = vmul.f32 %v2024, %v2047
        %v2081 = vmul.f32 %v2025, %v2047
        %v2082 = vmul.f32 %v2026, %v2047
        %v2083 = vmul.f32 %v2027, %v2047
        %v2084 = vmul.f32 %v2028, %v2047
        %v2085 = vmul.f32 %v2029, %v2047
        %v2086 = vmul.f32 %v2030, %v2047
        %v2087 = vmul.f32 %v2031, %v2047
        %v2088 = vmul.f32 %v2032, %v2047
        %v2089 = vmul.f32 %v2033, %v2047
        %v2090 = vmul.f32 %v2034, %v2047
        %v2091 = vmul.f32 %v2035, %v2047
        %v2092 = vmul.f32 %v2036, %v2047
        %v2093 = vmul.f32 %v2037, %v2047
        %v2094 = vmul.f32 %v2038, %v2047
        %v2095 = vmul.f32 %v2039, %v2047
        %v2096 = vmul.f32 %v2040, %v2047
        %v2097 = vadd.f32 %v1615, %v2049
        %v2098 = vadd.f32 %v1616, %v2050
        %v2099 = vadd.f32 %v1617, %v2051
        %v2100 = vadd.f32 %v1618, %v2052
        %v2101 = vadd.f32 %v1619, %v2053
        %v2102 = vadd.f32 %v1620, %v2054
        %v2103 = vadd.f32 %v1621, %v2055
        %v2104 = vadd.f32 %v1622, %v2056
        %v2105 = vadd.f32 %v1623, %v2057
        %v2106 = vadd.f32 %v1624, %v2058
        %v2107 = vadd.f32 %v1625, %v2059
        %v2108 = vadd.f32 %v1626, %v2060
        %v2109 = vadd.f32 %v1627, %v2061
        %v2110 = vadd.f32 %v1628, %v2062
        %v2111 = vadd.f32 %v1629, %v2063
        %v2112 = vadd.f32 %v1630, %v2064
        %v2113 = vadd.f32 %v1631, %v2065
        %v2114 = vadd.f32 %v1632, %v2066
        %v2115 = vadd.f32 %v1633, %v2067
        %v2116 = vadd.f32 %v1634, %v2068
        %v2117 = vadd.f32 %v1635, %v2069
        %v2118 = vadd.f32 %v1636, %v2070
        %v2119 = vadd.f32 %v1637, %v2071
        %v2120 = vadd.f32 %v1638, %v2072
        %v2121 = vadd.f32 %v1639, %v2073
        %v2122 = vadd.f32 %v1640, %v2074
        %v2123 = vadd.f32 %v1641, %v2075
        %v2124 = vadd.f32 %v1642, %v2076
        %v2125 = vadd.f32 %v1643, %v2077
        %v2126 = vadd.f32 %v1644, %v2078
        %v2127 = vadd.f32 %v1645, %v2079
        %v2128 = vadd.f32 %v1646, %v2080
        %v2129 = vadd.f32 %v1647, %v2081
        %v2130 = vadd.f32 %v1648, %v2082
        %v2131 = vadd.f32 %v1649, %v2083
        %v2132 = vadd.f32 %v1650, %v2084
        %v2133 = vadd.f32 %v1651, %v2085
        %v2134 = vadd.f32 %v1652, %v2086
        %v2135 = vadd.f32 %v1653, %v2087
        %v2136 = vadd.f32 %v1654, %v2088
        %v2137 = vadd.f32 %v1655, %v2089
        %v2138 = vadd.f32 %v1656, %v2090
        %v2139 = vadd.f32 %v1657, %v2091
        %v2140 = vadd.f32 %v1658, %v2092
        %v2141 = vadd.f32 %v1659, %v2093
        %v2142 = vadd.f32 %v1660, %v2094
        %v2143 = vadd.f32 %v1661, %v2095
        %v2144 = vadd.f32 %v1662, %v2096
        %s2145 = scalar_lea.vmem %s2, 3
        %v2146 = vld [vmem:[%s2145] sm:$0x1]
        %v2148 = vlaneseq
        %v2149 = vshrl.u32 %v2148, 7
        %v2150 = vsub.s32 0, %v2149
        %v2151 = vrot.slane %v2146, %v2150
        %v2153 = vmul.f32 %v1993, %v2151
        %v2154 = vmul.f32 %v1994, %v2151
        %v2155 = vmul.f32 %v1996, %v2151
        %v2156 = vmul.f32 %v1997, %v2151
        %v2157 = vmul.f32 %v1999, %v2151
        %v2158 = vmul.f32 %v2000, %v2151
        %v2159 = vmul.f32 %v2002, %v2151
        %v2160 = vmul.f32 %v2003, %v2151
        %v2161 = vmul.f32 %v2005, %v2151
        %v2162 = vmul.f32 %v2006, %v2151
        %v2163 = vmul.f32 %v2008, %v2151
        %v2164 = vmul.f32 %v2009, %v2151
        %v2165 = vmul.f32 %v2011, %v2151
        %v2166 = vmul.f32 %v2012, %v2151
        %v2167 = vmul.f32 %v2014, %v2151
        %v2168 = vmul.f32 %v2015, %v2151
        %v2169 = vmul.f32 %v2017, %v2151
        %v2170 = vmul.f32 %v2018, %v2151
        %v2171 = vmul.f32 %v2020, %v2151
        %v2172 = vmul.f32 %v2021, %v2151
        %v2173 = vmul.f32 %v2023, %v2151
        %v2174 = vmul.f32 %v2024, %v2151
        %v2175 = vmul.f32 %v2026, %v2151
        %v2176 = vmul.f32 %v2027, %v2151
        %v2177 = vmul.f32 %v2029, %v2151
        %v2178 = vmul.f32 %v2030, %v2151
        %v2179 = vmul.f32 %v2032, %v2151
        %v2180 = vmul.f32 %v2033, %v2151
        %v2181 = vmul.f32 %v2035, %v2151
        %v2182 = vmul.f32 %v2036, %v2151
        %v2183 = vmul.f32 %v2038, %v2151
        %v2184 = vmul.f32 %v2039, %v2151
        %v2185 = vadd.f32 %v1912, %v2153
        %v2186 = vadd.f32 %v1913, %v2154
        %v2187 = vadd.f32 %v1914, %v2155
        %v2188 = vadd.f32 %v1915, %v2156
        %v2189 = vadd.f32 %v1916, %v2157
        %v2190 = vadd.f32 %v1917, %v2158
        %v2191 = vadd.f32 %v1918, %v2159
        %v2192 = vadd.f32 %v1919, %v2160
        %v2193 = vadd.f32 %v1920, %v2161
        %v2194 = vadd.f32 %v1921, %v2162
        %v2195 = vadd.f32 %v1922, %v2163
        %v2196 = vadd.f32 %v1923, %v2164
        %v2197 = vadd.f32 %v1924, %v2165
        %v2198 = vadd.f32 %v1925, %v2166
        %v2199 = vadd.f32 %v1926, %v2167
        %v2200 = vadd.f32 %v1927, %v2168
        %v2201 = vadd.f32 %v1928, %v2169
        %v2202 = vadd.f32 %v1929, %v2170
        %v2203 = vadd.f32 %v1930, %v2171
        %v2204 = vadd.f32 %v1931, %v2172
        %v2205 = vadd.f32 %v1932, %v2173
        %v2206 = vadd.f32 %v1933, %v2174
        %v2207 = vadd.f32 %v1934, %v2175
        %v2208 = vadd.f32 %v1935, %v2176
        %v2209 = vadd.f32 %v1936, %v2177
        %v2210 = vadd.f32 %v1937, %v2178
        %v2211 = vadd.f32 %v1938, %v2179
        %v2212 = vadd.f32 %v1939, %v2180
        %v2213 = vadd.f32 %v1940, %v2181
        %v2214 = vadd.f32 %v1941, %v2182
        %v2215 = vadd.f32 %v1942, %v2183
        %v2216 = vadd.f32 %v1943, %v2184
        %v2217 = vld [vmem:[%s1944] sm:$0xe]
        %v2218 = vld [vmem:[%s1944 + $0xc] sm:$0xe]
        %v2219 = vld [vmem:[%s1944 + $0x18] sm:$0xe]
        %v2220 = vld [vmem:[%s1944 + $0x24] sm:$0xe]
        %v2221 = vld [vmem:[%s1944 + $0x30] sm:$0xe]
        %v2222 = vld [vmem:[%s1944 + $0x3c] sm:$0xe]
        %v2223 = vld [vmem:[%s1944 + $0x48] sm:$0xe]
        %v2224 = vld [vmem:[%s1944 + $0x54] sm:$0xe]
        %v2225 = vld [vmem:[%s1944 + $0x60] sm:$0xe]
        %v2226 = vld [vmem:[%s1944 + $0x6c] sm:$0xe]
        %v2227 = vld [vmem:[%s1944 + $0x78] sm:$0xe]
        %v2228 = vld [vmem:[%s1944 + $0x84] sm:$0xe]
        %v2229 = vld [vmem:[%s1944 + $0x90] sm:$0xe]
        %v2230 = vld [vmem:[%s1944 + $0x9c] sm:$0xe]
        %v2231 = vld [vmem:[%s1944 + $0xa8] sm:$0xe]
        %v2232 = vld [vmem:[%s1944 + $0xb4] sm:$0xe]
        %v2233 = vunpack.c.l.bf16 %v2217
        %v2234 = vunpack.c.l.bf16 %v2218
        %v2235 = vunpack.c.l.bf16 %v2219
        %v2236 = vunpack.c.l.bf16 %v2220
        %v2237 = vunpack.c.l.bf16 %v2221
        %v2238 = vunpack.c.l.bf16 %v2222
        %v2239 = vunpack.c.l.bf16 %v2223
        %v2240 = vunpack.c.l.bf16 %v2224
        %v2241 = vunpack.c.l.bf16 %v2225
        %v2242 = vunpack.c.l.bf16 %v2226
        %v2243 = vunpack.c.l.bf16 %v2227
        %v2244 = vunpack.c.l.bf16 %v2228
        %v2245 = vunpack.c.l.bf16 %v2229
        %v2246 = vunpack.c.l.bf16 %v2230
        %v2247 = vunpack.c.l.bf16 %v2231
        %v2248 = vunpack.c.l.bf16 %v2232
        %s2249 = scalar_lea.vmem %s1, 4
        %v2250 = vld [vmem:[%s2249] sm:$0x1]
        %v2252 = vlaneseq
        %v2253 = vshrl.u32 %v2252, 7
        %v2254 = vsub.s32 0, %v2253
        %v2255 = vrot.slane %v2250, %v2254
        %v2257 = vmul.f32 %v2233, %v2255
        %v2258 = vmul.f32 %v1994, %v2255
        %v2259 = vmul.f32 %v1995, %v2255
        %v2260 = vmul.f32 %v2234, %v2255
        %v2261 = vmul.f32 %v1997, %v2255
        %v2262 = vmul.f32 %v1998, %v2255
        %v2263 = vmul.f32 %v2235, %v2255
        %v2264 = vmul.f32 %v2000, %v2255
        %v2265 = vmul.f32 %v2001, %v2255
        %v2266 = vmul.f32 %v2236, %v2255
        %v2267 = vmul.f32 %v2003, %v2255
        %v2268 = vmul.f32 %v2004, %v2255
        %v2269 = vmul.f32 %v2237, %v2255
        %v2270 = vmul.f32 %v2006, %v2255
        %v2271 = vmul.f32 %v2007, %v2255
        %v2272 = vmul.f32 %v2238, %v2255
        %v2273 = vmul.f32 %v2009, %v2255
        %v2274 = vmul.f32 %v2010, %v2255
        %v2275 = vmul.f32 %v2239, %v2255
        %v2276 = vmul.f32 %v2012, %v2255
        %v2277 = vmul.f32 %v2013, %v2255
        %v2278 = vmul.f32 %v2240, %v2255
        %v2279 = vmul.f32 %v2015, %v2255
        %v2280 = vmul.f32 %v2016, %v2255
        %v2281 = vmul.f32 %v2241, %v2255
        %v2282 = vmul.f32 %v2018, %v2255
        %v2283 = vmul.f32 %v2019, %v2255
        %v2284 = vmul.f32 %v2242, %v2255
        %v2285 = vmul.f32 %v2021, %v2255
        %v2286 = vmul.f32 %v2022, %v2255
        %v2287 = vmul.f32 %v2243, %v2255
        %v2288 = vmul.f32 %v2024, %v2255
        %v2289 = vmul.f32 %v2025, %v2255
        %v2290 = vmul.f32 %v2244, %v2255
        %v2291 = vmul.f32 %v2027, %v2255
        %v2292 = vmul.f32 %v2028, %v2255
        %v2293 = vmul.f32 %v2245, %v2255
        %v2294 = vmul.f32 %v2030, %v2255
        %v2295 = vmul.f32 %v2031, %v2255
        %v2296 = vmul.f32 %v2246, %v2255
        %v2297 = vmul.f32 %v2033, %v2255
        %v2298 = vmul.f32 %v2034, %v2255
        %v2299 = vmul.f32 %v2247, %v2255
        %v2300 = vmul.f32 %v2036, %v2255
        %v2301 = vmul.f32 %v2037, %v2255
        %v2302 = vmul.f32 %v2248, %v2255
        %v2303 = vmul.f32 %v2039, %v2255
        %v2304 = vmul.f32 %v2040, %v2255
        %v2353 = vrot.slane %v2257, 1
        %v2354 = vrot.slane %v2258, 1
        %v2355 = vsel %vm861, %v2353, %v2354
        %v2356 = vrot.slane %v2259, 1
        %v2357 = vsel %vm861, %v2354, %v2356
        %v2358 = vrot.slane %v2260, 1
        %v2359 = vrot.slane %v2261, 1
        %v2360 = vsel %vm861, %v2358, %v2359
        %v2361 = vrot.slane %v2262, 1
        %v2362 = vsel %vm861, %v2359, %v2361
        %v2363 = vrot.slane %v2263, 1
        %v2364 = vrot.slane %v2264, 1
        %v2365 = vsel %vm861, %v2363, %v2364
        %v2366 = vrot.slane %v2265, 1
        %v2367 = vsel %vm861, %v2364, %v2366
        %v2368 = vrot.slane %v2266, 1
        %v2369 = vrot.slane %v2267, 1
        %v2370 = vsel %vm861, %v2368, %v2369
        %v2371 = vrot.slane %v2268, 1
        %v2372 = vsel %vm861, %v2369, %v2371
        %v2373 = vrot.slane %v2269, 1
        %v2374 = vrot.slane %v2270, 1
        %v2375 = vsel %vm861, %v2373, %v2374
        %v2376 = vrot.slane %v2271, 1
        %v2377 = vsel %vm861, %v2374, %v2376
        %v2378 = vrot.slane %v2272, 1
        %v2379 = vrot.slane %v2273, 1
        %v2380 = vsel %vm861, %v2378, %v2379
        %v2381 = vrot.slane %v2274, 1
        %v2382 = vsel %vm861, %v2379, %v2381
        %v2383 = vrot.slane %v2275, 1
        %v2384 = vrot.slane %v2276, 1
        %v2385 = vsel %vm861, %v2383, %v2384
        %v2386 = vrot.slane %v2277, 1
        %v2387 = vsel %vm861, %v2384, %v2386
        %v2388 = vrot.slane %v2278, 1
        %v2389 = vrot.slane %v2279, 1
        %v2390 = vsel %vm861, %v2388, %v2389
        %v2391 = vrot.slane %v2280, 1
        %v2392 = vsel %vm861, %v2389, %v2391
        %v2393 = vrot.slane %v2281, 1
        %v2394 = vrot.slane %v2282, 1
        %v2395 = vsel %vm861, %v2393, %v2394
        %v2396 = vrot.slane %v2283, 1
        %v2397 = vsel %vm861, %v2394, %v2396
        %v2398 = vrot.slane %v2284, 1
        %v2399 = vrot.slane %v2285, 1
        %v2400 = vsel %vm861, %v2398, %v2399
        %v2401 = vrot.slane %v2286, 1
        %v2402 = vsel %vm861, %v2399, %v2401
        %v2403 = vrot.slane %v2287, 1
        %v2404 = vrot.slane %v2288, 1
        %v2405 = vsel %vm861, %v2403, %v2404
        %v2406 = vrot.slane %v2289, 1
        %v2407 = vsel %vm861, %v2404, %v2406
        %v2408 = vrot.slane %v2290, 1
        %v2409 = vrot.slane %v2291, 1
        %v2410 = vsel %vm861, %v2408, %v2409
        %v2411 = vrot.slane %v2292, 1
        %v2412 = vsel %vm861, %v2409, %v2411
        %v2413 = vrot.slane %v2293, 1
        %v2414 = vrot.slane %v2294, 1
        %v2415 = vsel %vm861, %v2413, %v2414
        %v2416 = vrot.slane %v2295, 1
        %v2417 = vsel %vm861, %v2414, %v2416
        %v2418 = vrot.slane %v2296, 1
        %v2419 = vrot.slane %v2297, 1
        %v2420 = vsel %vm861, %v2418, %v2419
        %v2421 = vrot.slane %v2298, 1
        %v2422 = vsel %vm861, %v2419, %v2421
        %v2423 = vrot.slane %v2299, 1
        %v2424 = vrot.slane %v2300, 1
        %v2425 = vsel %vm861, %v2423, %v2424
        %v2426 = vrot.slane %v2301, 1
        %v2427 = vsel %vm861, %v2424, %v2426
        %v2428 = vrot.slane %v2302, 1
        %v2429 = vrot.slane %v2303, 1
        %v2430 = vsel %vm861, %v2428, %v2429
        %v2431 = vrot.slane %v2304, 1
        %v2432 = vsel %vm861, %v2429, %v2431
        %v2481 = vadd.f32 %v2097, %v2355
        %v2482 = vadd.f32 %v2098, %v2357
        %v2483 = vadd.f32 %v2099, %v2356
        %v2484 = vadd.f32 %v2100, %v2360
        %v2485 = vadd.f32 %v2101, %v2362
        %v2486 = vadd.f32 %v2102, %v2361
        %v2487 = vadd.f32 %v2103, %v2365
        %v2488 = vadd.f32 %v2104, %v2367
        %v2489 = vadd.f32 %v2105, %v2366
        %v2490 = vadd.f32 %v2106, %v2370
        %v2491 = vadd.f32 %v2107, %v2372
        %v2492 = vadd.f32 %v2108, %v2371
        %v2493 = vadd.f32 %v2109, %v2375
        %v2494 = vadd.f32 %v2110, %v2377
        %v2495 = vadd.f32 %v2111, %v2376
        %v2496 = vadd.f32 %v2112, %v2380
        %v2497 = vadd.f32 %v2113, %v2382
        %v2498 = vadd.f32 %v2114, %v2381
        %v2499 = vadd.f32 %v2115, %v2385
        %v2500 = vadd.f32 %v2116, %v2387
        %v2501 = vadd.f32 %v2117, %v2386
        %v2502 = vadd.f32 %v2118, %v2390
        %v2503 = vadd.f32 %v2119, %v2392
        %v2504 = vadd.f32 %v2120, %v2391
        %v2505 = vadd.f32 %v2121, %v2395
        %v2506 = vadd.f32 %v2122, %v2397
        %v2507 = vadd.f32 %v2123, %v2396
        %v2508 = vadd.f32 %v2124, %v2400
        %v2509 = vadd.f32 %v2125, %v2402
        %v2510 = vadd.f32 %v2126, %v2401
        %v2511 = vadd.f32 %v2127, %v2405
        %v2512 = vadd.f32 %v2128, %v2407
        %v2513 = vadd.f32 %v2129, %v2406
        %v2514 = vadd.f32 %v2130, %v2410
        %v2515 = vadd.f32 %v2131, %v2412
        %v2516 = vadd.f32 %v2132, %v2411
        %v2517 = vadd.f32 %v2133, %v2415
        %v2518 = vadd.f32 %v2134, %v2417
        %v2519 = vadd.f32 %v2135, %v2416
        %v2520 = vadd.f32 %v2136, %v2420
        %v2521 = vadd.f32 %v2137, %v2422
        %v2522 = vadd.f32 %v2138, %v2421
        %v2523 = vadd.f32 %v2139, %v2425
        %v2524 = vadd.f32 %v2140, %v2427
        %v2525 = vadd.f32 %v2141, %v2426
        %v2526 = vadd.f32 %v2142, %v2430
        %v2527 = vadd.f32 %v2143, %v2432
        %v2528 = vadd.f32 %v2144, %v2431
        %s2529 = scalar_lea.vmem %s2, 4
        %v2530 = vld [vmem:[%s2529] sm:$0x1]
        %v2532 = vlaneseq
        %v2533 = vshrl.u32 %v2532, 7
        %v2534 = vsub.s32 0, %v2533
        %v2535 = vrot.slane %v2530, %v2534
        %v2537 = vmul.f32 %v2233, %v2535
        %v2538 = vmul.f32 %v1994, %v2535
        %v2539 = vmul.f32 %v1995, %v2535
        %v2540 = vmul.f32 %v2234, %v2535
        %v2541 = vmul.f32 %v1997, %v2535
        %v2542 = vmul.f32 %v1998, %v2535
        %v2543 = vmul.f32 %v2235, %v2535
        %v2544 = vmul.f32 %v2000, %v2535
        %v2545 = vmul.f32 %v2001, %v2535
        %v2546 = vmul.f32 %v2236, %v2535
        %v2547 = vmul.f32 %v2003, %v2535
        %v2548 = vmul.f32 %v2004, %v2535
        %v2549 = vmul.f32 %v2237, %v2535
        %v2550 = vmul.f32 %v2006, %v2535
        %v2551 = vmul.f32 %v2007, %v2535
        %v2552 = vmul.f32 %v2238, %v2535
        %v2553 = vmul.f32 %v2009, %v2535
        %v2554 = vmul.f32 %v2010, %v2535
        %v2555 = vmul.f32 %v2239, %v2535
        %v2556 = vmul.f32 %v2012, %v2535
        %v2557 = vmul.f32 %v2013, %v2535
        %v2558 = vmul.f32 %v2240, %v2535
        %v2559 = vmul.f32 %v2015, %v2535
        %v2560 = vmul.f32 %v2016, %v2535
        %v2561 = vmul.f32 %v2241, %v2535
        %v2562 = vmul.f32 %v2018, %v2535
        %v2563 = vmul.f32 %v2019, %v2535
        %v2564 = vmul.f32 %v2242, %v2535
        %v2565 = vmul.f32 %v2021, %v2535
        %v2566 = vmul.f32 %v2022, %v2535
        %v2567 = vmul.f32 %v2243, %v2535
        %v2568 = vmul.f32 %v2024, %v2535
        %v2569 = vmul.f32 %v2025, %v2535
        %v2570 = vmul.f32 %v2244, %v2535
        %v2571 = vmul.f32 %v2027, %v2535
        %v2572 = vmul.f32 %v2028, %v2535
        %v2573 = vmul.f32 %v2245, %v2535
        %v2574 = vmul.f32 %v2030, %v2535
        %v2575 = vmul.f32 %v2031, %v2535
        %v2576 = vmul.f32 %v2246, %v2535
        %v2577 = vmul.f32 %v2033, %v2535
        %v2578 = vmul.f32 %v2034, %v2535
        %v2579 = vmul.f32 %v2247, %v2535
        %v2580 = vmul.f32 %v2036, %v2535
        %v2581 = vmul.f32 %v2037, %v2535
        %v2582 = vmul.f32 %v2248, %v2535
        %v2583 = vmul.f32 %v2039, %v2535
        %v2584 = vmul.f32 %v2040, %v2535
        %v2633 = vrot.slane %v2537, 2
        %v2634 = vrot.slane %v2538, 2
        %v2635 = vsel %vm1174, %v2633, %v2634
        %v2636 = vrot.slane %v2539, 2
        %v2637 = vsel %vm1174, %v2634, %v2636
        %v2638 = vrot.slane %v2540, 2
        %v2639 = vrot.slane %v2541, 2
        %v2640 = vsel %vm1174, %v2638, %v2639
        %v2641 = vrot.slane %v2542, 2
        %v2642 = vsel %vm1174, %v2639, %v2641
        %v2643 = vrot.slane %v2543, 2
        %v2644 = vrot.slane %v2544, 2
        %v2645 = vsel %vm1174, %v2643, %v2644
        %v2646 = vrot.slane %v2545, 2
        %v2647 = vsel %vm1174, %v2644, %v2646
        %v2648 = vrot.slane %v2546, 2
        %v2649 = vrot.slane %v2547, 2
        %v2650 = vsel %vm1174, %v2648, %v2649
        %v2651 = vrot.slane %v2548, 2
        %v2652 = vsel %vm1174, %v2649, %v2651
        %v2653 = vrot.slane %v2549, 2
        %v2654 = vrot.slane %v2550, 2
        %v2655 = vsel %vm1174, %v2653, %v2654
        %v2656 = vrot.slane %v2551, 2
        %v2657 = vsel %vm1174, %v2654, %v2656
        %v2658 = vrot.slane %v2552, 2
        %v2659 = vrot.slane %v2553, 2
        %v2660 = vsel %vm1174, %v2658, %v2659
        %v2661 = vrot.slane %v2554, 2
        %v2662 = vsel %vm1174, %v2659, %v2661
        %v2663 = vrot.slane %v2555, 2
        %v2664 = vrot.slane %v2556, 2
        %v2665 = vsel %vm1174, %v2663, %v2664
        %v2666 = vrot.slane %v2557, 2
        %v2667 = vsel %vm1174, %v2664, %v2666
        %v2668 = vrot.slane %v2558, 2
        %v2669 = vrot.slane %v2559, 2
        %v2670 = vsel %vm1174, %v2668, %v2669
        %v2671 = vrot.slane %v2560, 2
        %v2672 = vsel %vm1174, %v2669, %v2671
        %v2673 = vrot.slane %v2561, 2
        %v2674 = vrot.slane %v2562, 2
        %v2675 = vsel %vm1174, %v2673, %v2674
        %v2676 = vrot.slane %v2563, 2
        %v2677 = vsel %vm1174, %v2674, %v2676
        %v2678 = vrot.slane %v2564, 2
        %v2679 = vrot.slane %v2565, 2
        %v2680 = vsel %vm1174, %v2678, %v2679
        %v2681 = vrot.slane %v2566, 2
        %v2682 = vsel %vm1174, %v2679, %v2681
        %v2683 = vrot.slane %v2567, 2
        %v2684 = vrot.slane %v2568, 2
        %v2685 = vsel %vm1174, %v2683, %v2684
        %v2686 = vrot.slane %v2569, 2
        %v2687 = vsel %vm1174, %v2684, %v2686
        %v2688 = vrot.slane %v2570, 2
        %v2689 = vrot.slane %v2571, 2
        %v2690 = vsel %vm1174, %v2688, %v2689
        %v2691 = vrot.slane %v2572, 2
        %v2692 = vsel %vm1174, %v2689, %v2691
        %v2693 = vrot.slane %v2573, 2
        %v2694 = vrot.slane %v2574, 2
        %v2695 = vsel %vm1174, %v2693, %v2694
        %v2696 = vrot.slane %v2575, 2
        %v2697 = vsel %vm1174, %v2694, %v2696
        %v2698 = vrot.slane %v2576, 2
        %v2699 = vrot.slane %v2577, 2
        %v2700 = vsel %vm1174, %v2698, %v2699
        %v2701 = vrot.slane %v2578, 2
        %v2702 = vsel %vm1174, %v2699, %v2701
        %v2703 = vrot.slane %v2579, 2
        %v2704 = vrot.slane %v2580, 2
        %v2705 = vsel %vm1174, %v2703, %v2704
        %v2706 = vrot.slane %v2581, 2
        %v2707 = vsel %vm1174, %v2704, %v2706
        %v2708 = vrot.slane %v2582, 2
        %v2709 = vrot.slane %v2583, 2
        %v2710 = vsel %vm1174, %v2708, %v2709
        %v2711 = vrot.slane %v2584, 2
        %v2712 = vsel %vm1174, %v2709, %v2711
        %v2745 = vadd.f32 %v2185, %v2635
        %v2746 = vadd.f32 %v2186, %v2637
        %v2747 = vadd.f32 %v2187, %v2640
        %v2748 = vadd.f32 %v2188, %v2642
        %v2749 = vadd.f32 %v2189, %v2645
        %v2750 = vadd.f32 %v2190, %v2647
        %v2751 = vadd.f32 %v2191, %v2650
        %v2752 = vadd.f32 %v2192, %v2652
        %v2753 = vadd.f32 %v2193, %v2655
        %v2754 = vadd.f32 %v2194, %v2657
        %v2755 = vadd.f32 %v2195, %v2660
        %v2756 = vadd.f32 %v2196, %v2662
        %v2757 = vadd.f32 %v2197, %v2665
        %v2758 = vadd.f32 %v2198, %v2667
        %v2759 = vadd.f32 %v2199, %v2670
        %v2760 = vadd.f32 %v2200, %v2672
        %v2761 = vadd.f32 %v2201, %v2675
        %v2762 = vadd.f32 %v2202, %v2677
        %v2763 = vadd.f32 %v2203, %v2680
        %v2764 = vadd.f32 %v2204, %v2682
        %v2765 = vadd.f32 %v2205, %v2685
        %v2766 = vadd.f32 %v2206, %v2687
        %v2767 = vadd.f32 %v2207, %v2690
        %v2768 = vadd.f32 %v2208, %v2692
        %v2769 = vadd.f32 %v2209, %v2695
        %v2770 = vadd.f32 %v2210, %v2697
        %v2771 = vadd.f32 %v2211, %v2700
        %v2772 = vadd.f32 %v2212, %v2702
        %v2773 = vadd.f32 %v2213, %v2705
        %v2774 = vadd.f32 %v2214, %v2707
        %v2775 = vadd.f32 %v2215, %v2710
        %v2776 = vadd.f32 %v2216, %v2712
        %v2777 = vld [vmem:[%s1944 + $0x8] sm:$0x3]
        %v2778 = vld [vmem:[%s1944 + $0x14] sm:$0x3]
        %v2779 = vld [vmem:[%s1944 + $0x20] sm:$0x3]
        %v2780 = vld [vmem:[%s1944 + $0x2c] sm:$0x3]
        %v2781 = vld [vmem:[%s1944 + $0x38] sm:$0x3]
        %v2782 = vld [vmem:[%s1944 + $0x44] sm:$0x3]
        %v2783 = vld [vmem:[%s1944 + $0x50] sm:$0x3]
        %v2784 = vld [vmem:[%s1944 + $0x5c] sm:$0x3]
        %v2785 = vld [vmem:[%s1944 + $0x68] sm:$0x3]
        %v2786 = vld [vmem:[%s1944 + $0x74] sm:$0x3]
        %v2787 = vld [vmem:[%s1944 + $0x80] sm:$0x3]
        %v2788 = vld [vmem:[%s1944 + $0x8c] sm:$0x3]
        %v2789 = vld [vmem:[%s1944 + $0x98] sm:$0x3]
        %v2790 = vld [vmem:[%s1944 + $0xa4] sm:$0x3]
        %v2791 = vld [vmem:[%s1944 + $0xb0] sm:$0x3]
        %v2792 = vld [vmem:[%s1944 + $0xbc] sm:$0x3]
        %v2793 = vld [vmem:[%s1944] sm:$0xc]
        %v2794 = vld [vmem:[%s1944 + $0xc] sm:$0xc]
        %v2795 = vld [vmem:[%s1944 + $0x18] sm:$0xc]
        %v2796 = vld [vmem:[%s1944 + $0x24] sm:$0xc]
        %v2797 = vld [vmem:[%s1944 + $0x30] sm:$0xc]
        %v2798 = vld [vmem:[%s1944 + $0x3c] sm:$0xc]
        %v2799 = vld [vmem:[%s1944 + $0x48] sm:$0xc]
        %v2800 = vld [vmem:[%s1944 + $0x54] sm:$0xc]
        %v2801 = vld [vmem:[%s1944 + $0x60] sm:$0xc]
        %v2802 = vld [vmem:[%s1944 + $0x6c] sm:$0xc]
        %v2803 = vld [vmem:[%s1944 + $0x78] sm:$0xc]
        %v2804 = vld [vmem:[%s1944 + $0x84] sm:$0xc]
        %v2805 = vld [vmem:[%s1944 + $0x90] sm:$0xc]
        %v2806 = vld [vmem:[%s1944 + $0x9c] sm:$0xc]
        %v2807 = vld [vmem:[%s1944 + $0xa8] sm:$0xc]
        %v2808 = vld [vmem:[%s1944 + $0xb4] sm:$0xc]
        %v2809 = vunpack.c.l.bf16 %v2777
        %v2810 = vunpack.c.l.bf16 %v2778
        %v2811 = vunpack.c.l.bf16 %v2779
        %v2812 = vunpack.c.l.bf16 %v2780
        %v2813 = vunpack.c.l.bf16 %v2781
        %v2814 = vunpack.c.l.bf16 %v2782
        %v2815 = vunpack.c.l.bf16 %v2783
        %v2816 = vunpack.c.l.bf16 %v2784
        %v2817 = vunpack.c.l.bf16 %v2785
        %v2818 = vunpack.c.l.bf16 %v2786
        %v2819 = vunpack.c.l.bf16 %v2787
        %v2820 = vunpack.c.l.bf16 %v2788
        %v2821 = vunpack.c.l.bf16 %v2789
        %v2822 = vunpack.c.l.bf16 %v2790
        %v2823 = vunpack.c.l.bf16 %v2791
        %v2824 = vunpack.c.l.bf16 %v2792
        %s2825 = scalar_lea.vmem %s1, 5
        %v2826 = vld [vmem:[%s2825] sm:$0x1]
        %v2828 = vlaneseq
        %v2829 = vshrl.u32 %v2828, 7
        %v2830 = vsub.s32 0, %v2829
        %v2831 = vrot.slane %v2826, %v2830
        %v2833 = vmul.f32 %v2233, %v2831
        %v2834 = vmul.f32 %v1994, %v2831
        %v2835 = vmul.f32 %v2809, %v2831
        %v2836 = vmul.f32 %v2234, %v2831
        %v2837 = vmul.f32 %v1997, %v2831
        %v2838 = vmul.f32 %v2810, %v2831
        %v2839 = vmul.f32 %v2235, %v2831
        %v2840 = vmul.f32 %v2000, %v2831
        %v2841 = vmul.f32 %v2811, %v2831
        %v2842 = vmul.f32 %v2236, %v2831
        %v2843 = vmul.f32 %v2003, %v2831
        %v2844 = vmul.f32 %v2812, %v2831
        %v2845 = vmul.f32 %v2237, %v2831
        %v2846 = vmul.f32 %v2006, %v2831
        %v2847 = vmul.f32 %v2813, %v2831
        %v2848 = vmul.f32 %v2238, %v2831
        %v2849 = vmul.f32 %v2009, %v2831
        %v2850 = vmul.f32 %v2814, %v2831
        %v2851 = vmul.f32 %v2239, %v2831
        %v2852 = vmul.f32 %v2012, %v2831
        %v2853 = vmul.f32 %v2815, %v2831
        %v2854 = vmul.f32 %v2240, %v2831
        %v2855 = vmul.f32 %v2015, %v2831
        %v2856 = vmul.f32 %v2816, %v2831
        %v2857 = vmul.f32 %v2241, %v2831
        %v2858 = vmul.f32 %v2018, %v2831
        %v2859 = vmul.f32 %v2817, %v2831
        %v2860 = vmul.f32 %v2242, %v2831
        %v2861 = vmul.f32 %v2021, %v2831
        %v2862 = vmul.f32 %v2818, %v2831
        %v2863 = vmul.f32 %v2243, %v2831
        %v2864 = vmul.f32 %v2024, %v2831
        %v2865 = vmul.f32 %v2819, %v2831
        %v2866 = vmul.f32 %v2244, %v2831
        %v2867 = vmul.f32 %v2027, %v2831
        %v2868 = vmul.f32 %v2820, %v2831
        %v2869 = vmul.f32 %v2245, %v2831
        %v2870 = vmul.f32 %v2030, %v2831
        %v2871 = vmul.f32 %v2821, %v2831
        %v2872 = vmul.f32 %v2246, %v2831
        %v2873 = vmul.f32 %v2033, %v2831
        %v2874 = vmul.f32 %v2822, %v2831
        %v2875 = vmul.f32 %v2247, %v2831
        %v2876 = vmul.f32 %v2036, %v2831
        %v2877 = vmul.f32 %v2823, %v2831
        %v2878 = vmul.f32 %v2248, %v2831
        %v2879 = vmul.f32 %v2039, %v2831
        %v2880 = vmul.f32 %v2824, %v2831
        %v2929 = vrot.slane %v2833, 2
        %v2930 = vrot.slane %v2834, 2
        %v2931 = vsel %vm1174, %v2929, %v2930
        %v2932 = vrot.slane %v2835, 2
        %v2933 = vsel %vm1174, %v2930, %v2932
        %v2934 = vrot.slane %v2836, 2
        %v2935 = vrot.slane %v2837, 2
        %v2936 = vsel %vm1174, %v2934, %v2935
        %v2937 = vrot.slane %v2838, 2
        %v2938 = vsel %vm1174, %v2935, %v2937
        %v2939 = vrot.slane %v2839, 2
        %v2940 = vrot.slane %v2840, 2
        %v2941 = vsel %vm1174, %v2939, %v2940
        %v2942 = vrot.slane %v2841, 2
        %v2943 = vsel %vm1174, %v2940, %v2942
        %v2944 = vrot.slane %v2842, 2
        %v2945 = vrot.slane %v2843, 2
        %v2946 = vsel %vm1174, %v2944, %v2945
        %v2947 = vrot.slane %v2844, 2
        %v2948 = vsel %vm1174, %v2945, %v2947
        %v2949 = vrot.slane %v2845, 2
        %v2950 = vrot.slane %v2846, 2
        %v2951 = vsel %vm1174, %v2949, %v2950
        %v2952 = vrot.slane %v2847, 2
        %v2953 = vsel %vm1174, %v2950, %v2952
        %v2954 = vrot.slane %v2848, 2
        %v2955 = vrot.slane %v2849, 2
        %v2956 = vsel %vm1174, %v2954, %v2955
        %v2957 = vrot.slane %v2850, 2
        %v2958 = vsel %vm1174, %v2955, %v2957
        %v2959 = vrot.slane %v2851, 2
        %v2960 = vrot.slane %v2852, 2
        %v2961 = vsel %vm1174, %v2959, %v2960
        %v2962 = vrot.slane %v2853, 2
        %v2963 = vsel %vm1174, %v2960, %v2962
        %v2964 = vrot.slane %v2854, 2
        %v2965 = vrot.slane %v2855, 2
        %v2966 = vsel %vm1174, %v2964, %v2965
        %v2967 = vrot.slane %v2856, 2
        %v2968 = vsel %vm1174, %v2965, %v2967
        %v2969 = vrot.slane %v2857, 2
        %v2970 = vrot.slane %v2858, 2
        %v2971 = vsel %vm1174, %v2969, %v2970
        %v2972 = vrot.slane %v2859, 2
        %v2973 = vsel %vm1174, %v2970, %v2972
        %v2974 = vrot.slane %v2860, 2
        %v2975 = vrot.slane %v2861, 2
        %v2976 = vsel %vm1174, %v2974, %v2975
        %v2977 = vrot.slane %v2862, 2
        %v2978 = vsel %vm1174, %v2975, %v2977
        %v2979 = vrot.slane %v2863, 2
        %v2980 = vrot.slane %v2864, 2
        %v2981 = vsel %vm1174, %v2979, %v2980
        %v2982 = vrot.slane %v2865, 2
        %v2983 = vsel %vm1174, %v2980, %v2982
        %v2984 = vrot.slane %v2866, 2
        %v2985 = vrot.slane %v2867, 2
        %v2986 = vsel %vm1174, %v2984, %v2985
        %v2987 = vrot.slane %v2868, 2
        %v2988 = vsel %vm1174, %v2985, %v2987
        %v2989 = vrot.slane %v2869, 2
        %v2990 = vrot.slane %v2870, 2
        %v2991 = vsel %vm1174, %v2989, %v2990
        %v2992 = vrot.slane %v2871, 2
        %v2993 = vsel %vm1174, %v2990, %v2992
        %v2994 = vrot.slane %v2872, 2
        %v2995 = vrot.slane %v2873, 2
        %v2996 = vsel %vm1174, %v2994, %v2995
        %v2997 = vrot.slane %v2874, 2
        %v2998 = vsel %vm1174, %v2995, %v2997
        %v2999 = vrot.slane %v2875, 2
        %v3000 = vrot.slane %v2876, 2
        %v3001 = vsel %vm1174, %v2999, %v3000
        %v3002 = vrot.slane %v2877, 2
        %v3003 = vsel %vm1174, %v3000, %v3002
        %v3004 = vrot.slane %v2878, 2
        %v3005 = vrot.slane %v2879, 2
        %v3006 = vsel %vm1174, %v3004, %v3005
        %v3007 = vrot.slane %v2880, 2
        %v3008 = vsel %vm1174, %v3005, %v3007
        %v3057 = vadd.f32 %v2481, %v2931
        %v3058 = vadd.f32 %v2482, %v2933
        %v3059 = vadd.f32 %v2483, %v2932
        %v3060 = vadd.f32 %v2484, %v2936
        %v3061 = vadd.f32 %v2485, %v2938
        %v3062 = vadd.f32 %v2486, %v2937
        %v3063 = vadd.f32 %v2487, %v2941
        %v3064 = vadd.f32 %v2488, %v2943
        %v3065 = vadd.f32 %v2489, %v2942
        %v3066 = vadd.f32 %v2490, %v2946
        %v3067 = vadd.f32 %v2491, %v2948
        %v3068 = vadd.f32 %v2492, %v2947
        %v3069 = vadd.f32 %v2493, %v2951
        %v3070 = vadd.f32 %v2494, %v2953
        %v3071 = vadd.f32 %v2495, %v2952
        %v3072 = vadd.f32 %v2496, %v2956
        %v3073 = vadd.f32 %v2497, %v2958
        %v3074 = vadd.f32 %v2498, %v2957
        %v3075 = vadd.f32 %v2499, %v2961
        %v3076 = vadd.f32 %v2500, %v2963
        %v3077 = vadd.f32 %v2501, %v2962
        %v3078 = vadd.f32 %v2502, %v2966
        %v3079 = vadd.f32 %v2503, %v2968
        %v3080 = vadd.f32 %v2504, %v2967
        %v3081 = vadd.f32 %v2505, %v2971
        %v3082 = vadd.f32 %v2506, %v2973
        %v3083 = vadd.f32 %v2507, %v2972
        %v3084 = vadd.f32 %v2508, %v2976
        %v3085 = vadd.f32 %v2509, %v2978
        %v3086 = vadd.f32 %v2510, %v2977
        %v3087 = vadd.f32 %v2511, %v2981
        %v3088 = vadd.f32 %v2512, %v2983
        %v3089 = vadd.f32 %v2513, %v2982
        %v3090 = vadd.f32 %v2514, %v2986
        %v3091 = vadd.f32 %v2515, %v2988
        %v3092 = vadd.f32 %v2516, %v2987
        %v3093 = vadd.f32 %v2517, %v2991
        %v3094 = vadd.f32 %v2518, %v2993
        %v3095 = vadd.f32 %v2519, %v2992
        %v3096 = vadd.f32 %v2520, %v2996
        %v3097 = vadd.f32 %v2521, %v2998
        %v3098 = vadd.f32 %v2522, %v2997
        %v3099 = vadd.f32 %v2523, %v3001
        %v3100 = vadd.f32 %v2524, %v3003
        %v3101 = vadd.f32 %v2525, %v3002
        %v3102 = vadd.f32 %v2526, %v3006
        %v3103 = vadd.f32 %v2527, %v3008
        %v3104 = vadd.f32 %v2528, %v3007
        %v3105 = vunpack.c.l.bf16 %v2793
        %v3106 = vunpack.c.l.bf16 %v2794
        %v3107 = vunpack.c.l.bf16 %v2795
        %v3108 = vunpack.c.l.bf16 %v2796
        %v3109 = vunpack.c.l.bf16 %v2797
        %v3110 = vunpack.c.l.bf16 %v2798
        %v3111 = vunpack.c.l.bf16 %v2799
        %v3112 = vunpack.c.l.bf16 %v2800
        %v3113 = vunpack.c.l.bf16 %v2801
        %v3114 = vunpack.c.l.bf16 %v2802
        %v3115 = vunpack.c.l.bf16 %v2803
        %v3116 = vunpack.c.l.bf16 %v2804
        %v3117 = vunpack.c.l.bf16 %v2805
        %v3118 = vunpack.c.l.bf16 %v2806
        %v3119 = vunpack.c.l.bf16 %v2807
        %v3120 = vunpack.c.l.bf16 %v2808
        %s3121 = scalar_lea.vmem %s2, 5
        %v3122 = vld [vmem:[%s3121] sm:$0x1]
        %v3124 = vlaneseq
        %v3125 = vshrl.u32 %v3124, 7
        %v3126 = vsub.s32 0, %v3125
        %v3127 = vrot.slane %v3122, %v3126
        %v3129 = vmul.f32 %v3105, %v3127
        %v3130 = vmul.f32 %v1994, %v3127
        %v3131 = vmul.f32 %v2809, %v3127
        %v3132 = vmul.f32 %v3106, %v3127
        %v3133 = vmul.f32 %v1997, %v3127
        %v3134 = vmul.f32 %v2810, %v3127
        %v3135 = vmul.f32 %v3107, %v3127
        %v3136 = vmul.f32 %v2000, %v3127
        %v3137 = vmul.f32 %v2811, %v3127
        %v3138 = vmul.f32 %v3108, %v3127
        %v3139 = vmul.f32 %v2003, %v3127
        %v3140 = vmul.f32 %v2812, %v3127
        %v3141 = vmul.f32 %v3109, %v3127
        %v3142 = vmul.f32 %v2006, %v3127
        %v3143 = vmul.f32 %v2813, %v3127
        %v3144 = vmul.f32 %v3110, %v3127
        %v3145 = vmul.f32 %v2009, %v3127
        %v3146 = vmul.f32 %v2814, %v3127
        %v3147 = vmul.f32 %v3111, %v3127
        %v3148 = vmul.f32 %v2012, %v3127
        %v3149 = vmul.f32 %v2815, %v3127
        %v3150 = vmul.f32 %v3112, %v3127
        %v3151 = vmul.f32 %v2015, %v3127
        %v3152 = vmul.f32 %v2816, %v3127
        %v3153 = vmul.f32 %v3113, %v3127
        %v3154 = vmul.f32 %v2018, %v3127
        %v3155 = vmul.f32 %v2817, %v3127
        %v3156 = vmul.f32 %v3114, %v3127
        %v3157 = vmul.f32 %v2021, %v3127
        %v3158 = vmul.f32 %v2818, %v3127
        %v3159 = vmul.f32 %v3115, %v3127
        %v3160 = vmul.f32 %v2024, %v3127
        %v3161 = vmul.f32 %v2819, %v3127
        %v3162 = vmul.f32 %v3116, %v3127
        %v3163 = vmul.f32 %v2027, %v3127
        %v3164 = vmul.f32 %v2820, %v3127
        %v3165 = vmul.f32 %v3117, %v3127
        %v3166 = vmul.f32 %v2030, %v3127
        %v3167 = vmul.f32 %v2821, %v3127
        %v3168 = vmul.f32 %v3118, %v3127
        %v3169 = vmul.f32 %v2033, %v3127
        %v3170 = vmul.f32 %v2822, %v3127
        %v3171 = vmul.f32 %v3119, %v3127
        %v3172 = vmul.f32 %v2036, %v3127
        %v3173 = vmul.f32 %v2823, %v3127
        %v3174 = vmul.f32 %v3120, %v3127
        %v3175 = vmul.f32 %v2039, %v3127
        %v3176 = vmul.f32 %v2824, %v3127
        %v3225 = vrot.slane %v3129, 4
        %v3226 = vrot.slane %v3130, 4
        %v3227 = vsel %vm1799, %v3225, %v3226
        %v3228 = vrot.slane %v3131, 4
        %v3229 = vsel %vm1799, %v3226, %v3228
        %v3230 = vrot.slane %v3132, 4
        %v3231 = vrot.slane %v3133, 4
        %v3232 = vsel %vm1799, %v3230, %v3231
        %v3233 = vrot.slane %v3134, 4
        %v3234 = vsel %vm1799, %v3231, %v3233
        %v3235 = vrot.slane %v3135, 4
        %v3236 = vrot.slane %v3136, 4
        %v3237 = vsel %vm1799, %v3235, %v3236
        %v3238 = vrot.slane %v3137, 4
        %v3239 = vsel %vm1799, %v3236, %v3238
        %v3240 = vrot.slane %v3138, 4
        %v3241 = vrot.slane %v3139, 4
        %v3242 = vsel %vm1799, %v3240, %v3241
        %v3243 = vrot.slane %v3140, 4
        %v3244 = vsel %vm1799, %v3241, %v3243
        %v3245 = vrot.slane %v3141, 4
        %v3246 = vrot.slane %v3142, 4
        %v3247 = vsel %vm1799, %v3245, %v3246
        %v3248 = vrot.slane %v3143, 4
        %v3249 = vsel %vm1799, %v3246, %v3248
        %v3250 = vrot.slane %v3144, 4
        %v3251 = vrot.slane %v3145, 4
        %v3252 = vsel %vm1799, %v3250, %v3251
        %v3253 = vrot.slane %v3146, 4
        %v3254 = vsel %vm1799, %v3251, %v3253
        %v3255 = vrot.slane %v3147, 4
        %v3256 = vrot.slane %v3148, 4
        %v3257 = vsel %vm1799, %v3255, %v3256
        %v3258 = vrot.slane %v3149, 4
        %v3259 = vsel %vm1799, %v3256, %v3258
        %v3260 = vrot.slane %v3150, 4
        %v3261 = vrot.slane %v3151, 4
        %v3262 = vsel %vm1799, %v3260, %v3261
        %v3263 = vrot.slane %v3152, 4
        %v3264 = vsel %vm1799, %v3261, %v3263
        %v3265 = vrot.slane %v3153, 4
        %v3266 = vrot.slane %v3154, 4
        %v3267 = vsel %vm1799, %v3265, %v3266
        %v3268 = vrot.slane %v3155, 4
        %v3269 = vsel %vm1799, %v3266, %v3268
        %v3270 = vrot.slane %v3156, 4
        %v3271 = vrot.slane %v3157, 4
        %v3272 = vsel %vm1799, %v3270, %v3271
        %v3273 = vrot.slane %v3158, 4
        %v3274 = vsel %vm1799, %v3271, %v3273
        %v3275 = vrot.slane %v3159, 4
        %v3276 = vrot.slane %v3160, 4
        %v3277 = vsel %vm1799, %v3275, %v3276
        %v3278 = vrot.slane %v3161, 4
        %v3279 = vsel %vm1799, %v3276, %v3278
        %v3280 = vrot.slane %v3162, 4
        %v3281 = vrot.slane %v3163, 4
        %v3282 = vsel %vm1799, %v3280, %v3281
        %v3283 = vrot.slane %v3164, 4
        %v3284 = vsel %vm1799, %v3281, %v3283
        %v3285 = vrot.slane %v3165, 4
        %v3286 = vrot.slane %v3166, 4
        %v3287 = vsel %vm1799, %v3285, %v3286
        %v3288 = vrot.slane %v3167, 4
        %v3289 = vsel %vm1799, %v3286, %v3288
        %v3290 = vrot.slane %v3168, 4
        %v3291 = vrot.slane %v3169, 4
        %v3292 = vsel %vm1799, %v3290, %v3291
        %v3293 = vrot.slane %v3170, 4
        %v3294 = vsel %vm1799, %v3291, %v3293
        %v3295 = vrot.slane %v3171, 4
        %v3296 = vrot.slane %v3172, 4
        %v3297 = vsel %vm1799, %v3295, %v3296
        %v3298 = vrot.slane %v3173, 4
        %v3299 = vsel %vm1799, %v3296, %v3298
        %v3300 = vrot.slane %v3174, 4
        %v3301 = vrot.slane %v3175, 4
        %v3302 = vsel %vm1799, %v3300, %v3301
        %v3303 = vrot.slane %v3176, 4
        %v3304 = vsel %vm1799, %v3301, %v3303
        %v3337 = vadd.f32 %v2745, %v3227
        %v3338 = vadd.f32 %v2746, %v3229
        %v3339 = vadd.f32 %v2747, %v3232
        %v3340 = vadd.f32 %v2748, %v3234
        %v3341 = vadd.f32 %v2749, %v3237
        %v3342 = vadd.f32 %v2750, %v3239
        %v3343 = vadd.f32 %v2751, %v3242
        %v3344 = vadd.f32 %v2752, %v3244
        %v3345 = vadd.f32 %v2753, %v3247
        %v3346 = vadd.f32 %v2754, %v3249
        %v3347 = vadd.f32 %v2755, %v3252
        %v3348 = vadd.f32 %v2756, %v3254
        %v3349 = vadd.f32 %v2757, %v3257
        %v3350 = vadd.f32 %v2758, %v3259
        %v3351 = vadd.f32 %v2759, %v3262
        %v3352 = vadd.f32 %v2760, %v3264
        %v3353 = vadd.f32 %v2761, %v3267
        %v3354 = vadd.f32 %v2762, %v3269
        %v3355 = vadd.f32 %v2763, %v3272
        %v3356 = vadd.f32 %v2764, %v3274
        %v3357 = vadd.f32 %v2765, %v3277
        %v3358 = vadd.f32 %v2766, %v3279
        %v3359 = vadd.f32 %v2767, %v3282
        %v3360 = vadd.f32 %v2768, %v3284
        %v3361 = vadd.f32 %v2769, %v3287
        %v3362 = vadd.f32 %v2770, %v3289
        %v3363 = vadd.f32 %v2771, %v3292
        %v3364 = vadd.f32 %v2772, %v3294
        %v3365 = vadd.f32 %v2773, %v3297
        %v3366 = vadd.f32 %v2774, %v3299
        %v3367 = vadd.f32 %v2775, %v3302
        %v3368 = vadd.f32 %v2776, %v3304
        %s3369 = scalar_lea.vmem %s357, 36
        %v3370 = vld [vmem:[%s3369] sm:$0xf]
        %v3371 = vld [vmem:[%s3369 + $0x4] sm:$0xf]
        %v3372 = vld [vmem:[%s3369 + $0x8] sm:$0x1]
        %v3373 = vld [vmem:[%s3369 + $0xc] sm:$0xf]
        %v3374 = vld [vmem:[%s3369 + $0x10] sm:$0xf]
        %v3375 = vld [vmem:[%s3369 + $0x14] sm:$0x1]
        %v3376 = vld [vmem:[%s3369 + $0x18] sm:$0xf]
        %v3377 = vld [vmem:[%s3369 + $0x1c] sm:$0xf]
        %v3378 = vld [vmem:[%s3369 + $0x20] sm:$0x1]
        %v3379 = vld [vmem:[%s3369 + $0x24] sm:$0xf]
        %v3380 = vld [vmem:[%s3369 + $0x28] sm:$0xf]
        %v3381 = vld [vmem:[%s3369 + $0x2c] sm:$0x1]
        %v3382 = vld [vmem:[%s3369 + $0x30] sm:$0xf]
        %v3383 = vld [vmem:[%s3369 + $0x34] sm:$0xf]
        %v3384 = vld [vmem:[%s3369 + $0x38] sm:$0x1]
        %v3385 = vld [vmem:[%s3369 + $0x3c] sm:$0xf]
        %v3386 = vld [vmem:[%s3369 + $0x40] sm:$0xf]
        %v3387 = vld [vmem:[%s3369 + $0x44] sm:$0x1]
        %v3388 = vld [vmem:[%s3369 + $0x48] sm:$0xf]
        %v3389 = vld [vmem:[%s3369 + $0x4c] sm:$0xf]
        %v3390 = vld [vmem:[%s3369 + $0x50] sm:$0x1]
        %v3391 = vld [vmem:[%s3369 + $0x54] sm:$0xf]
        %v3392 = vld [vmem:[%s3369 + $0x58] sm:$0xf]
        %v3393 = vld [vmem:[%s3369 + $0x5c] sm:$0x1]
        %v3394 = vld [vmem:[%s3369 + $0x60] sm:$0xf]
        %v3395 = vld [vmem:[%s3369 + $0x64] sm:$0xf]
        %v3396 = vld [vmem:[%s3369 + $0x68] sm:$0x1]
        %v3397 = vld [vmem:[%s3369 + $0x6c] sm:$0xf]
        %v3398 = vld [vmem:[%s3369 + $0x70] sm:$0xf]
        %v3399 = vld [vmem:[%s3369 + $0x74] sm:$0x1]
        %v3400 = vld [vmem:[%s3369 + $0x78] sm:$0xf]
        %v3401 = vld [vmem:[%s3369 + $0x7c] sm:$0xf]
        %v3402 = vld [vmem:[%s3369 + $0x80] sm:$0x1]
        %v3403 = vld [vmem:[%s3369 + $0x84] sm:$0xf]
        %v3404 = vld [vmem:[%s3369 + $0x88] sm:$0xf]
        %v3405 = vld [vmem:[%s3369 + $0x8c] sm:$0x1]
        %v3406 = vld [vmem:[%s3369 + $0x90] sm:$0xf]
        %v3407 = vld [vmem:[%s3369 + $0x94] sm:$0xf]
        %v3408 = vld [vmem:[%s3369 + $0x98] sm:$0x1]
        %v3409 = vld [vmem:[%s3369 + $0x9c] sm:$0xf]
        %v3410 = vld [vmem:[%s3369 + $0xa0] sm:$0xf]
        %v3411 = vld [vmem:[%s3369 + $0xa4] sm:$0x1]
        %v3412 = vld [vmem:[%s3369 + $0xa8] sm:$0xf]
        %v3413 = vld [vmem:[%s3369 + $0xac] sm:$0xf]
        %v3414 = vld [vmem:[%s3369 + $0xb0] sm:$0x1]
        %v3415 = vld [vmem:[%s3369 + $0xb4] sm:$0xf]
        %v3416 = vld [vmem:[%s3369 + $0xb8] sm:$0xf]
        %v3417 = vld [vmem:[%s3369 + $0xbc] sm:$0x1]
        %s3418 = scalar_lea.vmem %s357, 48
        %v3419 = vld [vmem:[%s3418] sm:$0xf]
        %v3420 = vld [vmem:[%s3418 + $0x4] sm:$0xf]
        %v3421 = vld [vmem:[%s3418 + $0xc] sm:$0xf]
        %v3422 = vld [vmem:[%s3418 + $0x10] sm:$0xf]
        %v3423 = vld [vmem:[%s3418 + $0x18] sm:$0xf]
        %v3424 = vld [vmem:[%s3418 + $0x1c] sm:$0xf]
        %v3425 = vld [vmem:[%s3418 + $0x24] sm:$0xf]
        %v3426 = vld [vmem:[%s3418 + $0x28] sm:$0xf]
        %v3427 = vld [vmem:[%s3418 + $0x30] sm:$0xf]
        %v3428 = vld [vmem:[%s3418 + $0x34] sm:$0xf]
        %v3429 = vld [vmem:[%s3418 + $0x3c] sm:$0xf]
        %v3430 = vld [vmem:[%s3418 + $0x40] sm:$0xf]
        %v3431 = vld [vmem:[%s3418 + $0x48] sm:$0xf]
        %v3432 = vld [vmem:[%s3418 + $0x4c] sm:$0xf]
        %v3433 = vld [vmem:[%s3418 + $0x54] sm:$0xf]
        %v3434 = vld [vmem:[%s3418 + $0x58] sm:$0xf]
        %v3435 = vld [vmem:[%s3418 + $0x60] sm:$0xf]
        %v3436 = vld [vmem:[%s3418 + $0x64] sm:$0xf]
        %v3437 = vld [vmem:[%s3418 + $0x6c] sm:$0xf]
        %v3438 = vld [vmem:[%s3418 + $0x70] sm:$0xf]
        %v3439 = vld [vmem:[%s3418 + $0x78] sm:$0xf]
        %v3440 = vld [vmem:[%s3418 + $0x7c] sm:$0xf]
        %v3441 = vld [vmem:[%s3418 + $0x84] sm:$0xf]
        %v3442 = vld [vmem:[%s3418 + $0x88] sm:$0xf]
        %v3443 = vld [vmem:[%s3418 + $0x90] sm:$0xf]
        %v3444 = vld [vmem:[%s3418 + $0x94] sm:$0xf]
        %v3445 = vld [vmem:[%s3418 + $0x9c] sm:$0xf]
        %v3446 = vld [vmem:[%s3418 + $0xa0] sm:$0xf]
        %v3447 = vld [vmem:[%s3418 + $0xa8] sm:$0xf]
        %v3448 = vld [vmem:[%s3418 + $0xac] sm:$0xf]
        %v3449 = vld [vmem:[%s3418 + $0xb4] sm:$0xf]
        %v3450 = vld [vmem:[%s3418 + $0xb8] sm:$0xf]
        %v3451 = vunpack.c.l.bf16 %v3370
        %v3452 = vunpack.c.l.bf16 %v3371
        %v3453 = vunpack.c.l.bf16 %v3372
        %v3454 = vunpack.c.l.bf16 %v3373
        %v3455 = vunpack.c.l.bf16 %v3374
        %v3456 = vunpack.c.l.bf16 %v3375
        %v3457 = vunpack.c.l.bf16 %v3376
        %v3458 = vunpack.c.l.bf16 %v3377
        %v3459 = vunpack.c.l.bf16 %v3378
        %v3460 = vunpack.c.l.bf16 %v3379
        %v3461 = vunpack.c.l.bf16 %v3380
        %v3462 = vunpack.c.l.bf16 %v3381
        %v3463 = vunpack.c.l.bf16 %v3382
        %v3464 = vunpack.c.l.bf16 %v3383
        %v3465 = vunpack.c.l.bf16 %v3384
        %v3466 = vunpack.c.l.bf16 %v3385
        %v3467 = vunpack.c.l.bf16 %v3386
        %v3468 = vunpack.c.l.bf16 %v3387
        %v3469 = vunpack.c.l.bf16 %v3388
        %v3470 = vunpack.c.l.bf16 %v3389
        %v3471 = vunpack.c.l.bf16 %v3390
        %v3472 = vunpack.c.l.bf16 %v3391
        %v3473 = vunpack.c.l.bf16 %v3392
        %v3474 = vunpack.c.l.bf16 %v3393
        %v3475 = vunpack.c.l.bf16 %v3394
        %v3476 = vunpack.c.l.bf16 %v3395
        %v3477 = vunpack.c.l.bf16 %v3396
        %v3478 = vunpack.c.l.bf16 %v3397
        %v3479 = vunpack.c.l.bf16 %v3398
        %v3480 = vunpack.c.l.bf16 %v3399
        %v3481 = vunpack.c.l.bf16 %v3400
        %v3482 = vunpack.c.l.bf16 %v3401
        %v3483 = vunpack.c.l.bf16 %v3402
        %v3484 = vunpack.c.l.bf16 %v3403
        %v3485 = vunpack.c.l.bf16 %v3404
        %v3486 = vunpack.c.l.bf16 %v3405
        %v3487 = vunpack.c.l.bf16 %v3406
        %v3488 = vunpack.c.l.bf16 %v3407
        %v3489 = vunpack.c.l.bf16 %v3408
        %v3490 = vunpack.c.l.bf16 %v3409
        %v3491 = vunpack.c.l.bf16 %v3410
        %v3492 = vunpack.c.l.bf16 %v3411
        %v3493 = vunpack.c.l.bf16 %v3412
        %v3494 = vunpack.c.l.bf16 %v3413
        %v3495 = vunpack.c.l.bf16 %v3414
        %v3496 = vunpack.c.l.bf16 %v3415
        %v3497 = vunpack.c.l.bf16 %v3416
        %v3498 = vunpack.c.l.bf16 %v3417
        %s3499 = scalar_lea.vmem %s1, 6
        %v3500 = vld [vmem:[%s3499] sm:$0x1]
        %v3502 = vlaneseq
        %v3503 = vshrl.u32 %v3502, 7
        %v3504 = vsub.s32 0, %v3503
        %v3505 = vrot.slane %v3500, %v3504
        %v3507 = vmul.f32 %v3451, %v3505
        %v3508 = vmul.f32 %v3452, %v3505
        %v3509 = vmul.f32 %v3453, %v3505
        %v3510 = vmul.f32 %v3454, %v3505
        %v3511 = vmul.f32 %v3455, %v3505
        %v3512 = vmul.f32 %v3456, %v3505
        %v3513 = vmul.f32 %v3457, %v3505
        %v3514 = vmul.f32 %v3458, %v3505
        %v3515 = vmul.f32 %v3459, %v3505
        %v3516 = vmul.f32 %v3460, %v3505
        %v3517 = vmul.f32 %v3461, %v3505
        %v3518 = vmul.f32 %v3462, %v3505
        %v3519 = vmul.f32 %v3463, %v3505
        %v3520 = vmul.f32 %v3464, %v3505
        %v3521 = vmul.f32 %v3465, %v3505
        %v3522 = vmul.f32 %v3466, %v3505
        %v3523 = vmul.f32 %v3467, %v3505
        %v3524 = vmul.f32 %v3468, %v3505
        %v3525 = vmul.f32 %v3469, %v3505
        %v3526 = vmul.f32 %v3470, %v3505
        %v3527 = vmul.f32 %v3471, %v3505
        %v3528 = vmul.f32 %v3472, %v3505
        %v3529 = vmul.f32 %v3473, %v3505
        %v3530 = vmul.f32 %v3474, %v3505
        %v3531 = vmul.f32 %v3475, %v3505
        %v3532 = vmul.f32 %v3476, %v3505
        %v3533 = vmul.f32 %v3477, %v3505
        %v3534 = vmul.f32 %v3478, %v3505
        %v3535 = vmul.f32 %v3479, %v3505
        %v3536 = vmul.f32 %v3480, %v3505
        %v3537 = vmul.f32 %v3481, %v3505
        %v3538 = vmul.f32 %v3482, %v3505
        %v3539 = vmul.f32 %v3483, %v3505
        %v3540 = vmul.f32 %v3484, %v3505
        %v3541 = vmul.f32 %v3485, %v3505
        %v3542 = vmul.f32 %v3486, %v3505
        %v3543 = vmul.f32 %v3487, %v3505
        %v3544 = vmul.f32 %v3488, %v3505
        %v3545 = vmul.f32 %v3489, %v3505
        %v3546 = vmul.f32 %v3490, %v3505
        %v3547 = vmul.f32 %v3491, %v3505
        %v3548 = vmul.f32 %v3492, %v3505
        %v3549 = vmul.f32 %v3493, %v3505
        %v3550 = vmul.f32 %v3494, %v3505
        %v3551 = vmul.f32 %v3495, %v3505
        %v3552 = vmul.f32 %v3496, %v3505
        %v3553 = vmul.f32 %v3497, %v3505
        %v3554 = vmul.f32 %v3498, %v3505
        %v3555 = vadd.f32 %v3057, %v3507
        %v3556 = vadd.f32 %v3058, %v3508
        %v3557 = vadd.f32 %v3059, %v3509
        %v3558 = vadd.f32 %v3060, %v3510
        %v3559 = vadd.f32 %v3061, %v3511
        %v3560 = vadd.f32 %v3062, %v3512
        %v3561 = vadd.f32 %v3063, %v3513
        %v3562 = vadd.f32 %v3064, %v3514
        %v3563 = vadd.f32 %v3065, %v3515
        %v3564 = vadd.f32 %v3066, %v3516
        %v3565 = vadd.f32 %v3067, %v3517
        %v3566 = vadd.f32 %v3068, %v3518
        %v3567 = vadd.f32 %v3069, %v3519
        %v3568 = vadd.f32 %v3070, %v3520
        %v3569 = vadd.f32 %v3071, %v3521
        %v3570 = vadd.f32 %v3072, %v3522
        %v3571 = vadd.f32 %v3073, %v3523
        %v3572 = vadd.f32 %v3074, %v3524
        %v3573 = vadd.f32 %v3075, %v3525
        %v3574 = vadd.f32 %v3076, %v3526
        %v3575 = vadd.f32 %v3077, %v3527
        %v3576 = vadd.f32 %v3078, %v3528
        %v3577 = vadd.f32 %v3079, %v3529
        %v3578 = vadd.f32 %v3080, %v3530
        %v3579 = vadd.f32 %v3081, %v3531
        %v3580 = vadd.f32 %v3082, %v3532
        %v3581 = vadd.f32 %v3083, %v3533
        %v3582 = vadd.f32 %v3084, %v3534
        %v3583 = vadd.f32 %v3085, %v3535
        %v3584 = vadd.f32 %v3086, %v3536
        %v3585 = vadd.f32 %v3087, %v3537
        %v3586 = vadd.f32 %v3088, %v3538
        %v3587 = vadd.f32 %v3089, %v3539
        %v3588 = vadd.f32 %v3090, %v3540
        %v3589 = vadd.f32 %v3091, %v3541
        %v3590 = vadd.f32 %v3092, %v3542
        %v3591 = vadd.f32 %v3093, %v3543
        %v3592 = vadd.f32 %v3094, %v3544
        %v3593 = vadd.f32 %v3095, %v3545
        %v3594 = vadd.f32 %v3096, %v3546
        %v3595 = vadd.f32 %v3097, %v3547
        %v3596 = vadd.f32 %v3098, %v3548
        %v3597 = vadd.f32 %v3099, %v3549
        %v3598 = vadd.f32 %v3100, %v3550
        %v3599 = vadd.f32 %v3101, %v3551
        %v3600 = vadd.f32 %v3102, %v3552
        %v3601 = vadd.f32 %v3103, %v3553
        %v3602 = vadd.f32 %v3104, %v3554
        %v3603 = vunpack.c.l.bf16 %v3419
        %v3604 = vunpack.c.l.bf16 %v3420
        %v3605 = vunpack.c.l.bf16 %v3421
        %v3606 = vunpack.c.l.bf16 %v3422
        %v3607 = vunpack.c.l.bf16 %v3423
        %v3608 = vunpack.c.l.bf16 %v3424
        %v3609 = vunpack.c.l.bf16 %v3425
        %v3610 = vunpack.c.l.bf16 %v3426
        %v3611 = vunpack.c.l.bf16 %v3427
        %v3612 = vunpack.c.l.bf16 %v3428
        %v3613 = vunpack.c.l.bf16 %v3429
        %v3614 = vunpack.c.l.bf16 %v3430
        %v3615 = vunpack.c.l.bf16 %v3431
        %v3616 = vunpack.c.l.bf16 %v3432
        %v3617 = vunpack.c.l.bf16 %v3433
        %v3618 = vunpack.c.l.bf16 %v3434
        %v3619 = vunpack.c.l.bf16 %v3435
        %v3620 = vunpack.c.l.bf16 %v3436
        %v3621 = vunpack.c.l.bf16 %v3437
        %v3622 = vunpack.c.l.bf16 %v3438
        %v3623 = vunpack.c.l.bf16 %v3439
        %v3624 = vunpack.c.l.bf16 %v3440
        %v3625 = vunpack.c.l.bf16 %v3441
        %v3626 = vunpack.c.l.bf16 %v3442
        %v3627 = vunpack.c.l.bf16 %v3443
        %v3628 = vunpack.c.l.bf16 %v3444
        %v3629 = vunpack.c.l.bf16 %v3445
        %v3630 = vunpack.c.l.bf16 %v3446
        %v3631 = vunpack.c.l.bf16 %v3447
        %v3632 = vunpack.c.l.bf16 %v3448
        %v3633 = vunpack.c.l.bf16 %v3449
        %v3634 = vunpack.c.l.bf16 %v3450
        %s3635 = scalar_lea.vmem %s2, 6
        %v3636 = vld [vmem:[%s3635] sm:$0x1]
        %v3638 = vlaneseq
        %v3639 = vshrl.u32 %v3638, 7
        %v3640 = vsub.s32 0, %v3639
        %v3641 = vrot.slane %v3636, %v3640
        %v3643 = vmul.f32 %v3603, %v3641
        %v3644 = vmul.f32 %v3604, %v3641
        %v3645 = vmul.f32 %v3605, %v3641
        %v3646 = vmul.f32 %v3606, %v3641
        %v3647 = vmul.f32 %v3607, %v3641
        %v3648 = vmul.f32 %v3608, %v3641
        %v3649 = vmul.f32 %v3609, %v3641
        %v3650 = vmul.f32 %v3610, %v3641
        %v3651 = vmul.f32 %v3611, %v3641
        %v3652 = vmul.f32 %v3612, %v3641
        %v3653 = vmul.f32 %v3613, %v3641
        %v3654 = vmul.f32 %v3614, %v3641
        %v3655 = vmul.f32 %v3615, %v3641
        %v3656 = vmul.f32 %v3616, %v3641
        %v3657 = vmul.f32 %v3617, %v3641
        %v3658 = vmul.f32 %v3618, %v3641
        %v3659 = vmul.f32 %v3619, %v3641
        %v3660 = vmul.f32 %v3620, %v3641
        %v3661 = vmul.f32 %v3621, %v3641
        %v3662 = vmul.f32 %v3622, %v3641
        %v3663 = vmul.f32 %v3623, %v3641
        %v3664 = vmul.f32 %v3624, %v3641
        %v3665 = vmul.f32 %v3625, %v3641
        %v3666 = vmul.f32 %v3626, %v3641
        %v3667 = vmul.f32 %v3627, %v3641
        %v3668 = vmul.f32 %v3628, %v3641
        %v3669 = vmul.f32 %v3629, %v3641
        %v3670 = vmul.f32 %v3630, %v3641
        %v3671 = vmul.f32 %v3631, %v3641
        %v3672 = vmul.f32 %v3632, %v3641
        %v3673 = vmul.f32 %v3633, %v3641
        %v3674 = vmul.f32 %v3634, %v3641
        %v3675 = vadd.f32 %v3337, %v3643
        %v3676 = vadd.f32 %v3338, %v3644
        %v3677 = vadd.f32 %v3339, %v3645
        %v3678 = vadd.f32 %v3340, %v3646
        %v3679 = vadd.f32 %v3341, %v3647
        %v3680 = vadd.f32 %v3342, %v3648
        %v3681 = vadd.f32 %v3343, %v3649
        %v3682 = vadd.f32 %v3344, %v3650
        %v3683 = vadd.f32 %v3345, %v3651
        %v3684 = vadd.f32 %v3346, %v3652
        %v3685 = vadd.f32 %v3347, %v3653
        %v3686 = vadd.f32 %v3348, %v3654
        %v3687 = vadd.f32 %v3349, %v3655
        %v3688 = vadd.f32 %v3350, %v3656
        %v3689 = vadd.f32 %v3351, %v3657
        %v3690 = vadd.f32 %v3352, %v3658
        %v3691 = vadd.f32 %v3353, %v3659
        %v3692 = vadd.f32 %v3354, %v3660
        %v3693 = vadd.f32 %v3355, %v3661
        %v3694 = vadd.f32 %v3356, %v3662
        %v3695 = vadd.f32 %v3357, %v3663
        %v3696 = vadd.f32 %v3358, %v3664
        %v3697 = vadd.f32 %v3359, %v3665
        %v3698 = vadd.f32 %v3360, %v3666
        %v3699 = vadd.f32 %v3361, %v3667
        %v3700 = vadd.f32 %v3362, %v3668
        %v3701 = vadd.f32 %v3363, %v3669
        %v3702 = vadd.f32 %v3364, %v3670
        %v3703 = vadd.f32 %v3365, %v3671
        %v3704 = vadd.f32 %v3366, %v3672
        %v3705 = vadd.f32 %v3367, %v3673
        %v3706 = vadd.f32 %v3368, %v3674
        %v3707 = vld [vmem:[%s3369] sm:$0xe]
        %v3708 = vld [vmem:[%s3369 + $0xc] sm:$0xe]
        %v3709 = vld [vmem:[%s3369 + $0x18] sm:$0xe]
        %v3710 = vld [vmem:[%s3369 + $0x24] sm:$0xe]
        %v3711 = vld [vmem:[%s3369 + $0x30] sm:$0xe]
        %v3712 = vld [vmem:[%s3369 + $0x3c] sm:$0xe]
        %v3713 = vld [vmem:[%s3369 + $0x48] sm:$0xe]
        %v3714 = vld [vmem:[%s3369 + $0x54] sm:$0xe]
        %v3715 = vld [vmem:[%s3369 + $0x60] sm:$0xe]
        %v3716 = vld [vmem:[%s3369 + $0x6c] sm:$0xe]
        %v3717 = vld [vmem:[%s3369 + $0x78] sm:$0xe]
        %v3718 = vld [vmem:[%s3369 + $0x84] sm:$0xe]
        %v3719 = vld [vmem:[%s3369 + $0x90] sm:$0xe]
        %v3720 = vld [vmem:[%s3369 + $0x9c] sm:$0xe]
        %v3721 = vld [vmem:[%s3369 + $0xa8] sm:$0xe]
        %v3722 = vld [vmem:[%s3369 + $0xb4] sm:$0xe]
        %v3723 = vld [vmem:[%s3418] sm:$0xe]
        %v3724 = vld [vmem:[%s3418 + $0x8] sm:$0x1]
        %v3725 = vld [vmem:[%s3418 + $0xc] sm:$0xe]
        %v3726 = vld [vmem:[%s3418 + $0x14] sm:$0x1]
        %v3727 = vld [vmem:[%s3418 + $0x18] sm:$0xe]
        %v3728 = vld [vmem:[%s3418 + $0x20] sm:$0x1]
        %v3729 = vld [vmem:[%s3418 + $0x24] sm:$0xe]
        %v3730 = vld [vmem:[%s3418 + $0x2c] sm:$0x1]
        %v3731 = vld [vmem:[%s3418 + $0x30] sm:$0xe]
        %v3732 = vld [vmem:[%s3418 + $0x38] sm:$0x1]
        %v3733 = vld [vmem:[%s3418 + $0x3c] sm:$0xe]
        %v3734 = vld [vmem:[%s3418 + $0x44] sm:$0x1]
        %v3735 = vld [vmem:[%s3418 + $0x48] sm:$0xe]
        %v3736 = vld [vmem:[%s3418 + $0x50] sm:$0x1]
        %v3737 = vld [vmem:[%s3418 + $0x54] sm:$0xe]
        %v3738 = vld [vmem:[%s3418 + $0x5c] sm:$0x1]
        %v3739 = vld [vmem:[%s3418 + $0x60] sm:$0xe]
        %v3740 = vld [vmem:[%s3418 + $0x68] sm:$0x1]
        %v3741 = vld [vmem:[%s3418 + $0x6c] sm:$0xe]
        %v3742 = vld [vmem:[%s3418 + $0x74] sm:$0x1]
        %v3743 = vld [vmem:[%s3418 + $0x78] sm:$0xe]
        %v3744 = vld [vmem:[%s3418 + $0x80] sm:$0x1]
        %v3745 = vld [vmem:[%s3418 + $0x84] sm:$0xe]
        %v3746 = vld [vmem:[%s3418 + $0x8c] sm:$0x1]
        %v3747 = vld [vmem:[%s3418 + $0x90] sm:$0xe]
        %v3748 = vld [vmem:[%s3418 + $0x98] sm:$0x1]
        %v3749 = vld [vmem:[%s3418 + $0x9c] sm:$0xe]
        %v3750 = vld [vmem:[%s3418 + $0xa4] sm:$0x1]
        %v3751 = vld [vmem:[%s3418 + $0xa8] sm:$0xe]
        %v3752 = vld [vmem:[%s3418 + $0xb0] sm:$0x1]
        %v3753 = vld [vmem:[%s3418 + $0xb4] sm:$0xe]
        %v3754 = vld [vmem:[%s3418 + $0xbc] sm:$0x1]
        %v3755 = vunpack.c.l.bf16 %v3707
        %v3756 = vunpack.c.l.bf16 %v3708
        %v3757 = vunpack.c.l.bf16 %v3709
        %v3758 = vunpack.c.l.bf16 %v3710
        %v3759 = vunpack.c.l.bf16 %v3711
        %v3760 = vunpack.c.l.bf16 %v3712
        %v3761 = vunpack.c.l.bf16 %v3713
        %v3762 = vunpack.c.l.bf16 %v3714
        %v3763 = vunpack.c.l.bf16 %v3715
        %v3764 = vunpack.c.l.bf16 %v3716
        %v3765 = vunpack.c.l.bf16 %v3717
        %v3766 = vunpack.c.l.bf16 %v3718
        %v3767 = vunpack.c.l.bf16 %v3719
        %v3768 = vunpack.c.l.bf16 %v3720
        %v3769 = vunpack.c.l.bf16 %v3721
        %v3770 = vunpack.c.l.bf16 %v3722
        %s3771 = scalar_lea.vmem %s1, 7
        %v3772 = vld [vmem:[%s3771] sm:$0x1]
        %v3774 = vlaneseq
        %v3775 = vshrl.u32 %v3774, 7
        %v3776 = vsub.s32 0, %v3775
        %v3777 = vrot.slane %v3772, %v3776
        %v3779 = vmul.f32 %v3755, %v3777
        %v3780 = vmul.f32 %v3452, %v3777
        %v3781 = vmul.f32 %v3453, %v3777
        %v3782 = vmul.f32 %v3756, %v3777
        %v3783 = vmul.f32 %v3455, %v3777
        %v3784 = vmul.f32 %v3456, %v3777
        %v3785 = vmul.f32 %v3757, %v3777
        %v3786 = vmul.f32 %v3458, %v3777
        %v3787 = vmul.f32 %v3459, %v3777
        %v3788 = vmul.f32 %v3758, %v3777
        %v3789 = vmul.f32 %v3461, %v3777
        %v3790 = vmul.f32 %v3462, %v3777
        %v3791 = vmul.f32 %v3759, %v3777
        %v3792 = vmul.f32 %v3464, %v3777
        %v3793 = vmul.f32 %v3465, %v3777
        %v3794 = vmul.f32 %v3760, %v3777
        %v3795 = vmul.f32 %v3467, %v3777
        %v3796 = vmul.f32 %v3468, %v3777
        %v3797 = vmul.f32 %v3761, %v3777
        %v3798 = vmul.f32 %v3470, %v3777
        %v3799 = vmul.f32 %v3471, %v3777
        %v3800 = vmul.f32 %v3762, %v3777
        %v3801 = vmul.f32 %v3473, %v3777
        %v3802 = vmul.f32 %v3474, %v3777
        %v3803 = vmul.f32 %v3763, %v3777
        %v3804 = vmul.f32 %v3476, %v3777
        %v3805 = vmul.f32 %v3477, %v3777
        %v3806 = vmul.f32 %v3764, %v3777
        %v3807 = vmul.f32 %v3479, %v3777
        %v3808 = vmul.f32 %v3480, %v3777
        %v3809 = vmul.f32 %v3765, %v3777
        %v3810 = vmul.f32 %v3482, %v3777
        %v3811 = vmul.f32 %v3483, %v3777
        %v3812 = vmul.f32 %v3766, %v3777
        %v3813 = vmul.f32 %v3485, %v3777
        %v3814 = vmul.f32 %v3486, %v3777
        %v3815 = vmul.f32 %v3767, %v3777
        %v3816 = vmul.f32 %v3488, %v3777
        %v3817 = vmul.f32 %v3489, %v3777
        %v3818 = vmul.f32 %v3768, %v3777
        %v3819 = vmul.f32 %v3491, %v3777
        %v3820 = vmul.f32 %v3492, %v3777
        %v3821 = vmul.f32 %v3769, %v3777
        %v3822 = vmul.f32 %v3494, %v3777
        %v3823 = vmul.f32 %v3495, %v3777
        %v3824 = vmul.f32 %v3770, %v3777
        %v3825 = vmul.f32 %v3497, %v3777
        %v3826 = vmul.f32 %v3498, %v3777
        %v3875 = vrot.slane %v3779, 1
        %v3876 = vrot.slane %v3780, 1
        %v3877 = vsel %vm861, %v3875, %v3876
        %v3878 = vrot.slane %v3781, 1
        %v3879 = vsel %vm861, %v3876, %v3878
        %v3880 = vrot.slane %v3782, 1
        %v3881 = vrot.slane %v3783, 1
        %v3882 = vsel %vm861, %v3880, %v3881
        %v3883 = vrot.slane %v3784, 1
        %v3884 = vsel %vm861, %v3881, %v3883
        %v3885 = vrot.slane %v3785, 1
        %v3886 = vrot.slane %v3786, 1
        %v3887 = vsel %vm861, %v3885, %v3886
        %v3888 = vrot.slane %v3787, 1
        %v3889 = vsel %vm861, %v3886, %v3888
        %v3890 = vrot.slane %v3788, 1
        %v3891 = vrot.slane %v3789, 1
        %v3892 = vsel %vm861, %v3890, %v3891
        %v3893 = vrot.slane %v3790, 1
        %v3894 = vsel %vm861, %v3891, %v3893
        %v3895 = vrot.slane %v3791, 1
        %v3896 = vrot.slane %v3792, 1
        %v3897 = vsel %vm861, %v3895, %v3896
        %v3898 = vrot.slane %v3793, 1
        %v3899 = vsel %vm861, %v3896, %v3898
        %v3900 = vrot.slane %v3794, 1
        %v3901 = vrot.slane %v3795, 1
        %v3902 = vsel %vm861, %v3900, %v3901
        %v3903 = vrot.slane %v3796, 1
        %v3904 = vsel %vm861, %v3901, %v3903
        %v3905 = vrot.slane %v3797, 1
        %v3906 = vrot.slane %v3798, 1
        %v3907 = vsel %vm861, %v3905, %v3906
        %v3908 = vrot.slane %v3799, 1
        %v3909 = vsel %vm861, %v3906, %v3908
        %v3910 = vrot.slane %v3800, 1
        %v3911 = vrot.slane %v3801, 1
        %v3912 = vsel %vm861, %v3910, %v3911
        %v3913 = vrot.slane %v3802, 1
        %v3914 = vsel %vm861, %v3911, %v3913
        %v3915 = vrot.slane %v3803, 1
        %v3916 = vrot.slane %v3804, 1
        %v3917 = vsel %vm861, %v3915, %v3916
        %v3918 = vrot.slane %v3805, 1
        %v3919 = vsel %vm861, %v3916, %v3918
        %v3920 = vrot.slane %v3806, 1
        %v3921 = vrot.slane %v3807, 1
        %v3922 = vsel %vm861, %v3920, %v3921
        %v3923 = vrot.slane %v3808, 1
        %v3924 = vsel %vm861, %v3921, %v3923
        %v3925 = vrot.slane %v3809, 1
        %v3926 = vrot.slane %v3810, 1
        %v3927 = vsel %vm861, %v3925, %v3926
        %v3928 = vrot.slane %v3811, 1
        %v3929 = vsel %vm861, %v3926, %v3928
        %v3930 = vrot.slane %v3812, 1
        %v3931 = vrot.slane %v3813, 1
        %v3932 = vsel %vm861, %v3930, %v3931
        %v3933 = vrot.slane %v3814, 1
        %v3934 = vsel %vm861, %v3931, %v3933
        %v3935 = vrot.slane %v3815, 1
        %v3936 = vrot.slane %v3816, 1
        %v3937 = vsel %vm861, %v3935, %v3936
        %v3938 = vrot.slane %v3817, 1
        %v3939 = vsel %vm861, %v3936, %v3938
        %v3940 = vrot.slane %v3818, 1
        %v3941 = vrot.slane %v3819, 1
        %v3942 = vsel %vm861, %v3940, %v3941
        %v3943 = vrot.slane %v3820, 1
        %v3944 = vsel %vm861, %v3941, %v3943
        %v3945 = vrot.slane %v3821, 1
        %v3946 = vrot.slane %v3822, 1
        %v3947 = vsel %vm861, %v3945, %v3946
        %v3948 = vrot.slane %v3823, 1
        %v3949 = vsel %vm861, %v3946, %v3948
        %v3950 = vrot.slane %v3824, 1
        %v3951 = vrot.slane %v3825, 1
        %v3952 = vsel %vm861, %v3950, %v3951
        %v3953 = vrot.slane %v3826, 1
        %v3954 = vsel %vm861, %v3951, %v3953
        %v4003 = vadd.f32 %v3555, %v3877
        %v4004 = vadd.f32 %v3556, %v3879
        %v4005 = vadd.f32 %v3557, %v3878
        %v4006 = vadd.f32 %v3558, %v3882
        %v4007 = vadd.f32 %v3559, %v3884
        %v4008 = vadd.f32 %v3560, %v3883
        %v4009 = vadd.f32 %v3561, %v3887
        %v4010 = vadd.f32 %v3562, %v3889
        %v4011 = vadd.f32 %v3563, %v3888
        %v4012 = vadd.f32 %v3564, %v3892
        %v4013 = vadd.f32 %v3565, %v3894
        %v4014 = vadd.f32 %v3566, %v3893
        %v4015 = vadd.f32 %v3567, %v3897
        %v4016 = vadd.f32 %v3568, %v3899
        %v4017 = vadd.f32 %v3569, %v3898
        %v4018 = vadd.f32 %v3570, %v3902
        %v4019 = vadd.f32 %v3571, %v3904
        %v4020 = vadd.f32 %v3572, %v3903
        %v4021 = vadd.f32 %v3573, %v3907
        %v4022 = vadd.f32 %v3574, %v3909
        %v4023 = vadd.f32 %v3575, %v3908
        %v4024 = vadd.f32 %v3576, %v3912
        %v4025 = vadd.f32 %v3577, %v3914
        %v4026 = vadd.f32 %v3578, %v3913
        %v4027 = vadd.f32 %v3579, %v3917
        %v4028 = vadd.f32 %v3580, %v3919
        %v4029 = vadd.f32 %v3581, %v3918
        %v4030 = vadd.f32 %v3582, %v3922
        %v4031 = vadd.f32 %v3583, %v3924
        %v4032 = vadd.f32 %v3584, %v3923
        %v4033 = vadd.f32 %v3585, %v3927
        %v4034 = vadd.f32 %v3586, %v3929
        %v4035 = vadd.f32 %v3587, %v3928
        %v4036 = vadd.f32 %v3588, %v3932
        %v4037 = vadd.f32 %v3589, %v3934
        %v4038 = vadd.f32 %v3590, %v3933
        %v4039 = vadd.f32 %v3591, %v3937
        %v4040 = vadd.f32 %v3592, %v3939
        %v4041 = vadd.f32 %v3593, %v3938
        %v4042 = vadd.f32 %v3594, %v3942
        %v4043 = vadd.f32 %v3595, %v3944
        %v4044 = vadd.f32 %v3596, %v3943
        %v4045 = vadd.f32 %v3597, %v3947
        %v4046 = vadd.f32 %v3598, %v3949
        %v4047 = vadd.f32 %v3599, %v3948
        %v4048 = vadd.f32 %v3600, %v3952
        %v4049 = vadd.f32 %v3601, %v3954
        %v4050 = vadd.f32 %v3602, %v3953
        %v4051 = vunpack.c.l.bf16 %v3723
        %v4052 = vunpack.c.l.bf16 %v3724
        %v4053 = vunpack.c.l.bf16 %v3725
        %v4054 = vunpack.c.l.bf16 %v3726
        %v4055 = vunpack.c.l.bf16 %v3727
        %v4056 = vunpack.c.l.bf16 %v3728
        %v4057 = vunpack.c.l.bf16 %v3729
        %v4058 = vunpack.c.l.bf16 %v3730
        %v4059 = vunpack.c.l.bf16 %v3731
        %v4060 = vunpack.c.l.bf16 %v3732
        %v4061 = vunpack.c.l.bf16 %v3733
        %v4062 = vunpack.c.l.bf16 %v3734
        %v4063 = vunpack.c.l.bf16 %v3735
        %v4064 = vunpack.c.l.bf16 %v3736
        %v4065 = vunpack.c.l.bf16 %v3737
        %v4066 = vunpack.c.l.bf16 %v3738
        %v4067 = vunpack.c.l.bf16 %v3739
        %v4068 = vunpack.c.l.bf16 %v3740
        %v4069 = vunpack.c.l.bf16 %v3741
        %v4070 = vunpack.c.l.bf16 %v3742
        %v4071 = vunpack.c.l.bf16 %v3743
        %v4072 = vunpack.c.l.bf16 %v3744
        %v4073 = vunpack.c.l.bf16 %v3745
        %v4074 = vunpack.c.l.bf16 %v3746
        %v4075 = vunpack.c.l.bf16 %v3747
        %v4076 = vunpack.c.l.bf16 %v3748
        %v4077 = vunpack.c.l.bf16 %v3749
        %v4078 = vunpack.c.l.bf16 %v3750
        %v4079 = vunpack.c.l.bf16 %v3751
        %v4080 = vunpack.c.l.bf16 %v3752
        %v4081 = vunpack.c.l.bf16 %v3753
        %v4082 = vunpack.c.l.bf16 %v3754
        %s4083 = scalar_lea.vmem %s2, 7
        %v4084 = vld [vmem:[%s4083] sm:$0x1]
        %v4086 = vlaneseq
        %v4087 = vshrl.u32 %v4086, 7
        %v4088 = vsub.s32 0, %v4087
        %v4089 = vrot.slane %v4084, %v4088
        %v4091 = vmul.f32 %v4051, %v4089
        %v4092 = vmul.f32 %v3604, %v4089
        %v4093 = vmul.f32 %v4052, %v4089
        %v4094 = vmul.f32 %v4053, %v4089
        %v4095 = vmul.f32 %v3606, %v4089
        %v4096 = vmul.f32 %v4054, %v4089
        %v4097 = vmul.f32 %v4055, %v4089
        %v4098 = vmul.f32 %v3608, %v4089
        %v4099 = vmul.f32 %v4056, %v4089
        %v4100 = vmul.f32 %v4057, %v4089
        %v4101 = vmul.f32 %v3610, %v4089
        %v4102 = vmul.f32 %v4058, %v4089
        %v4103 = vmul.f32 %v4059, %v4089
        %v4104 = vmul.f32 %v3612, %v4089
        %v4105 = vmul.f32 %v4060, %v4089
        %v4106 = vmul.f32 %v4061, %v4089
        %v4107 = vmul.f32 %v3614, %v4089
        %v4108 = vmul.f32 %v4062, %v4089
        %v4109 = vmul.f32 %v4063, %v4089
        %v4110 = vmul.f32 %v3616, %v4089
        %v4111 = vmul.f32 %v4064, %v4089
        %v4112 = vmul.f32 %v4065, %v4089
        %v4113 = vmul.f32 %v3618, %v4089
        %v4114 = vmul.f32 %v4066, %v4089
        %v4115 = vmul.f32 %v4067, %v4089
        %v4116 = vmul.f32 %v3620, %v4089
        %v4117 = vmul.f32 %v4068, %v4089
        %v4118 = vmul.f32 %v4069, %v4089
        %v4119 = vmul.f32 %v3622, %v4089
        %v4120 = vmul.f32 %v4070, %v4089
        %v4121 = vmul.f32 %v4071, %v4089
        %v4122 = vmul.f32 %v3624, %v4089
        %v4123 = vmul.f32 %v4072, %v4089
        %v4124 = vmul.f32 %v4073, %v4089
        %v4125 = vmul.f32 %v3626, %v4089
        %v4126 = vmul.f32 %v4074, %v4089
        %v4127 = vmul.f32 %v4075, %v4089
        %v4128 = vmul.f32 %v3628, %v4089
        %v4129 = vmul.f32 %v4076, %v4089
        %v4130 = vmul.f32 %v4077, %v4089
        %v4131 = vmul.f32 %v3630, %v4089
        %v4132 = vmul.f32 %v4078, %v4089
        %v4133 = vmul.f32 %v4079, %v4089
        %v4134 = vmul.f32 %v3632, %v4089
        %v4135 = vmul.f32 %v4080, %v4089
        %v4136 = vmul.f32 %v4081, %v4089
        %v4137 = vmul.f32 %v3634, %v4089
        %v4138 = vmul.f32 %v4082, %v4089
        %v4187 = vrot.slane %v4091, 2
        %v4188 = vrot.slane %v4092, 2
        %v4189 = vsel %vm1174, %v4187, %v4188
        %v4190 = vrot.slane %v4093, 2
        %v4191 = vsel %vm1174, %v4188, %v4190
        %v4192 = vrot.slane %v4094, 2
        %v4193 = vrot.slane %v4095, 2
        %v4194 = vsel %vm1174, %v4192, %v4193
        %v4195 = vrot.slane %v4096, 2
        %v4196 = vsel %vm1174, %v4193, %v4195
        %v4197 = vrot.slane %v4097, 2
        %v4198 = vrot.slane %v4098, 2
        %v4199 = vsel %vm1174, %v4197, %v4198
        %v4200 = vrot.slane %v4099, 2
        %v4201 = vsel %vm1174, %v4198, %v4200
        %v4202 = vrot.slane %v4100, 2
        %v4203 = vrot.slane %v4101, 2
        %v4204 = vsel %vm1174, %v4202, %v4203
        %v4205 = vrot.slane %v4102, 2
        %v4206 = vsel %vm1174, %v4203, %v4205
        %v4207 = vrot.slane %v4103, 2
        %v4208 = vrot.slane %v4104, 2
        %v4209 = vsel %vm1174, %v4207, %v4208
        %v4210 = vrot.slane %v4105, 2
        %v4211 = vsel %vm1174, %v4208, %v4210
        %v4212 = vrot.slane %v4106, 2
        %v4213 = vrot.slane %v4107, 2
        %v4214 = vsel %vm1174, %v4212, %v4213
        %v4215 = vrot.slane %v4108, 2
        %v4216 = vsel %vm1174, %v4213, %v4215
        %v4217 = vrot.slane %v4109, 2
        %v4218 = vrot.slane %v4110, 2
        %v4219 = vsel %vm1174, %v4217, %v4218
        %v4220 = vrot.slane %v4111, 2
        %v4221 = vsel %vm1174, %v4218, %v4220
        %v4222 = vrot.slane %v4112, 2
        %v4223 = vrot.slane %v4113, 2
        %v4224 = vsel %vm1174, %v4222, %v4223
        %v4225 = vrot.slane %v4114, 2
        %v4226 = vsel %vm1174, %v4223, %v4225
        %v4227 = vrot.slane %v4115, 2
        %v4228 = vrot.slane %v4116, 2
        %v4229 = vsel %vm1174, %v4227, %v4228
        %v4230 = vrot.slane %v4117, 2
        %v4231 = vsel %vm1174, %v4228, %v4230
        %v4232 = vrot.slane %v4118, 2
        %v4233 = vrot.slane %v4119, 2
        %v4234 = vsel %vm1174, %v4232, %v4233
        %v4235 = vrot.slane %v4120, 2
        %v4236 = vsel %vm1174, %v4233, %v4235
        %v4237 = vrot.slane %v4121, 2
        %v4238 = vrot.slane %v4122, 2
        %v4239 = vsel %vm1174, %v4237, %v4238
        %v4240 = vrot.slane %v4123, 2
        %v4241 = vsel %vm1174, %v4238, %v4240
        %v4242 = vrot.slane %v4124, 2
        %v4243 = vrot.slane %v4125, 2
        %v4244 = vsel %vm1174, %v4242, %v4243
        %v4245 = vrot.slane %v4126, 2
        %v4246 = vsel %vm1174, %v4243, %v4245
        %v4247 = vrot.slane %v4127, 2
        %v4248 = vrot.slane %v4128, 2
        %v4249 = vsel %vm1174, %v4247, %v4248
        %v4250 = vrot.slane %v4129, 2
        %v4251 = vsel %vm1174, %v4248, %v4250
        %v4252 = vrot.slane %v4130, 2
        %v4253 = vrot.slane %v4131, 2
        %v4254 = vsel %vm1174, %v4252, %v4253
        %v4255 = vrot.slane %v4132, 2
        %v4256 = vsel %vm1174, %v4253, %v4255
        %v4257 = vrot.slane %v4133, 2
        %v4258 = vrot.slane %v4134, 2
        %v4259 = vsel %vm1174, %v4257, %v4258
        %v4260 = vrot.slane %v4135, 2
        %v4261 = vsel %vm1174, %v4258, %v4260
        %v4262 = vrot.slane %v4136, 2
        %v4263 = vrot.slane %v4137, 2
        %v4264 = vsel %vm1174, %v4262, %v4263
        %v4265 = vrot.slane %v4138, 2
        %v4266 = vsel %vm1174, %v4263, %v4265
        %v4299 = vadd.f32 %v3675, %v4189
        %v4300 = vadd.f32 %v3676, %v4191
        %v4301 = vadd.f32 %v3677, %v4194
        %v4302 = vadd.f32 %v3678, %v4196
        %v4303 = vadd.f32 %v3679, %v4199
        %v4304 = vadd.f32 %v3680, %v4201
        %v4305 = vadd.f32 %v3681, %v4204
        %v4306 = vadd.f32 %v3682, %v4206
        %v4307 = vadd.f32 %v3683, %v4209
        %v4308 = vadd.f32 %v3684, %v4211
        %v4309 = vadd.f32 %v3685, %v4214
        %v4310 = vadd.f32 %v3686, %v4216
        %v4311 = vadd.f32 %v3687, %v4219
        %v4312 = vadd.f32 %v3688, %v4221
        %v4313 = vadd.f32 %v3689, %v4224
        %v4314 = vadd.f32 %v3690, %v4226
        %v4315 = vadd.f32 %v3691, %v4229
        %v4316 = vadd.f32 %v3692, %v4231
        %v4317 = vadd.f32 %v3693, %v4234
        %v4318 = vadd.f32 %v3694, %v4236
        %v4319 = vadd.f32 %v3695, %v4239
        %v4320 = vadd.f32 %v3696, %v4241
        %v4321 = vadd.f32 %v3697, %v4244
        %v4322 = vadd.f32 %v3698, %v4246
        %v4323 = vadd.f32 %v3699, %v4249
        %v4324 = vadd.f32 %v3700, %v4251
        %v4325 = vadd.f32 %v3701, %v4254
        %v4326 = vadd.f32 %v3702, %v4256
        %v4327 = vadd.f32 %v3703, %v4259
        %v4328 = vadd.f32 %v3704, %v4261
        %v4329 = vadd.f32 %v3705, %v4264
        %v4330 = vadd.f32 %v3706, %v4266
        %v4331 = vld [vmem:[%s3369 + $0x8] sm:$0x3]
        %v4332 = vld [vmem:[%s3369 + $0x14] sm:$0x3]
        %v4333 = vld [vmem:[%s3369 + $0x20] sm:$0x3]
        %v4334 = vld [vmem:[%s3369 + $0x2c] sm:$0x3]
        %v4335 = vld [vmem:[%s3369 + $0x38] sm:$0x3]
        %v4336 = vld [vmem:[%s3369 + $0x44] sm:$0x3]
        %v4337 = vld [vmem:[%s3369 + $0x50] sm:$0x3]
        %v4338 = vld [vmem:[%s3369 + $0x5c] sm:$0x3]
        %v4339 = vld [vmem:[%s3369 + $0x68] sm:$0x3]
        %v4340 = vld [vmem:[%s3369 + $0x74] sm:$0x3]
        %v4341 = vld [vmem:[%s3369 + $0x80] sm:$0x3]
        %v4342 = vld [vmem:[%s3369 + $0x8c] sm:$0x3]
        %v4343 = vld [vmem:[%s3369 + $0x98] sm:$0x3]
        %v4344 = vld [vmem:[%s3369 + $0xa4] sm:$0x3]
        %v4345 = vld [vmem:[%s3369 + $0xb0] sm:$0x3]
        %v4346 = vld [vmem:[%s3369 + $0xbc] sm:$0x3]
        %v4347 = vld [vmem:[%s3418] sm:$0xc]
        %v4348 = vld [vmem:[%s3418 + $0x8] sm:$0x3]
        %v4349 = vld [vmem:[%s3418 + $0xc] sm:$0xc]
        %v4350 = vld [vmem:[%s3418 + $0x14] sm:$0x3]
        %v4351 = vld [vmem:[%s3418 + $0x18] sm:$0xc]
        %v4352 = vld [vmem:[%s3418 + $0x20] sm:$0x3]
        %v4353 = vld [vmem:[%s3418 + $0x24] sm:$0xc]
        %v4354 = vld [vmem:[%s3418 + $0x2c] sm:$0x3]
        %v4355 = vld [vmem:[%s3418 + $0x30] sm:$0xc]
        %v4356 = vld [vmem:[%s3418 + $0x38] sm:$0x3]
        %v4357 = vld [vmem:[%s3418 + $0x3c] sm:$0xc]
        %v4358 = vld [vmem:[%s3418 + $0x44] sm:$0x3]
        %v4359 = vld [vmem:[%s3418 + $0x48] sm:$0xc]
        %v4360 = vld [vmem:[%s3418 + $0x50] sm:$0x3]
        %v4361 = vld [vmem:[%s3418 + $0x54] sm:$0xc]
        %v4362 = vld [vmem:[%s3418 + $0x5c] sm:$0x3]
        %v4363 = vld [vmem:[%s3418 + $0x60] sm:$0xc]
        %v4364 = vld [vmem:[%s3418 + $0x68] sm:$0x3]
        %v4365 = vld [vmem:[%s3418 + $0x6c] sm:$0xc]
        %v4366 = vld [vmem:[%s3418 + $0x74] sm:$0x3]
        %v4367 = vld [vmem:[%s3418 + $0x78] sm:$0xc]
        %v4368 = vld [vmem:[%s3418 + $0x80] sm:$0x3]
        %v4369 = vld [vmem:[%s3418 + $0x84] sm:$0xc]
        %v4370 = vld [vmem:[%s3418 + $0x8c] sm:$0x3]
        %v4371 = vld [vmem:[%s3418 + $0x90] sm:$0xc]
        %v4372 = vld [vmem:[%s3418 + $0x98] sm:$0x3]
        %v4373 = vld [vmem:[%s3418 + $0x9c] sm:$0xc]
        %v4374 = vld [vmem:[%s3418 + $0xa4] sm:$0x3]
        %v4375 = vld [vmem:[%s3418 + $0xa8] sm:$0xc]
        %v4376 = vld [vmem:[%s3418 + $0xb0] sm:$0x3]
        %v4377 = vld [vmem:[%s3418 + $0xb4] sm:$0xc]
        %v4378 = vld [vmem:[%s3418 + $0xbc] sm:$0x3]
        %v4379 = vunpack.c.l.bf16 %v4331
        %v4380 = vunpack.c.l.bf16 %v4332
        %v4381 = vunpack.c.l.bf16 %v4333
        %v4382 = vunpack.c.l.bf16 %v4334
        %v4383 = vunpack.c.l.bf16 %v4335
        %v4384 = vunpack.c.l.bf16 %v4336
        %v4385 = vunpack.c.l.bf16 %v4337
        %v4386 = vunpack.c.l.bf16 %v4338
        %v4387 = vunpack.c.l.bf16 %v4339
        %v4388 = vunpack.c.l.bf16 %v4340
        %v4389 = vunpack.c.l.bf16 %v4341
        %v4390 = vunpack.c.l.bf16 %v4342
        %v4391 = vunpack.c.l.bf16 %v4343
        %v4392 = vunpack.c.l.bf16 %v4344
        %v4393 = vunpack.c.l.bf16 %v4345
        %v4394 = vunpack.c.l.bf16 %v4346
        %s4395 = scalar_lea.vmem %s1, 8
        %v4396 = vld [vmem:[%s4395] sm:$0x1]
        %v4398 = vlaneseq
        %v4399 = vshrl.u32 %v4398, 7
        %v4400 = vsub.s32 0, %v4399
        %v4401 = vrot.slane %v4396, %v4400
        %v4403 = vmul.f32 %v3755, %v4401
        %v4404 = vmul.f32 %v3452, %v4401
        %v4405 = vmul.f32 %v4379, %v4401
        %v4406 = vmul.f32 %v3756, %v4401
        %v4407 = vmul.f32 %v3455, %v4401
        %v4408 = vmul.f32 %v4380, %v4401
        %v4409 = vmul.f32 %v3757, %v4401
        %v4410 = vmul.f32 %v3458, %v4401
        %v4411 = vmul.f32 %v4381, %v4401
        %v4412 = vmul.f32 %v3758, %v4401
        %v4413 = vmul.f32 %v3461, %v4401
        %v4414 = vmul.f32 %v4382, %v4401
        %v4415 = vmul.f32 %v3759, %v4401
        %v4416 = vmul.f32 %v3464, %v4401
        %v4417 = vmul.f32 %v4383, %v4401
        %v4418 = vmul.f32 %v3760, %v4401
        %v4419 = vmul.f32 %v3467, %v4401
        %v4420 = vmul.f32 %v4384, %v4401
        %v4421 = vmul.f32 %v3761, %v4401
        %v4422 = vmul.f32 %v3470, %v4401
        %v4423 = vmul.f32 %v4385, %v4401
        %v4424 = vmul.f32 %v3762, %v4401
        %v4425 = vmul.f32 %v3473, %v4401
        %v4426 = vmul.f32 %v4386, %v4401
        %v4427 = vmul.f32 %v3763, %v4401
        %v4428 = vmul.f32 %v3476, %v4401
        %v4429 = vmul.f32 %v4387, %v4401
        %v4430 = vmul.f32 %v3764, %v4401
        %v4431 = vmul.f32 %v3479, %v4401
        %v4432 = vmul.f32 %v4388, %v4401
        %v4433 = vmul.f32 %v3765, %v4401
        %v4434 = vmul.f32 %v3482, %v4401
        %v4435 = vmul.f32 %v4389, %v4401
        %v4436 = vmul.f32 %v3766, %v4401
        %v4437 = vmul.f32 %v3485, %v4401
        %v4438 = vmul.f32 %v4390, %v4401
        %v4439 = vmul.f32 %v3767, %v4401
        %v4440 = vmul.f32 %v3488, %v4401
        %v4441 = vmul.f32 %v4391, %v4401
        %v4442 = vmul.f32 %v3768, %v4401
        %v4443 = vmul.f32 %v3491, %v4401
        %v4444 = vmul.f32 %v4392, %v4401
        %v4445 = vmul.f32 %v3769, %v4401
        %v4446 = vmul.f32 %v3494, %v4401
        %v4447 = vmul.f32 %v4393, %v4401
        %v4448 = vmul.f32 %v3770, %v4401
        %v4449 = vmul.f32 %v3497, %v4401
        %v4450 = vmul.f32 %v4394, %v4401
        %v4499 = vrot.slane %v4403, 2
        %v4500 = vrot.slane %v4404, 2
        %v4501 = vsel %vm1174, %v4499, %v4500
        %v4502 = vrot.slane %v4405, 2
        %v4503 = vsel %vm1174, %v4500, %v4502
        %v4504 = vrot.slane %v4406, 2
        %v4505 = vrot.slane %v4407, 2
        %v4506 = vsel %vm1174, %v4504, %v4505
        %v4507 = vrot.slane %v4408, 2
        %v4508 = vsel %vm1174, %v4505, %v4507
        %v4509 = vrot.slane %v4409, 2
        %v4510 = vrot.slane %v4410, 2
        %v4511 = vsel %vm1174, %v4509, %v4510
        %v4512 = vrot.slane %v4411, 2
        %v4513 = vsel %vm1174, %v4510, %v4512
        %v4514 = vrot.slane %v4412, 2
        %v4515 = vrot.slane %v4413, 2
        %v4516 = vsel %vm1174, %v4514, %v4515
        %v4517 = vrot.slane %v4414, 2
        %v4518 = vsel %vm1174, %v4515, %v4517
        %v4519 = vrot.slane %v4415, 2
        %v4520 = vrot.slane %v4416, 2
        %v4521 = vsel %vm1174, %v4519, %v4520
        %v4522 = vrot.slane %v4417, 2
        %v4523 = vsel %vm1174, %v4520, %v4522
        %v4524 = vrot.slane %v4418, 2
        %v4525 = vrot.slane %v4419, 2
        %v4526 = vsel %vm1174, %v4524, %v4525
        %v4527 = vrot.slane %v4420, 2
        %v4528 = vsel %vm1174, %v4525, %v4527
        %v4529 = vrot.slane %v4421, 2
        %v4530 = vrot.slane %v4422, 2
        %v4531 = vsel %vm1174, %v4529, %v4530
        %v4532 = vrot.slane %v4423, 2
        %v4533 = vsel %vm1174, %v4530, %v4532
        %v4534 = vrot.slane %v4424, 2
        %v4535 = vrot.slane %v4425, 2
        %v4536 = vsel %vm1174, %v4534, %v4535
        %v4537 = vrot.slane %v4426, 2
        %v4538 = vsel %vm1174, %v4535, %v4537
        %v4539 = vrot.slane %v4427, 2
        %v4540 = vrot.slane %v4428, 2
        %v4541 = vsel %vm1174, %v4539, %v4540
        %v4542 = vrot.slane %v4429, 2
        %v4543 = vsel %vm1174, %v4540, %v4542
        %v4544 = vrot.slane %v4430, 2
        %v4545 = vrot.slane %v4431, 2
        %v4546 = vsel %vm1174, %v4544, %v4545
        %v4547 = vrot.slane %v4432, 2
        %v4548 = vsel %vm1174, %v4545, %v4547
        %v4549 = vrot.slane %v4433, 2
        %v4550 = vrot.slane %v4434, 2
        %v4551 = vsel %vm1174, %v4549, %v4550
        %v4552 = vrot.slane %v4435, 2
        %v4553 = vsel %vm1174, %v4550, %v4552
        %v4554 = vrot.slane %v4436, 2
        %v4555 = vrot.slane %v4437, 2
        %v4556 = vsel %vm1174, %v4554, %v4555
        %v4557 = vrot.slane %v4438, 2
        %v4558 = vsel %vm1174, %v4555, %v4557
        %v4559 = vrot.slane %v4439, 2
        %v4560 = vrot.slane %v4440, 2
        %v4561 = vsel %vm1174, %v4559, %v4560
        %v4562 = vrot.slane %v4441, 2
        %v4563 = vsel %vm1174, %v4560, %v4562
        %v4564 = vrot.slane %v4442, 2
        %v4565 = vrot.slane %v4443, 2
        %v4566 = vsel %vm1174, %v4564, %v4565
        %v4567 = vrot.slane %v4444, 2
        %v4568 = vsel %vm1174, %v4565, %v4567
        %v4569 = vrot.slane %v4445, 2
        %v4570 = vrot.slane %v4446, 2
        %v4571 = vsel %vm1174, %v4569, %v4570
        %v4572 = vrot.slane %v4447, 2
        %v4573 = vsel %vm1174, %v4570, %v4572
        %v4574 = vrot.slane %v4448, 2
        %v4575 = vrot.slane %v4449, 2
        %v4576 = vsel %vm1174, %v4574, %v4575
        %v4577 = vrot.slane %v4450, 2
        %v4578 = vsel %vm1174, %v4575, %v4577
        %v4627 = vadd.f32 %v4003, %v4501
        %v4628 = vadd.f32 %v4004, %v4503
        %v4629 = vadd.f32 %v4005, %v4502
        %v4630 = vadd.f32 %v4006, %v4506
        %v4631 = vadd.f32 %v4007, %v4508
        %v4632 = vadd.f32 %v4008, %v4507
        %v4633 = vadd.f32 %v4009, %v4511
        %v4634 = vadd.f32 %v4010, %v4513
        %v4635 = vadd.f32 %v4011, %v4512
        %v4636 = vadd.f32 %v4012, %v4516
        %v4637 = vadd.f32 %v4013, %v4518
        %v4638 = vadd.f32 %v4014, %v4517
        %v4639 = vadd.f32 %v4015, %v4521
        %v4640 = vadd.f32 %v4016, %v4523
        %v4641 = vadd.f32 %v4017, %v4522
        %v4642 = vadd.f32 %v4018, %v4526
        %v4643 = vadd.f32 %v4019, %v4528
        %v4644 = vadd.f32 %v4020, %v4527
        %v4645 = vadd.f32 %v4021, %v4531
        %v4646 = vadd.f32 %v4022, %v4533
        %v4647 = vadd.f32 %v4023, %v4532
        %v4648 = vadd.f32 %v4024, %v4536
        %v4649 = vadd.f32 %v4025, %v4538
        %v4650 = vadd.f32 %v4026, %v4537
        %v4651 = vadd.f32 %v4027, %v4541
        %v4652 = vadd.f32 %v4028, %v4543
        %v4653 = vadd.f32 %v4029, %v4542
        %v4654 = vadd.f32 %v4030, %v4546
        %v4655 = vadd.f32 %v4031, %v4548
        %v4656 = vadd.f32 %v4032, %v4547
        %v4657 = vadd.f32 %v4033, %v4551
        %v4658 = vadd.f32 %v4034, %v4553
        %v4659 = vadd.f32 %v4035, %v4552
        %v4660 = vadd.f32 %v4036, %v4556
        %v4661 = vadd.f32 %v4037, %v4558
        %v4662 = vadd.f32 %v4038, %v4557
        %v4663 = vadd.f32 %v4039, %v4561
        %v4664 = vadd.f32 %v4040, %v4563
        %v4665 = vadd.f32 %v4041, %v4562
        %v4666 = vadd.f32 %v4042, %v4566
        %v4667 = vadd.f32 %v4043, %v4568
        %v4668 = vadd.f32 %v4044, %v4567
        %v4669 = vadd.f32 %v4045, %v4571
        %v4670 = vadd.f32 %v4046, %v4573
        %v4671 = vadd.f32 %v4047, %v4572
        %v4672 = vadd.f32 %v4048, %v4576
        %v4673 = vadd.f32 %v4049, %v4578
        %v4674 = vadd.f32 %v4050, %v4577
        %v4675 = vunpack.c.l.bf16 %v4347
        %v4676 = vunpack.c.l.bf16 %v4348
        %v4677 = vunpack.c.l.bf16 %v4349
        %v4678 = vunpack.c.l.bf16 %v4350
        %v4679 = vunpack.c.l.bf16 %v4351
        %v4680 = vunpack.c.l.bf16 %v4352
        %v4681 = vunpack.c.l.bf16 %v4353
        %v4682 = vunpack.c.l.bf16 %v4354
        %v4683 = vunpack.c.l.bf16 %v4355
        %v4684 = vunpack.c.l.bf16 %v4356
        %v4685 = vunpack.c.l.bf16 %v4357
        %v4686 = vunpack.c.l.bf16 %v4358
        %v4687 = vunpack.c.l.bf16 %v4359
        %v4688 = vunpack.c.l.bf16 %v4360
        %v4689 = vunpack.c.l.bf16 %v4361
        %v4690 = vunpack.c.l.bf16 %v4362
        %v4691 = vunpack.c.l.bf16 %v4363
        %v4692 = vunpack.c.l.bf16 %v4364
        %v4693 = vunpack.c.l.bf16 %v4365
        %v4694 = vunpack.c.l.bf16 %v4366
        %v4695 = vunpack.c.l.bf16 %v4367
        %v4696 = vunpack.c.l.bf16 %v4368
        %v4697 = vunpack.c.l.bf16 %v4369
        %v4698 = vunpack.c.l.bf16 %v4370
        %v4699 = vunpack.c.l.bf16 %v4371
        %v4700 = vunpack.c.l.bf16 %v4372
        %v4701 = vunpack.c.l.bf16 %v4373
        %v4702 = vunpack.c.l.bf16 %v4374
        %v4703 = vunpack.c.l.bf16 %v4375
        %v4704 = vunpack.c.l.bf16 %v4376
        %v4705 = vunpack.c.l.bf16 %v4377
        %v4706 = vunpack.c.l.bf16 %v4378
        %s4707 = scalar_lea.vmem %s2, 8
        %v4708 = vld [vmem:[%s4707] sm:$0x1]
        %v4710 = vlaneseq
        %v4711 = vshrl.u32 %v4710, 7
        %v4712 = vsub.s32 0, %v4711
        %v4713 = vrot.slane %v4708, %v4712
        %v4715 = vmul.f32 %v4675, %v4713
        %v4716 = vmul.f32 %v3604, %v4713
        %v4717 = vmul.f32 %v4676, %v4713
        %v4718 = vmul.f32 %v4677, %v4713
        %v4719 = vmul.f32 %v3606, %v4713
        %v4720 = vmul.f32 %v4678, %v4713
        %v4721 = vmul.f32 %v4679, %v4713
        %v4722 = vmul.f32 %v3608, %v4713
        %v4723 = vmul.f32 %v4680, %v4713
        %v4724 = vmul.f32 %v4681, %v4713
        %v4725 = vmul.f32 %v3610, %v4713
        %v4726 = vmul.f32 %v4682, %v4713
        %v4727 = vmul.f32 %v4683, %v4713
        %v4728 = vmul.f32 %v3612, %v4713
        %v4729 = vmul.f32 %v4684, %v4713
        %v4730 = vmul.f32 %v4685, %v4713
        %v4731 = vmul.f32 %v3614, %v4713
        %v4732 = vmul.f32 %v4686, %v4713
        %v4733 = vmul.f32 %v4687, %v4713
        %v4734 = vmul.f32 %v3616, %v4713
        %v4735 = vmul.f32 %v4688, %v4713
        %v4736 = vmul.f32 %v4689, %v4713
        %v4737 = vmul.f32 %v3618, %v4713
        %v4738 = vmul.f32 %v4690, %v4713
        %v4739 = vmul.f32 %v4691, %v4713
        %v4740 = vmul.f32 %v3620, %v4713
        %v4741 = vmul.f32 %v4692, %v4713
        %v4742 = vmul.f32 %v4693, %v4713
        %v4743 = vmul.f32 %v3622, %v4713
        %v4744 = vmul.f32 %v4694, %v4713
        %v4745 = vmul.f32 %v4695, %v4713
        %v4746 = vmul.f32 %v3624, %v4713
        %v4747 = vmul.f32 %v4696, %v4713
        %v4748 = vmul.f32 %v4697, %v4713
        %v4749 = vmul.f32 %v3626, %v4713
        %v4750 = vmul.f32 %v4698, %v4713
        %v4751 = vmul.f32 %v4699, %v4713
        %v4752 = vmul.f32 %v3628, %v4713
        %v4753 = vmul.f32 %v4700, %v4713
        %v4754 = vmul.f32 %v4701, %v4713
        %v4755 = vmul.f32 %v3630, %v4713
        %v4756 = vmul.f32 %v4702, %v4713
        %v4757 = vmul.f32 %v4703, %v4713
        %v4758 = vmul.f32 %v3632, %v4713
        %v4759 = vmul.f32 %v4704, %v4713
        %v4760 = vmul.f32 %v4705, %v4713
        %v4761 = vmul.f32 %v3634, %v4713
        %v4762 = vmul.f32 %v4706, %v4713
        %v4811 = vrot.slane %v4715, 4
        %v4812 = vrot.slane %v4716, 4
        %v4813 = vsel %vm1799, %v4811, %v4812
        %v4814 = vrot.slane %v4717, 4
        %v4815 = vsel %vm1799, %v4812, %v4814
        %v4816 = vrot.slane %v4718, 4
        %v4817 = vrot.slane %v4719, 4
        %v4818 = vsel %vm1799, %v4816, %v4817
        %v4819 = vrot.slane %v4720, 4
        %v4820 = vsel %vm1799, %v4817, %v4819
        %v4821 = vrot.slane %v4721, 4
        %v4822 = vrot.slane %v4722, 4
        %v4823 = vsel %vm1799, %v4821, %v4822
        %v4824 = vrot.slane %v4723, 4
        %v4825 = vsel %vm1799, %v4822, %v4824
        %v4826 = vrot.slane %v4724, 4
        %v4827 = vrot.slane %v4725, 4
        %v4828 = vsel %vm1799, %v4826, %v4827
        %v4829 = vrot.slane %v4726, 4
        %v4830 = vsel %vm1799, %v4827, %v4829
        %v4831 = vrot.slane %v4727, 4
        %v4832 = vrot.slane %v4728, 4
        %v4833 = vsel %vm1799, %v4831, %v4832
        %v4834 = vrot.slane %v4729, 4
        %v4835 = vsel %vm1799, %v4832, %v4834
        %v4836 = vrot.slane %v4730, 4
        %v4837 = vrot.slane %v4731, 4
        %v4838 = vsel %vm1799, %v4836, %v4837
        %v4839 = vrot.slane %v4732, 4
        %v4840 = vsel %vm1799, %v4837, %v4839
        %v4841 = vrot.slane %v4733, 4
        %v4842 = vrot.slane %v4734, 4
        %v4843 = vsel %vm1799, %v4841, %v4842
        %v4844 = vrot.slane %v4735, 4
        %v4845 = vsel %vm1799, %v4842, %v4844
        %v4846 = vrot.slane %v4736, 4
        %v4847 = vrot.slane %v4737, 4
        %v4848 = vsel %vm1799, %v4846, %v4847
        %v4849 = vrot.slane %v4738, 4
        %v4850 = vsel %vm1799, %v4847, %v4849
        %v4851 = vrot.slane %v4739, 4
        %v4852 = vrot.slane %v4740, 4
        %v4853 = vsel %vm1799, %v4851, %v4852
        %v4854 = vrot.slane %v4741, 4
        %v4855 = vsel %vm1799, %v4852, %v4854
        %v4856 = vrot.slane %v4742, 4
        %v4857 = vrot.slane %v4743, 4
        %v4858 = vsel %vm1799, %v4856, %v4857
        %v4859 = vrot.slane %v4744, 4
        %v4860 = vsel %vm1799, %v4857, %v4859
        %v4861 = vrot.slane %v4745, 4
        %v4862 = vrot.slane %v4746, 4
        %v4863 = vsel %vm1799, %v4861, %v4862
        %v4864 = vrot.slane %v4747, 4
        %v4865 = vsel %vm1799, %v4862, %v4864
        %v4866 = vrot.slane %v4748, 4
        %v4867 = vrot.slane %v4749, 4
        %v4868 = vsel %vm1799, %v4866, %v4867
        %v4869 = vrot.slane %v4750, 4
        %v4870 = vsel %vm1799, %v4867, %v4869
        %v4871 = vrot.slane %v4751, 4
        %v4872 = vrot.slane %v4752, 4
        %v4873 = vsel %vm1799, %v4871, %v4872
        %v4874 = vrot.slane %v4753, 4
        %v4875 = vsel %vm1799, %v4872, %v4874
        %v4876 = vrot.slane %v4754, 4
        %v4877 = vrot.slane %v4755, 4
        %v4878 = vsel %vm1799, %v4876, %v4877
        %v4879 = vrot.slane %v4756, 4
        %v4880 = vsel %vm1799, %v4877, %v4879
        %v4881 = vrot.slane %v4757, 4
        %v4882 = vrot.slane %v4758, 4
        %v4883 = vsel %vm1799, %v4881, %v4882
        %v4884 = vrot.slane %v4759, 4
        %v4885 = vsel %vm1799, %v4882, %v4884
        %v4886 = vrot.slane %v4760, 4
        %v4887 = vrot.slane %v4761, 4
        %v4888 = vsel %vm1799, %v4886, %v4887
        %v4889 = vrot.slane %v4762, 4
        %v4890 = vsel %vm1799, %v4887, %v4889
        %v4923 = vadd.f32 %v4299, %v4813
        %v4924 = vadd.f32 %v4300, %v4815
        %v4925 = vadd.f32 %v4301, %v4818
        %v4926 = vadd.f32 %v4302, %v4820
        %v4927 = vadd.f32 %v4303, %v4823
        %v4928 = vadd.f32 %v4304, %v4825
        %v4929 = vadd.f32 %v4305, %v4828
        %v4930 = vadd.f32 %v4306, %v4830
        %v4931 = vadd.f32 %v4307, %v4833
        %v4932 = vadd.f32 %v4308, %v4835
        %v4933 = vadd.f32 %v4309, %v4838
        %v4934 = vadd.f32 %v4310, %v4840
        %v4935 = vadd.f32 %v4311, %v4843
        %v4936 = vadd.f32 %v4312, %v4845
        %v4937 = vadd.f32 %v4313, %v4848
        %v4938 = vadd.f32 %v4314, %v4850
        %v4939 = vadd.f32 %v4315, %v4853
        %v4940 = vadd.f32 %v4316, %v4855
        %v4941 = vadd.f32 %v4317, %v4858
        %v4942 = vadd.f32 %v4318, %v4860
        %v4943 = vadd.f32 %v4319, %v4863
        %v4944 = vadd.f32 %v4320, %v4865
        %v4945 = vadd.f32 %v4321, %v4868
        %v4946 = vadd.f32 %v4322, %v4870
        %v4947 = vadd.f32 %v4323, %v4873
        %v4948 = vadd.f32 %v4324, %v4875
        %v4949 = vadd.f32 %v4325, %v4878
        %v4950 = vadd.f32 %v4326, %v4880
        %v4951 = vadd.f32 %v4327, %v4883
        %v4952 = vadd.f32 %v4328, %v4885
        %v4953 = vadd.f32 %v4329, %v4888
        %v4954 = vadd.f32 %v4330, %v4890
        %vm4987 = vcmask 1040384
        %v4988 = vrot.slane %v4923, 7
        %v4989 = vrot.slane %v4924, 7
        %v4990 = vsel %vm4987, %v4988, %v4989
        %v4991 = vrot.slane %v4925, 7
        %v4992 = vrot.slane %v4926, 7
        %v4993 = vsel %vm4987, %v4991, %v4992
        %v4994 = vrot.slane %v4927, 7
        %v4995 = vrot.slane %v4928, 7
        %v4996 = vsel %vm4987, %v4994, %v4995
        %v4997 = vrot.slane %v4929, 7
        %v4998 = vrot.slane %v4930, 7
        %v4999 = vsel %vm4987, %v4997, %v4998
        %v5000 = vrot.slane %v4931, 7
        %v5001 = vrot.slane %v4932, 7
        %v5002 = vsel %vm4987, %v5000, %v5001
        %v5003 = vrot.slane %v4933, 7
        %v5004 = vrot.slane %v4934, 7
        %v5005 = vsel %vm4987, %v5003, %v5004
        %v5006 = vrot.slane %v4935, 7
        %v5007 = vrot.slane %v4936, 7
        %v5008 = vsel %vm4987, %v5006, %v5007
        %v5009 = vrot.slane %v4937, 7
        %v5010 = vrot.slane %v4938, 7
        %v5011 = vsel %vm4987, %v5009, %v5010
        %v5012 = vrot.slane %v4939, 7
        %v5013 = vrot.slane %v4940, 7
        %v5014 = vsel %vm4987, %v5012, %v5013
        %v5015 = vrot.slane %v4941, 7
        %v5016 = vrot.slane %v4942, 7
        %v5017 = vsel %vm4987, %v5015, %v5016
        %v5018 = vrot.slane %v4943, 7
        %v5019 = vrot.slane %v4944, 7
        %v5020 = vsel %vm4987, %v5018, %v5019
        %v5021 = vrot.slane %v4945, 7
        %v5022 = vrot.slane %v4946, 7
        %v5023 = vsel %vm4987, %v5021, %v5022
        %v5024 = vrot.slane %v4947, 7
        %v5025 = vrot.slane %v4948, 7
        %v5026 = vsel %vm4987, %v5024, %v5025
        %v5027 = vrot.slane %v4949, 7
        %v5028 = vrot.slane %v4950, 7
        %v5029 = vsel %vm4987, %v5027, %v5028
        %v5030 = vrot.slane %v4951, 7
        %v5031 = vrot.slane %v4952, 7
        %v5032 = vsel %vm4987, %v5030, %v5031
        %v5033 = vrot.slane %v4953, 7
        %v5034 = vrot.slane %v4954, 7
        %v5035 = vsel %vm4987, %v5033, %v5034
        %5036 = vrot.lane.b32.xlu0 %v4988, 64
        %v5037 = vpop.permute.xlu0 %5036
        %5038 = vrot.lane.b32.xlu0 %v4990, 64
        %v5039 = vpop.permute.xlu0 %5038
        %5040 = vrot.lane.b32.xlu0 %v4989, 64
        %v5041 = vpop.permute.xlu0 %5040
        %5042 = vrot.lane.b32.xlu0 %v4991, 64
        %v5043 = vpop.permute.xlu0 %5042
        %5044 = vrot.lane.b32.xlu0 %v4993, 64
        %v5045 = vpop.permute.xlu0 %5044
        %5046 = vrot.lane.b32.xlu0 %v4992, 64
        %v5047 = vpop.permute.xlu0 %5046
        %5048 = vrot.lane.b32.xlu0 %v4994, 64
        %v5049 = vpop.permute.xlu0 %5048
        %5050 = vrot.lane.b32.xlu0 %v4996, 64
        %v5051 = vpop.permute.xlu0 %5050
        %5052 = vrot.lane.b32.xlu0 %v4995, 64
        %v5053 = vpop.permute.xlu0 %5052
        %5054 = vrot.lane.b32.xlu0 %v4997, 64
        %v5055 = vpop.permute.xlu0 %5054
        %5056 = vrot.lane.b32.xlu0 %v4999, 64
        %v5057 = vpop.permute.xlu0 %5056
        %5058 = vrot.lane.b32.xlu0 %v4998, 64
        %v5059 = vpop.permute.xlu0 %5058
        %5060 = vrot.lane.b32.xlu0 %v5000, 64
        %v5061 = vpop.permute.xlu0 %5060
        %5062 = vrot.lane.b32.xlu0 %v5002, 64
        %v5063 = vpop.permute.xlu0 %5062
        %5064 = vrot.lane.b32.xlu0 %v5001, 64
        %v5065 = vpop.permute.xlu0 %5064
        %5066 = vrot.lane.b32.xlu0 %v5003, 64
        %v5067 = vpop.permute.xlu0 %5066
        %5068 = vrot.lane.b32.xlu0 %v5005, 64
        %v5069 = vpop.permute.xlu0 %5068
        %5070 = vrot.lane.b32.xlu0 %v5004, 64
        %v5071 = vpop.permute.xlu0 %5070
        %5072 = vrot.lane.b32.xlu0 %v5006, 64
        %v5073 = vpop.permute.xlu0 %5072
        %5074 = vrot.lane.b32.xlu0 %v5008, 64
        %v5075 = vpop.permute.xlu0 %5074
        %5076 = vrot.lane.b32.xlu0 %v5007, 64
        %v5077 = vpop.permute.xlu0 %5076
        %5078 = vrot.lane.b32.xlu0 %v5009, 64
        %v5079 = vpop.permute.xlu0 %5078
        %5080 = vrot.lane.b32.xlu0 %v5011, 64
        %v5081 = vpop.permute.xlu0 %5080
        %5082 = vrot.lane.b32.xlu0 %v5010, 64
        %v5083 = vpop.permute.xlu0 %5082
        %5084 = vrot.lane.b32.xlu0 %v5012, 64
        %v5085 = vpop.permute.xlu0 %5084
        %5086 = vrot.lane.b32.xlu0 %v5014, 64
        %v5087 = vpop.permute.xlu0 %5086
        %5088 = vrot.lane.b32.xlu0 %v5013, 64
        %v5089 = vpop.permute.xlu0 %5088
        %5090 = vrot.lane.b32.xlu0 %v5015, 64
        %v5091 = vpop.permute.xlu0 %5090
        %5092 = vrot.lane.b32.xlu0 %v5017, 64
        %v5093 = vpop.permute.xlu0 %5092
        %5094 = vrot.lane.b32.xlu0 %v5016, 64
        %v5095 = vpop.permute.xlu0 %5094
        %5096 = vrot.lane.b32.xlu0 %v5018, 64
        %v5097 = vpop.permute.xlu0 %5096
        %5098 = vrot.lane.b32.xlu0 %v5020, 64
        %v5099 = vpop.permute.xlu0 %5098
        %5100 = vrot.lane.b32.xlu0 %v5019, 64
        %v5101 = vpop.permute.xlu0 %5100
        %5102 = vrot.lane.b32.xlu0 %v5021, 64
        %v5103 = vpop.permute.xlu0 %5102
        %5104 = vrot.lane.b32.xlu0 %v5023, 64
        %v5105 = vpop.permute.xlu0 %5104
        %5106 = vrot.lane.b32.xlu0 %v5022, 64
        %v5107 = vpop.permute.xlu0 %5106
        %5108 = vrot.lane.b32.xlu0 %v5024, 64
        %v5109 = vpop.permute.xlu0 %5108
        %5110 = vrot.lane.b32.xlu0 %v5026, 64
        %v5111 = vpop.permute.xlu0 %5110
        %5112 = vrot.lane.b32.xlu0 %v5025, 64
        %v5113 = vpop.permute.xlu0 %5112
        %5114 = vrot.lane.b32.xlu0 %v5027, 64
        %v5115 = vpop.permute.xlu0 %5114
        %5116 = vrot.lane.b32.xlu0 %v5029, 64
        %v5117 = vpop.permute.xlu0 %5116
        %5118 = vrot.lane.b32.xlu0 %v5028, 64
        %v5119 = vpop.permute.xlu0 %5118
        %5120 = vrot.lane.b32.xlu0 %v5030, 64
        %v5121 = vpop.permute.xlu0 %5120
        %5122 = vrot.lane.b32.xlu0 %v5032, 64
        %v5123 = vpop.permute.xlu0 %5122
        %5124 = vrot.lane.b32.xlu0 %v5031, 64
        %v5125 = vpop.permute.xlu0 %5124
        %5126 = vrot.lane.b32.xlu0 %v5033, 64
        %v5127 = vpop.permute.xlu0 %5126
        %5128 = vrot.lane.b32.xlu0 %v5035, 64
        %v5129 = vpop.permute.xlu0 %5128
        %5130 = vrot.lane.b32.xlu0 %v5034, 64
        %v5131 = vpop.permute.xlu0 %5130
        %vm5180 = vcmask 523264
        %v5181 = vsel %vm5180, %v4627, %v5037
        %v5182 = vsel %vm5180, %v4628, %v5039
        %v5183 = vsel %vm5180, %v4629, %v5041
        %v5184 = vsel %vm5180, %v4630, %v5043
        %v5185 = vsel %vm5180, %v4631, %v5045
        %v5186 = vsel %vm5180, %v4632, %v5047
        %v5187 = vsel %vm5180, %v4633, %v5049
        %v5188 = vsel %vm5180, %v4634, %v5051
        %v5189 = vsel %vm5180, %v4635, %v5053
        %v5190 = vsel %vm5180, %v4636, %v5055
        %v5191 = vsel %vm5180, %v4637, %v5057
        %v5192 = vsel %vm5180, %v4638, %v5059
        %v5193 = vsel %vm5180, %v4639, %v5061
        %v5194 = vsel %vm5180, %v4640, %v5063
        %v5195 = vsel %vm5180, %v4641, %v5065
        %v5196 = vsel %vm5180, %v4642, %v5067
        %v5197 = vsel %vm5180, %v4643, %v5069
        %v5198 = vsel %vm5180, %v4644, %v5071
        %v5199 = vsel %vm5180, %v4645, %v5073
        %v5200 = vsel %vm5180, %v4646, %v5075
        %v5201 = vsel %vm5180, %v4647, %v5077
        %v5202 = vsel %vm5180, %v4648, %v5079
        %v5203 = vsel %vm5180, %v4649, %v5081
        %v5204 = vsel %vm5180, %v4650, %v5083
        %v5205 = vsel %vm5180, %v4651, %v5085
        %v5206 = vsel %vm5180, %v4652, %v5087
        %v5207 = vsel %vm5180, %v4653, %v5089
        %v5208 = vsel %vm5180, %v4654, %v5091
        %v5209 = vsel %vm5180, %v4655, %v5093
        %v5210 = vsel %vm5180, %v4656, %v5095
        %v5211 = vsel %vm5180, %v4657, %v5097
        %v5212 = vsel %vm5180, %v4658, %v5099
        %v5213 = vsel %vm5180, %v4659, %v5101
        %v5214 = vsel %vm5180, %v4660, %v5103
        %v5215 = vsel %vm5180, %v4661, %v5105
        %v5216 = vsel %vm5180, %v4662, %v5107
        %v5217 = vsel %vm5180, %v4663, %v5109
        %v5218 = vsel %vm5180, %v4664, %v5111
        %v5219 = vsel %vm5180, %v4665, %v5113
        %v5220 = vsel %vm5180, %v4666, %v5115
        %v5221 = vsel %vm5180, %v4667, %v5117
        %v5222 = vsel %vm5180, %v4668, %v5119
        %v5223 = vsel %vm5180, %v4669, %v5121
        %v5224 = vsel %vm5180, %v4670, %v5123
        %v5225 = vsel %vm5180, %v4671, %v5125
        %v5226 = vsel %vm5180, %v4672, %v5127
        %v5227 = vsel %vm5180, %v4673, %v5129
        %v5228 = vsel %vm5180, %v4674, %v5131
        %v5277 = vrot.slane %v5181, 1
        %v5278 = vrot.slane %v5182, 1
        %v5279 = vsel %vm861, %v5277, %v5278
        %v5280 = vrot.slane %v5183, 1
        %v5281 = vsel %vm861, %v5278, %v5280
        %v5282 = vrot.slane %v5184, 1
        %v5283 = vrot.slane %v5185, 1
        %v5284 = vsel %vm861, %v5282, %v5283
        %v5285 = vrot.slane %v5186, 1
        %v5286 = vsel %vm861, %v5283, %v5285
        %v5287 = vrot.slane %v5187, 1
        %v5288 = vrot.slane %v5188, 1
        %v5289 = vsel %vm861, %v5287, %v5288
        %v5290 = vrot.slane %v5189, 1
        %v5291 = vsel %vm861, %v5288, %v5290
        %v5292 = vrot.slane %v5190, 1
        %v5293 = vrot.slane %v5191, 1
        %v5294 = vsel %vm861, %v5292, %v5293
        %v5295 = vrot.slane %v5192, 1
        %v5296 = vsel %vm861, %v5293, %v5295
        %v5297 = vrot.slane %v5193, 1
        %v5298 = vrot.slane %v5194, 1
        %v5299 = vsel %vm861, %v5297, %v5298
        %v5300 = vrot.slane %v5195, 1
        %v5301 = vsel %vm861, %v5298, %v5300
        %v5302 = vrot.slane %v5196, 1
        %v5303 = vrot.slane %v5197, 1
        %v5304 = vsel %vm861, %v5302, %v5303
        %v5305 = vrot.slane %v5198, 1
        %v5306 = vsel %vm861, %v5303, %v5305
        %v5307 = vrot.slane %v5199, 1
        %v5308 = vrot.slane %v5200, 1
        %v5309 = vsel %vm861, %v5307, %v5308
        %v5310 = vrot.slane %v5201, 1
        %v5311 = vsel %vm861, %v5308, %v5310
        %v5312 = vrot.slane %v5202, 1
        %v5313 = vrot.slane %v5203, 1
        %v5314 = vsel %vm861, %v5312, %v5313
        %v5315 = vrot.slane %v5204, 1
        %v5316 = vsel %vm861, %v5313, %v5315
        %v5317 = vrot.slane %v5205, 1
        %v5318 = vrot.slane %v5206, 1
        %v5319 = vsel %vm861, %v5317, %v5318
        %v5320 = vrot.slane %v5207, 1
        %v5321 = vsel %vm861, %v5318, %v5320
        %v5322 = vrot.slane %v5208, 1
        %v5323 = vrot.slane %v5209, 1
        %v5324 = vsel %vm861, %v5322, %v5323
        %v5325 = vrot.slane %v5210, 1
        %v5326 = vsel %vm861, %v5323, %v5325
        %v5327 = vrot.slane %v5211, 1
        %v5328 = vrot.slane %v5212, 1
        %v5329 = vsel %vm861, %v5327, %v5328
        %v5330 = vrot.slane %v5213, 1
        %v5331 = vsel %vm861, %v5328, %v5330
        %v5332 = vrot.slane %v5214, 1
        %v5333 = vrot.slane %v5215, 1
        %v5334 = vsel %vm861, %v5332, %v5333
        %v5335 = vrot.slane %v5216, 1
        %v5336 = vsel %vm861, %v5333, %v5335
        %v5337 = vrot.slane %v5217, 1
        %v5338 = vrot.slane %v5218, 1
        %v5339 = vsel %vm861, %v5337, %v5338
        %v5340 = vrot.slane %v5219, 1
        %v5341 = vsel %vm861, %v5338, %v5340
        %v5342 = vrot.slane %v5220, 1
        %v5343 = vrot.slane %v5221, 1
        %v5344 = vsel %vm861, %v5342, %v5343
        %v5345 = vrot.slane %v5222, 1
        %v5346 = vsel %vm861, %v5343, %v5345
        %v5347 = vrot.slane %v5223, 1
        %v5348 = vrot.slane %v5224, 1
        %v5349 = vsel %vm861, %v5347, %v5348
        %v5350 = vrot.slane %v5225, 1
        %v5351 = vsel %vm861, %v5348, %v5350
        %v5352 = vrot.slane %v5226, 1
        %v5353 = vrot.slane %v5227, 1
        %v5354 = vsel %vm861, %v5352, %v5353
        %v5355 = vrot.slane %v5228, 1
        %v5356 = vsel %vm861, %v5353, %v5355
        %v5389 = vld [vmem:[%s3] sm:$0x1]
        %v5391 = vlaneseq
        %v5392 = vshrl.u32 %v5391, 7
        %v5393 = vsub.s32 0, %v5392
        %v5394 = vrot.slane %v5389, %v5393
        %v5396 = vmul.f32 %v5279, %v5394
        %v5397 = vmul.f32 %v5281, %v5394
        %v5398 = vmul.f32 %v5284, %v5394
        %v5399 = vmul.f32 %v5286, %v5394
        %v5400 = vmul.f32 %v5289, %v5394
        %v5401 = vmul.f32 %v5291, %v5394
        %v5402 = vmul.f32 %v5294, %v5394
        %v5403 = vmul.f32 %v5296, %v5394
        %v5404 = vmul.f32 %v5299, %v5394
        %v5405 = vmul.f32 %v5301, %v5394
        %v5406 = vmul.f32 %v5304, %v5394
        %v5407 = vmul.f32 %v5306, %v5394
        %v5408 = vmul.f32 %v5309, %v5394
        %v5409 = vmul.f32 %v5311, %v5394
        %v5410 = vmul.f32 %v5314, %v5394
        %v5411 = vmul.f32 %v5316, %v5394
        %v5412 = vmul.f32 %v5319, %v5394
        %v5413 = vmul.f32 %v5321, %v5394
        %v5414 = vmul.f32 %v5324, %v5394
        %v5415 = vmul.f32 %v5326, %v5394
        %v5416 = vmul.f32 %v5329, %v5394
        %v5417 = vmul.f32 %v5331, %v5394
        %v5418 = vmul.f32 %v5334, %v5394
        %v5419 = vmul.f32 %v5336, %v5394
        %v5420 = vmul.f32 %v5339, %v5394
        %v5421 = vmul.f32 %v5341, %v5394
        %v5422 = vmul.f32 %v5344, %v5394
        %v5423 = vmul.f32 %v5346, %v5394
        %v5424 = vmul.f32 %v5349, %v5394
        %v5425 = vmul.f32 %v5351, %v5394
        %v5426 = vmul.f32 %v5354, %v5394
        %v5427 = vmul.f32 %v5356, %v5394
        %v5428 = vld [vmem:[%s4] sm:$0x1]
        %v5430 = vlaneseq
        %v5431 = vshrl.u32 %v5430, 7
        %v5432 = vsub.s32 0, %v5431
        %v5433 = vrot.slane %v5428, %v5432
        %v5435 = vadd.f32 %v5396, %v5433
        %v5436 = vadd.f32 %v5397, %v5433
        %v5437 = vadd.f32 %v5398, %v5433
        %v5438 = vadd.f32 %v5399, %v5433
        %v5439 = vadd.f32 %v5400, %v5433
        %v5440 = vadd.f32 %v5401, %v5433
        %v5441 = vadd.f32 %v5402, %v5433
        %v5442 = vadd.f32 %v5403, %v5433
        %v5443 = vadd.f32 %v5404, %v5433
        %v5444 = vadd.f32 %v5405, %v5433
        %v5445 = vadd.f32 %v5406, %v5433
        %v5446 = vadd.f32 %v5407, %v5433
        %v5447 = vadd.f32 %v5408, %v5433
        %v5448 = vadd.f32 %v5409, %v5433
        %v5449 = vadd.f32 %v5410, %v5433
        %v5450 = vadd.f32 %v5411, %v5433
        %v5451 = vadd.f32 %v5412, %v5433
        %v5452 = vadd.f32 %v5413, %v5433
        %v5453 = vadd.f32 %v5414, %v5433
        %v5454 = vadd.f32 %v5415, %v5433
        %v5455 = vadd.f32 %v5416, %v5433
        %v5456 = vadd.f32 %v5417, %v5433
        %v5457 = vadd.f32 %v5418, %v5433
        %v5458 = vadd.f32 %v5419, %v5433
        %v5459 = vadd.f32 %v5420, %v5433
        %v5460 = vadd.f32 %v5421, %v5433
        %v5461 = vadd.f32 %v5422, %v5433
        %v5462 = vadd.f32 %v5423, %v5433
        %v5463 = vadd.f32 %v5424, %v5433
        %v5464 = vadd.f32 %v5425, %v5433
        %v5465 = vadd.f32 %v5426, %v5433
        %v5466 = vadd.f32 %v5427, %v5433
        %v5467 = vmax.f32 %v5435, 0.0
        %v5468 = vmax.f32 %v5436, 0.0
        %v5469 = vmax.f32 %v5437, 0.0
        %v5470 = vmax.f32 %v5438, 0.0
        %v5471 = vmax.f32 %v5439, 0.0
        %v5472 = vmax.f32 %v5440, 0.0
        %v5473 = vmax.f32 %v5441, 0.0
        %v5474 = vmax.f32 %v5442, 0.0
        %v5475 = vmax.f32 %v5443, 0.0
        %v5476 = vmax.f32 %v5444, 0.0
        %v5477 = vmax.f32 %v5445, 0.0
        %v5478 = vmax.f32 %v5446, 0.0
        %v5479 = vmax.f32 %v5447, 0.0
        %v5480 = vmax.f32 %v5448, 0.0
        %v5481 = vmax.f32 %v5449, 0.0
        %v5482 = vmax.f32 %v5450, 0.0
        %v5483 = vmax.f32 %v5451, 0.0
        %v5484 = vmax.f32 %v5452, 0.0
        %v5485 = vmax.f32 %v5453, 0.0
        %v5486 = vmax.f32 %v5454, 0.0
        %v5487 = vmax.f32 %v5455, 0.0
        %v5488 = vmax.f32 %v5456, 0.0
        %v5489 = vmax.f32 %v5457, 0.0
        %v5490 = vmax.f32 %v5458, 0.0
        %v5491 = vmax.f32 %v5459, 0.0
        %v5492 = vmax.f32 %v5460, 0.0
        %v5493 = vmax.f32 %v5461, 0.0
        %v5494 = vmax.f32 %v5462, 0.0
        %v5495 = vmax.f32 %v5463, 0.0
        %v5496 = vmax.f32 %v5464, 0.0
        %v5497 = vmax.f32 %v5465, 0.0
        %v5498 = vmax.f32 %v5466, 0.0
        %v5499 = vadd.f32 %v5467, %v5468
        %v5500 = vadd.f32 %v5499, %v5469
        %v5501 = vadd.f32 %v5500, %v5470
        %v5502 = vadd.f32 %v5501, %v5471
        %v5503 = vadd.f32 %v5502, %v5472
        %v5504 = vadd.f32 %v5503, %v5473
        %v5505 = vadd.f32 %v5504, %v5474
        %v5506 = vadd.f32 %v5505, %v5475
        %v5507 = vadd.f32 %v5506, %v5476
        %v5508 = vadd.f32 %v5507, %v5477
        %v5509 = vadd.f32 %v5508, %v5478
        %v5510 = vadd.f32 %v5509, %v5479
        %v5511 = vadd.f32 %v5510, %v5480
        %v5512 = vadd.f32 %v5511, %v5481
        %v5513 = vadd.f32 %v5512, %v5482
        %v5514 = vadd.f32 %v5513, %v5483
        %v5515 = vadd.f32 %v5514, %v5484
        %v5516 = vadd.f32 %v5515, %v5485
        %v5517 = vadd.f32 %v5516, %v5486
        %v5518 = vadd.f32 %v5517, %v5487
        %v5519 = vadd.f32 %v5518, %v5488
        %v5520 = vadd.f32 %v5519, %v5489
        %v5521 = vadd.f32 %v5520, %v5490
        %v5522 = vadd.f32 %v5521, %v5491
        %v5523 = vadd.f32 %v5522, %v5492
        %v5524 = vadd.f32 %v5523, %v5493
        %v5525 = vadd.f32 %v5524, %v5494
        %v5526 = vadd.f32 %v5525, %v5495
        %v5527 = vadd.f32 %v5526, %v5496
        %v5528 = vadd.f32 %v5527, %v5497
        %v5529 = vadd.f32 %v5528, %v5498
        %v5530 = vrot.slane %v5529, 4
        %v5531 = vadd.f32 %v5529, %v5530
        %v5532 = vrot.slane %v5531, 2
        %v5533 = vadd.f32 %v5531, %v5532
        %v5534 = vrot.slane %v5533, 1
        %v5535 = vadd.f32 %v5533, %v5534
        %v5536 = vrcp.pop 256.0
        %v5537 = vmul.f32 %v5535, %v5536
        %5539 = vrot.lane.b32.xlu0 %v5537, 64
        %v5540 = vpop.permute.xlu0 %5539
        %v5542 = vadd.f32 %v5537, %v5540
        %v5543 = vld [vmem:[%s5] sm:$0xff]
        %v5544 = vld [vmem:[%s5 + $0x8] sm:$0xff]
        %v5545 = vld [vmem:[%s5 + $0x10] sm:$0xff]
        %v5546 = vld [vmem:[%s5 + $0x18] sm:$0xff]
        %v5547 = vld [vmem:[%s5 + $0x20] sm:$0xff]
        %v5548 = vld [vmem:[%s5 + $0x28] sm:$0xff]
        %v5549 = vld [vmem:[%s5 + $0x30] sm:$0xff]
        %v5550 = vld [vmem:[%s5 + $0x38] sm:$0xff]
        %v5552 = vsel %vm5180, %v5542, 0
        %5554 = vmatprep.subr.mxu0 0.0
        %5555 = vmatpush1.msra.mxu0 %v5543
        %5556 = vmatprep.subr.mxu0 0.0
        %5557 = vmatpush1.msra.mxu0 %v5544
        %5558 = vmatprep.subr.mxu0 0.0
        %5559 = vmatpush1.msra.mxu0 %v5545
        %5560 = vmatprep.subr.mxu0 0.0
        %5561 = vmatpush1.msra.mxu0 %v5546
        %5562 = vmatprep.subr.mxu0 0.0
        %5563 = vmatpush1.msra.mxu0 %v5547
        %5564 = vmatprep.subr.mxu0 0.0
        %5565 = vmatpush1.msra.mxu0 %v5548
        %5566 = vmatprep.subr.mxu0 0.0
        %5567 = vmatpush1.msra.mxu0 %v5549
        %5568 = vmatprep.subr.mxu0 0.0
        %5569 = vmatpush1.msra.mxu0 %v5550
        %5570 = vmatprep.subr.mxu0 0.0
        %5571 = vmatpush1.msra.mxu0 0.0
        %5572 = vmatprep.subr.mxu0 0.0
        %5573 = vmatpush1.msra.mxu0 0.0
        %5574 = vmatprep.subr.mxu0 0.0
        %5575 = vmatpush1.msra.mxu0 0.0
        %5576 = vmatprep.subr.mxu0 0.0
        %5577 = vmatpush1.msra.mxu0 0.0
        %5578 = vmatprep.subr.mxu0 0.0
        %5579 = vmatpush1.msra.mxu0 0.0
        %5580 = vmatprep.subr.mxu0 0.0
        %5581 = vmatpush1.msra.mxu0 0.0
        %5582 = vmatprep.subr.mxu0 0.0
        %5583 = vmatpush1.msra.mxu0 0.0
        %5584 = vmatprep.subr.mxu0 0.0
        %5585 = vmatpush1.msra.mxu0 0.0
        %5586 = vmatprep.subr.mxu0 0.0
        %5587 = vmatpush1.msra.mxu0 0.0
        %5588 = vmatprep.subr.mxu0 0.0
        %5589 = vmatpush1.msra.mxu0 0.0
        %5590 = vmatprep.subr.mxu0 0.0
        %5591 = vmatpush1.msra.mxu0 0.0
        %5592 = vmatprep.subr.mxu0 0.0
        %5593 = vmatpush1.msra.mxu0 0.0
        %5594 = vmatprep.subr.mxu0 0.0
        %5595 = vmatpush1.msra.mxu0 0.0
        %5596 = vmatprep.subr.mxu0 0.0
        %5597 = vmatpush1.msra.mxu0 0.0
        %5598 = vmatprep.subr.mxu0 0.0
        %5599 = vmatpush1.msra.mxu0 0.0
        %5600 = vmatprep.subr.mxu0 0.0
        %5601 = vmatpush1.msra.mxu0 0.0
        %5602 = vmatprep.subr.mxu0 0.0
        %5603 = vmatpush1.msra.mxu0 0.0
        %5604 = vmatprep.subr.mxu0 0.0
        %5605 = vmatpush1.msra.mxu0 0.0
        %5606 = vmatprep.subr.mxu0 0.0
        %5607 = vmatpush1.msra.mxu0 0.0
        %5608 = vmatprep.subr.mxu0 0.0
        %5609 = vmatpush1.msra.mxu0 0.0
        %5610 = vmatprep.subr.mxu0 0.0
        %5611 = vmatpush1.msra.mxu0 0.0
        %5612 = vmatprep.subr.mxu0 0.0
        %5613 = vmatpush1.msra.mxu0 0.0
        %5614 = vmatprep.subr.mxu0 0.0
        %5615 = vmatpush1.msra.mxu0 0.0
        %5616 = vmatprep.subr.mxu0 0.0
        %5617 = vmatpush1.msra.mxu0 0.0
        %5618 = vmatprep.mubr.f32.mxu0 0.0
        %5619 = vmatmul.mubr.f32.gmra.mrb[0].mxu0 %v5552
        %v5620 = vpop.f32.mrb[0].mxu0
        %v5621 = vadd.f32 0.0, %v5620
        %v5622 = vpop.f32.mrb[0].mxu0
        %5623 = vdwg.mxu0
        %v5624 = vld [vmem:[%s6] sm:$0x1]
        %v5625 = vmul.f32 %v5621, %v5624
        %v5626 = vld [vmem:[%s7] sm:$0x1]
        %v5627 = vadd.f32 %v5625, %v5626
        %v5628 = vmax.f32 %v5627, 0.0
        %v5629 = vld [vmem:[%s8] sm:$0xff]
        %v5630 = vld [vmem:[%s8 + $0x8] sm:$0xff]
        %v5631 = vld [vmem:[%s8 + $0x10] sm:$0xff]
        %v5632 = vld [vmem:[%s8 + $0x18] sm:$0xff]
        %v5633 = vld [vmem:[%s9] sm:$0x1]
        %vm5634 = vcmask 261120
        %v5636 = vsel %vm5634, %v5628, 0
        %5638 = vmatprep.subr.mxu0 0.0
        %5639 = vmatpush1.msra.mxu0 %v5629
        %5640 = vmatprep.subr.mxu0 0.0
        %5641 = vmatpush1.msra.mxu0 %v5630
        %5642 = vmatprep.subr.mxu0 0.0
        %5643 = vmatpush1.msra.mxu0 %v5631
        %5644 = vmatprep.subr.mxu0 0.0
        %5645 = vmatpush1.msra.mxu0 %v5632
        %5646 = vmatprep.subr.mxu0 0.0
        %5647 = vmatpush1.msra.mxu0 0.0
        %5648 = vmatprep.subr.mxu0 0.0
        %5649 = vmatpush1.msra.mxu0 0.0
        %5650 = vmatprep.subr.mxu0 0.0
        %5651 = vmatpush1.msra.mxu0 0.0
        %5652 = vmatprep.subr.mxu0 0.0
        %5653 = vmatpush1.msra.mxu0 0.0
        %5654 = vmatprep.subr.mxu0 0.0
        %5655 = vmatpush1.msra.mxu0 0.0
        %5656 = vmatprep.subr.mxu0 0.0
        %5657 = vmatpush1.msra.mxu0 0.0
        %5658 = vmatprep.subr.mxu0 0.0
        %5659 = vmatpush1.msra.mxu0 0.0
        %5660 = vmatprep.subr.mxu0 0.0
        %5661 = vmatpush1.msra.mxu0 0.0
        %5662 = vmatprep.subr.mxu0 0.0
        %5663 = vmatpush1.msra.mxu0 0.0
        %5664 = vmatprep.subr.mxu0 0.0
        %5665 = vmatpush1.msra.mxu0 0.0
        %5666 = vmatprep.subr.mxu0 0.0
        %5667 = vmatpush1.msra.mxu0 0.0
        %5668 = vmatprep.subr.mxu0 0.0
        %5669 = vmatpush1.msra.mxu0 0.0
        %5670 = vmatprep.subr.mxu0 0.0
        %5671 = vmatpush1.msra.mxu0 0.0
        %5672 = vmatprep.subr.mxu0 0.0
        %5673 = vmatpush1.msra.mxu0 0.0
        %5674 = vmatprep.subr.mxu0 0.0
        %5675 = vmatpush1.msra.mxu0 0.0
        %5676 = vmatprep.subr.mxu0 0.0
        %5677 = vmatpush1.msra.mxu0 0.0
        %5678 = vmatprep.subr.mxu0 0.0
        %5679 = vmatpush1.msra.mxu0 0.0
        %5680 = vmatprep.subr.mxu0 0.0
        %5681 = vmatpush1.msra.mxu0 0.0
        %5682 = vmatprep.subr.mxu0 0.0
        %5683 = vmatpush1.msra.mxu0 0.0
        %5684 = vmatprep.subr.mxu0 0.0
        %5685 = vmatpush1.msra.mxu0 0.0
        %5686 = vmatprep.subr.mxu0 0.0
        %5687 = vmatpush1.msra.mxu0 0.0
        %5688 = vmatprep.subr.mxu0 0.0
        %5689 = vmatpush1.msra.mxu0 0.0
        %5690 = vmatprep.subr.mxu0 0.0
        %5691 = vmatpush1.msra.mxu0 0.0
        %5692 = vmatprep.subr.mxu0 0.0
        %5693 = vmatpush1.msra.mxu0 0.0
        %5694 = vmatprep.subr.mxu0 0.0
        %5695 = vmatpush1.msra.mxu0 0.0
        %5696 = vmatprep.subr.mxu0 0.0
        %5697 = vmatpush1.msra.mxu0 0.0
        %5698 = vmatprep.subr.mxu0 0.0
        %5699 = vmatpush1.msra.mxu0 0.0
        %5700 = vmatprep.subr.mxu0 0.0
        %5701 = vmatpush1.msra.mxu0 0.0
        %5702 = vmatprep.mubr.f32.mxu0 0.0
        %5703 = vmatmul.mubr.f32.gmra.mrb[0].mxu0 %v5636
        %v5704 = vpop.f32.mrb[0].mxu0
        %v5705 = vadd.f32 %v5633, %v5704
        %v5706 = vpop.f32.mrb[0].mxu0
        %5707 = vdwg.mxu0
        %5709 = vrot.lane.b32.xlu0 %v5705, 64
        %v5710 = vpop.permute.xlu0 %5709
        %v5712 = vmax.f32 %v5705, %v5710
        %v5713 = vsub.f32 %v5705, %v5712
        %v5714 = vmul.f32 %v5713, 1.442695
        %v5715 = vpow.pop %v5714
        %5717 = vrot.lane.b32.xlu0 %v5712, 64
        %v5718 = vpop.permute.xlu0 %5717
        %v5720 = vsub.f32 %v5705, %v5718
        %v5721 = vmul.f32 %v5720, 1.442695
        %v5722 = vpow.pop %v5721
        %5724 = vrot.lane.b32.xlu0 %v5722, 64
        %v5725 = vpop.permute.xlu0 %5724
        %v5727 = vadd.f32 %v5715, %v5725
        %v5728 = vrcp.pop %v5727
        %v5729 = vmul.f32 %v5715, %v5728
        %5731 = vrot.lane.b32.xlu0 %v5728, 64
        %v5732 = vpop.permute.xlu0 %5731
        %v5734 = vmul.f32 %v5722, %v5732
        %v5735 = vsel %vm5180, %v5729, %v5734
        %v5736 = vlaneseq
        %v5737 = vshrl.u32 %v5736, 7
        %v5738 = vsub.s32 0, %v5737
        %v5739 = vrot.slane %v5735, %v5738
        %v5740 = vmul.f32 %v5467, %v5739
        %v5741 = vmul.f32 %v5468, %v5739
        %v5742 = vmul.f32 %v5469, %v5739
        %v5743 = vmul.f32 %v5470, %v5739
        %v5744 = vmul.f32 %v5471, %v5739
        %v5745 = vmul.f32 %v5472, %v5739
        %v5746 = vmul.f32 %v5473, %v5739
        %v5747 = vmul.f32 %v5474, %v5739
        %v5748 = vmul.f32 %v5475, %v5739
        %v5749 = vmul.f32 %v5476, %v5739
        %v5750 = vmul.f32 %v5477, %v5739
        %v5751 = vmul.f32 %v5478, %v5739
        %v5752 = vmul.f32 %v5479, %v5739
        %v5753 = vmul.f32 %v5480, %v5739
        %v5754 = vmul.f32 %v5481, %v5739
        %v5755 = vmul.f32 %v5482, %v5739
        %v5756 = vmul.f32 %v5483, %v5739
        %v5757 = vmul.f32 %v5484, %v5739
        %v5758 = vmul.f32 %v5485, %v5739
        %v5759 = vmul.f32 %v5486, %v5739
        %v5760 = vmul.f32 %v5487, %v5739
        %v5761 = vmul.f32 %v5488, %v5739
        %v5762 = vmul.f32 %v5489, %v5739
        %v5763 = vmul.f32 %v5490, %v5739
        %v5764 = vmul.f32 %v5491, %v5739
        %v5765 = vmul.f32 %v5492, %v5739
        %v5766 = vmul.f32 %v5493, %v5739
        %v5767 = vmul.f32 %v5494, %v5739
        %v5768 = vmul.f32 %v5495, %v5739
        %v5769 = vmul.f32 %v5496, %v5739
        %v5770 = vmul.f32 %v5497, %v5739
        %v5771 = vmul.f32 %v5498, %v5739
        %5804 = vrot.lane.b32.xlu0 %v5740, 64
        %v5805 = vpop.permute.xlu0 %5804
        %5806 = vrot.lane.b32.xlu0 %v5741, 64
        %v5807 = vpop.permute.xlu0 %5806
        %5808 = vrot.lane.b32.xlu0 %v5742, 64
        %v5809 = vpop.permute.xlu0 %5808
        %5810 = vrot.lane.b32.xlu0 %v5743, 64
        %v5811 = vpop.permute.xlu0 %5810
        %5812 = vrot.lane.b32.xlu0 %v5744, 64
        %v5813 = vpop.permute.xlu0 %5812
        %5814 = vrot.lane.b32.xlu0 %v5745, 64
        %v5815 = vpop.permute.xlu0 %5814
        %5816 = vrot.lane.b32.xlu0 %v5746, 64
        %v5817 = vpop.permute.xlu0 %5816
        %5818 = vrot.lane.b32.xlu0 %v5747, 64
        %v5819 = vpop.permute.xlu0 %5818
        %5820 = vrot.lane.b32.xlu0 %v5748, 64
        %v5821 = vpop.permute.xlu0 %5820
        %5822 = vrot.lane.b32.xlu0 %v5749, 64
        %v5823 = vpop.permute.xlu0 %5822
        %5824 = vrot.lane.b32.xlu0 %v5750, 64
        %v5825 = vpop.permute.xlu0 %5824
        %5826 = vrot.lane.b32.xlu0 %v5751, 64
        %v5827 = vpop.permute.xlu0 %5826
        %5828 = vrot.lane.b32.xlu0 %v5752, 64
        %v5829 = vpop.permute.xlu0 %5828
        %5830 = vrot.lane.b32.xlu0 %v5753, 64
        %v5831 = vpop.permute.xlu0 %5830
        %5832 = vrot.lane.b32.xlu0 %v5754, 64
        %v5833 = vpop.permute.xlu0 %5832
        %5834 = vrot.lane.b32.xlu0 %v5755, 64
        %v5835 = vpop.permute.xlu0 %5834
        %5836 = vrot.lane.b32.xlu0 %v5756, 64
        %v5837 = vpop.permute.xlu0 %5836
        %5838 = vrot.lane.b32.xlu0 %v5757, 64
        %v5839 = vpop.permute.xlu0 %5838
        %5840 = vrot.lane.b32.xlu0 %v5758, 64
        %v5841 = vpop.permute.xlu0 %5840
        %5842 = vrot.lane.b32.xlu0 %v5759, 64
        %v5843 = vpop.permute.xlu0 %5842
        %5844 = vrot.lane.b32.xlu0 %v5760, 64
        %v5845 = vpop.permute.xlu0 %5844
        %5846 = vrot.lane.b32.xlu0 %v5761, 64
        %v5847 = vpop.permute.xlu0 %5846
        %5848 = vrot.lane.b32.xlu0 %v5762, 64
        %v5849 = vpop.permute.xlu0 %5848
        %5850 = vrot.lane.b32.xlu0 %v5763, 64
        %v5851 = vpop.permute.xlu0 %5850
        %5852 = vrot.lane.b32.xlu0 %v5764, 64
        %v5853 = vpop.permute.xlu0 %5852
        %5854 = vrot.lane.b32.xlu0 %v5765, 64
        %v5855 = vpop.permute.xlu0 %5854
        %5856 = vrot.lane.b32.xlu0 %v5766, 64
        %v5857 = vpop.permute.xlu0 %5856
        %5858 = vrot.lane.b32.xlu0 %v5767, 64
        %v5859 = vpop.permute.xlu0 %5858
        %5860 = vrot.lane.b32.xlu0 %v5768, 64
        %v5861 = vpop.permute.xlu0 %5860
        %5862 = vrot.lane.b32.xlu0 %v5769, 64
        %v5863 = vpop.permute.xlu0 %5862
        %5864 = vrot.lane.b32.xlu0 %v5770, 64
        %v5865 = vpop.permute.xlu0 %5864
        %5866 = vrot.lane.b32.xlu0 %v5771, 64
        %v5867 = vpop.permute.xlu0 %5866
        %v5900 = vadd.f32 %v5740, %v5805
        %v5901 = vadd.f32 %v5741, %v5807
        %v5902 = vadd.f32 %v5742, %v5809
        %v5903 = vadd.f32 %v5743, %v5811
        %v5904 = vadd.f32 %v5744, %v5813
        %v5905 = vadd.f32 %v5745, %v5815
        %v5906 = vadd.f32 %v5746, %v5817
        %v5907 = vadd.f32 %v5747, %v5819
        %v5908 = vadd.f32 %v5748, %v5821
        %v5909 = vadd.f32 %v5749, %v5823
        %v5910 = vadd.f32 %v5750, %v5825
        %v5911 = vadd.f32 %v5751, %v5827
        %v5912 = vadd.f32 %v5752, %v5829
        %v5913 = vadd.f32 %v5753, %v5831
        %v5914 = vadd.f32 %v5754, %v5833
        %v5915 = vadd.f32 %v5755, %v5835
        %v5916 = vadd.f32 %v5756, %v5837
        %v5917 = vadd.f32 %v5757, %v5839
        %v5918 = vadd.f32 %v5758, %v5841
        %v5919 = vadd.f32 %v5759, %v5843
        %v5920 = vadd.f32 %v5760, %v5845
        %v5921 = vadd.f32 %v5761, %v5847
        %v5922 = vadd.f32 %v5762, %v5849
        %v5923 = vadd.f32 %v5763, %v5851
        %v5924 = vadd.f32 %v5764, %v5853
        %v5925 = vadd.f32 %v5765, %v5855
        %v5926 = vadd.f32 %v5766, %v5857
        %v5927 = vadd.f32 %v5767, %v5859
        %v5928 = vadd.f32 %v5768, %v5861
        %v5929 = vadd.f32 %v5769, %v5863
        %v5930 = vadd.f32 %v5770, %v5865
        %v5931 = vadd.f32 %v5771, %v5867
        %5932 = vxpose.xlu0.b32.start [1/16] %v5900, 128
        %5933 = vxpose.xlu0.b32.cont [2/16] %v5901, 128
        %5934 = vxpose.xlu0.b32.cont [3/16] %v5902, 128
        %5935 = vxpose.xlu0.b32.cont [4/16] %v5903, 128
        %5936 = vxpose.xlu0.b32.cont [5/16] %v5904, 128
        %5937 = vxpose.xlu0.b32.cont [6/16] %v5905, 128
        %5938 = vxpose.xlu0.b32.cont [7/16] %v5906, 128
        %5939 = vxpose.xlu0.b32.cont [8/16] %v5907, 128
        %5940 = vxpose.xlu0.b32.cont [9/16] %v5908, 128
        %5941 = vxpose.xlu0.b32.cont [10/16] %v5909, 128
        %5942 = vxpose.xlu0.b32.cont [11/16] %v5910, 128
        %5943 = vxpose.xlu0.b32.cont [12/16] %v5911, 128
        %5944 = vxpose.xlu0.b32.cont [13/16] %v5912, 128
        %5945 = vxpose.xlu0.b32.cont [14/16] %v5913, 128
        %5946 = vxpose.xlu0.b32.cont [15/16] %v5914, 128
        %5947 = vxpose.xlu0.b32.end [16/16] %v5915, 128
        %v5948 = vpop.trf.xlu0
        %v5949 = vpop.trf.xlu0
        %v5950 = vpop.trf.xlu0
        %v5951 = vpop.trf.xlu0
        %v5952 = vpop.trf.xlu0
        %v5953 = vpop.trf.xlu0
        %v5954 = vpop.trf.xlu0
        %v5955 = vpop.trf.xlu0
        %v5956 = vpop.trf.xlu0
        %v5957 = vpop.trf.xlu0
        %v5958 = vpop.trf.xlu0
        %v5959 = vpop.trf.xlu0
        %v5960 = vpop.trf.xlu0
        %v5961 = vpop.trf.xlu0
        %v5962 = vpop.trf.xlu0
        %v5963 = vpop.trf.xlu0
        %5964 = vxpose.xlu0.b32.start [1/16] %v5916, 128
        %5965 = vxpose.xlu0.b32.cont [2/16] %v5917, 128
        %5966 = vxpose.xlu0.b32.cont [3/16] %v5918, 128
        %5967 = vxpose.xlu0.b32.cont [4/16] %v5919, 128
        %5968 = vxpose.xlu0.b32.cont [5/16] %v5920, 128
        %5969 = vxpose.xlu0.b32.cont [6/16] %v5921, 128
        %5970 = vxpose.xlu0.b32.cont [7/16] %v5922, 128
        %5971 = vxpose.xlu0.b32.cont [8/16] %v5923, 128
        %5972 = vxpose.xlu0.b32.cont [9/16] %v5924, 128
        %5973 = vxpose.xlu0.b32.cont [10/16] %v5925, 128
        %5974 = vxpose.xlu0.b32.cont [11/16] %v5926, 128
        %5975 = vxpose.xlu0.b32.cont [12/16] %v5927, 128
        %5976 = vxpose.xlu0.b32.cont [13/16] %v5928, 128
        %5977 = vxpose.xlu0.b32.cont [14/16] %v5929, 128
        %5978 = vxpose.xlu0.b32.cont [15/16] %v5930, 128
        %5979 = vxpose.xlu0.b32.end [16/16] %v5931, 128
        %v5980 = vpop.trf.xlu0
        %v5981 = vpop.trf.xlu0
        %v5982 = vpop.trf.xlu0
        %v5983 = vpop.trf.xlu0
        %v5984 = vpop.trf.xlu0
        %v5985 = vpop.trf.xlu0
        %v5986 = vpop.trf.xlu0
        %v5987 = vpop.trf.xlu0
        %v5988 = vpop.trf.xlu0
        %v5989 = vpop.trf.xlu0
        %v5990 = vpop.trf.xlu0
        %v5991 = vpop.trf.xlu0
        %v5992 = vpop.trf.xlu0
        %v5993 = vpop.trf.xlu0
        %v5994 = vpop.trf.xlu0
        %v5995 = vpop.trf.xlu0
        %5996 = vst [vmem:[%s352] sm:$0xff] %v5948
        %5997 = vst [vmem:[%s352 + $0x8] sm:$0xff] %v5980
        %5998 = vst [vmem:[%s352 + $0x10] sm:$0xff] %v5949
        %5999 = vst [vmem:[%s352 + $0x18] sm:$0xff] %v5981
        %6000 = vst [vmem:[%s352 + $0x20] sm:$0xff] %v5950
        %6001 = vst [vmem:[%s352 + $0x28] sm:$0xff] %v5982
        %6002 = vst [vmem:[%s352 + $0x30] sm:$0xff] %v5951
        %6003 = vst [vmem:[%s352 + $0x38] sm:$0xff] %v5983
        %6004 = vst [vmem:[%s352 + $0x40] sm:$0xff] %v5952
        %6005 = vst [vmem:[%s352 + $0x48] sm:$0xff] %v5984
        %6006 = vst [vmem:[%s352 + $0x50] sm:$0xff] %v5953
        %6007 = vst [vmem:[%s352 + $0x58] sm:$0xff] %v5985
        %6008 = vst [vmem:[%s352 + $0x60] sm:$0xff] %v5954
        %6009 = vst [vmem:[%s352 + $0x68] sm:$0xff] %v5986
        %6010 = vst [vmem:[%s352 + $0x70] sm:$0xff] %v5955
        %6011 = vst [vmem:[%s352 + $0x78] sm:$0xff] %v5987
        %s6012 = sand.u32 %s247, 1
        %s6013 = scalar_lea.sflag [#allocation3], %s6012
        %s6014 = sand.u32 %s247, 1
        %s6015 = smul.addr %s6014, 128
        %s6016 = scalar_lea.vmem [#allocation2], %s6015
        // Predicated region
        $region61: #{tpu_custom_call.1} parent=59 // pred_check
          %p6017 = pneg %p257
        $region62: #{tpu_custom_call.1} parent=59 // pred_check_branch
          %6019 = sbr.rel (%p6017) target = $region64
        $region63: #{tpu_custom_call.1} parent=59 // pred_region
          %s6021 = ssub.s32 2048, 2048
          %6022 = vsyncadd %s6013, %s6021
          %s6023 = smul.addr %s24, 16
          %s6024 = smul.addr %s6023, 128
          %s6025 = scalar_lea.hbm %s10, %s6024
          %s6026 = sshll.u32 %s6016, 4
          %s6027 = int_to_ptr.vmem [resolvable:$true] %s6026
          %6032 = dma.vmem_to_hbm [thread:$0]  %s6027, 2048, %s6025, %s6013, 256, 256, 16
        $region64: #{tpu_custom_call.1} parent=59 // pred_fallthru
          _
      $region60: #{tpu_custom_call.1} parent=5 // pred_fallthru
        _
      %p6033 = scmp.le.s32.totalorder 2, %s19
      // Predicated region
      $region65: #{tpu_custom_call.1} parent=5 // pred_check
        %p6034 = pneg %p6033
      $region66: #{tpu_custom_call.1} parent=5 // pred_check_branch
        %6036 = sbr.rel (%p6034) target = $region68
      $region67: #{tpu_custom_call.1} parent=5 // pred_region
        %s6037 = ssub.s32 %s19, 2
        // Predicated region
        $region69: #{tpu_custom_call.1} parent=67 // pred_check
          %p6038 = pneg %p263
        $region70: #{tpu_custom_call.1} parent=67 // pred_check_branch
          %6040 = sbr.rel (%p6038) target = $region72
        $region71: #{tpu_custom_call.1} parent=67 // pred_region
          %s6041 = sand.u32 %s248, 1
          %s6042 = scalar_lea.sflag [#allocation3], %s6041
          %s6043 = sand.u32 %s248, 1
          %s6044 = smul.addr %s6043, 128
          %s6045 = scalar_lea.vmem [#allocation2], %s6044
          %6046 = dma.done %s6042, 2048
        $region72: #{tpu_custom_call.1} parent=67 // pred_fallthru
          _
      $region68: #{tpu_custom_call.1} parent=5 // pred_fallthru
        _
    $region6: #{tpu_custom_call.1} parent=1 // loop_footer
      %s23 = sadd.s32 1, %s19
    $region7: #{tpu_custom_call.1} parent=1 // loop_footer_branch
      %18 = sbr.rel target = $region3
    $region8: #{tpu_custom_call.1} parent=1 // loop_exit
      _
    %6047 = vsyncpa [#allocation3], 1
    %s6048 = scalar_lea.sflag [#allocation3], 1
    %6049 = vsyncpa %s6048, 1

</llo_original>
